<compile_context>
chip_gen: v5e
topology: v5e:2x2
jax: 0.10.0
libtpu: 0.0.40
codegen_flags: <defaults>
</compile_context>

<pallas_src>
import functools

import numpy as np
import jax
import jax.numpy as jnp
from jax.experimental import pallas as pl
from jax.experimental.pallas import tpu as pltpu

LEAKY_SLOPE = 0.01   # torch.nn.LeakyReLU default


# ------------------------------- helpers ---------------------------------- #
def _round_up(x, m):
    return ((x + m - 1) // m) * m


def _device_kind():
    try:
        return jax.devices()[0].device_kind.lower()
    except Exception:
        return ""


def _has_bf16_vpu(kind):
    # v6e / v7x have a native bf16 VALU; v5e and older do not.
    return any(t in kind for t in ("v6", "tpu6", "v7", "tpu7"))


def _is_two_tensorcore(kind):
    # chips whose dual-TC / megacore sharding wants >= 2 parallel grid units
    return any(t in kind for t in ("v7", "tpu7", "v4", "v5p"))


def _choose_pixel_tile(hw, n_imgs, kind):
    """Lane (pixel) tile width: as big as possible; only force >=2 pixel tiles
    on 2-TensorCore chips when the image axis cannot provide parallelism."""
    max_tp = 8192 if _has_bf16_vpu(kind) else 4096
    hw128 = _round_up(hw, 128)
    tp = min(max_tp, hw128)
    if _is_two_tensorcore(kind) and n_imgs == 1 and hw128 > 128 and hw128 <= tp:
        tp = _round_up(hw128 // 2, 128)
    return tp


def _choose_image_block(n_imgs, tp):
    """How many images to fold into one grid step (amortizes the ~0.35us
    per-step fixed overhead when the pixel tile is small)."""
    ib = max(1, min(8, 2048 // tp))
    return max(1, min(ib, n_imgs))


# ----------------------------- Pallas kernel ------------------------------ #
def cppn_mlp_kernel(cT_ref, b_ref, w_ref, o_ref, *, bf16_act):
    """One (pixel-tile, image-block) grid step of the CPPN MLP (transposed).

    cT_ref : (F, TP)      bf16  coords @ W0[:2], transposed (shared per pixel)
    b_ref  : (IB, F, 1)   bf16  aux_i  @ W0[2:], transposed (one col per image)
    w_ref  : (L-1, F, F)  bf16  W_l^T for layers 1..L-1, zero padded to F=16
    o_ref  : (IB, 1, TP)  f32   tanh(output channel 0) for this tile
    """
    c = cT_ref[...]                               # (F, TP) bf16, loaded once
    n_imgs = b_ref.shape[0]
    n_hidden = w_ref.shape[0] - 1
    ws = [w_ref[l] for l in range(n_hidden)]      # hoist tiny weight loads
    w_last = w_ref[n_hidden]                      # only row 0 is non-zero

    def leaky(a):  # 2-op LeakyReLU (valid because 0 < slope < 1)
        return jnp.maximum(a, LEAKY_SLOPE * a)

    for b in range(n_imgs):                       # static unroll over images
        bias = b_ref[b]                           # (F, 1) bf16
        if bf16_act:                              # bf16 VALU path (v6e / v7x)
            h = leaky(c + bias)
        else:                                     # f32 VALU path (v5e & older)
            h = leaky(c.astype(jnp.float32)
                      + bias.astype(jnp.float32)).astype(jnp.bfloat16)
        for l in range(n_hidden):                 # hidden layers 1..L-2
            a = jnp.dot(ws[l], h, preferred_element_type=jnp.float32)
            if bf16_act:
                h = leaky(a.astype(jnp.bfloat16))
            else:
                h = leaky(a).astype(jnp.bfloat16)
        # final layer: only output row 0 matters (out_channels == 1)
        y = jnp.dot(w_last, h, preferred_element_type=jnp.float32)   # (F, TP)
        o_ref[b] = jnp.tanh(y[0:1, :])            # lane-dense (1, TP) store


def cppn_mlp_pallas(cT, b_in, w_rest_T, *, tp, ib, bf16_act):
    """cT: (F, HW_pad) bf16, b_in: (n_pad, F, 1) bf16,
    w_rest_T: (L-1, F, F) bf16.  Returns (n_pad, 1, HW_pad) f32."""
    f_pad, hw_pad = cT.shape
    n_pad = b_in.shape[0]
    lm1 = w_rest_T.shape[0]
    assert hw_pad % tp == 0 and n_pad % ib == 0
    num_p = hw_pad // tp
    n_blk = n_pad // ib

    flops = 2 * f_pad * f_pad * lm1 * n_pad * hw_pad + 4 * f_pad * n_pad * hw_pad
    bytes_accessed = (cT.size * cT.dtype.itemsize
                      + b_in.size * b_in.dtype.itemsize
                      + w_rest_T.size * w_rest_T.dtype.itemsize
                      + n_pad * hw_pad * 4)

    return pl.pallas_call(
        functools.partial(cppn_mlp_kernel, bf16_act=bf16_act),
        out_shape=jax.ShapeDtypeStruct((n_pad, 1, hw_pad), jnp.float32),
        grid_spec=pltpu.PrefetchScalarGridSpec(
            num_scalar_prefetch=0,
            grid=(num_p, n_blk),                  # image axis innermost ->
            in_specs=[                            # coord tile stays resident
                pl.BlockSpec((f_pad, tp), lambda p, j: (0, p)),
                pl.BlockSpec((ib, f_pad, 1), lambda p, j: (j, 0, 0)),
                pl.BlockSpec((lm1, f_pad, f_pad), lambda p, j: (0, 0, 0)),
            ],
            out_specs=pl.BlockSpec((ib, 1, tp), lambda p, j: (j, 0, p)),
        ),
        compiler_params=pltpu.CompilerParams(
            dimension_semantics=("parallel", "parallel")),
        cost_estimate=pl.CostEstimate(
            flops=flops, transcendentals=n_pad * hw_pad,
            bytes_accessed=bytes_accessed),
    )(cT, b_in, w_rest_T)


# --------------------------- parameter creation ---------------------------- #
def init_params(key, *, num_neurons, embedding_dim, num_invariances,
                with_periodic_invariances, layers, layers_width,
                out_channels, weights_scale):
    if isinstance(with_periodic_invariances, bool):
        with_periodic_invariances = [with_periodic_invariances] * num_invariances
    n_periodic = sum(with_periodic_invariances)
    n_nonperiodic = len(with_periodic_invariances) - n_periodic
    aux_dim = embedding_dim + n_nonperiodic + 2 * n_periodic
    in_dim = 2 + aux_dim  # ndim=2 coordinates + aux features

    assert layers >= 2
    assert out_channels == 1          # module's final reshape implies 1 channel
    # pad the hidden width only to the bf16 sublane tile (16), not 128
    f_pad = max(16, _round_up(max(layers_width, out_channels), 16))

    keys = jax.random.split(key, layers + 1)
    # neuron embeddings ~ U[-0.5, 0.5)
    neuron_embeddings = jax.random.uniform(
        keys[0], (num_neurons, embedding_dim), dtype=jnp.float32) - 0.5

    # linear weights ~ N(0, weights_scale), stored as (in, out), no bias
    dims = [in_dim] + [layers_width] * (layers - 1) + [out_channels]
    weights = [jax.random.normal(keys[i + 1], (dims[i], dims[i + 1]),
                                 dtype=jnp.float32) * weights_scale
               for i in range(layers)]

    # transposed, zero-padded bf16 stack of layers 1..L-1 for the kernel
    w_rest_T = jnp.zeros((layers - 1, f_pad, f_pad), jnp.float32)
    for l in range(1, layers):
        w = weights[l]  # (in, out)
        w_rest_T = w_rest_T.at[l - 1, :w.shape[1], :w.shape[0]].set(w.T)
    w_rest_T = w_rest_T.astype(jnp.bfloat16)

    return dict(neuron_embeddings=neuron_embeddings, weights=weights,
                w_rest_T=w_rest_T, f_pad=f_pad,
                with_periodic_invariances=with_periodic_invariances,
                aux_dim=aux_dim, in_dim=in_dim)


# ------------------------------ forward pass ------------------------------- #
def _transform_invariances(inv_aux_input, with_periodic):
    parts = []
    for i, periodic in enumerate(with_periodic):
        col = inv_aux_input[:, i]
        if periodic:
            parts.append(jnp.stack([jnp.sin(col), jnp.cos(col)], axis=1))
        else:
            parts.append((col / np.pi - 1.0)[:, None])
    return jnp.concatenate(parts, axis=1)


def _build_aux(inv_aux_input, params, aux_dim_scale):
    inv_t = _transform_invariances(inv_aux_input,
                                   params["with_periodic_invariances"])
    emb = params["neuron_embeddings"]
    N, E = emb.shape
    S = inv_t.shape[0]
    emb_b = jnp.broadcast_to(emb[:, None, :], (N, S, E))
    inv_b = jnp.broadcast_to(inv_t[None], (N, S, inv_t.shape[1]))
    aux = jnp.concatenate([inv_b, emb_b], axis=-1).reshape(N * S, -1)
    return aux * aux_dim_scale                                   # (N*S, aux_dim)


def _coord_grid(img_res):
    H, W = img_res
    yy, xx = jnp.meshgrid(jnp.linspace(-1.0, 1.0, H),
                          jnp.linspace(-1.0, 1.0, W), indexing="ij")
    return jnp.stack([yy, xx], axis=-1).reshape(H * W, 2).astype(jnp.float32)


def cppn_for_invariances_forward(inv_aux_input, params, img_res,
                                 aux_dim_scale=1.0):
    """inv_aux_input: [num_imgs_per_neuron, num_invariances] float32.
    Returns images of shape [num_neurons*num_imgs_per_neuron, 1, H, W]."""
    aux = _build_aux(inv_aux_input, params, aux_dim_scale)       # (n, aux_dim)
    coords = _coord_grid(img_res)                                # (HW, 2)
    n = aux.shape[0]
    H, W = img_res
    HW = H * W
    f_pad = params["f_pad"]

    # layer-0 decomposition (no bias):  x @ W0 = coords @ W0[:2] + aux @ W0[2:]
    w0 = params["weights"][0]                                    # (in_dim, width)
    width = w0.shape[1]
    c_feat = coords @ w0[:2]                                     # (HW, width)
    b_feat = aux @ w0[2:]                                        # (n,  width)

    kind = _device_kind()
    tp = _choose_pixel_tile(HW, n, kind)
    ib = _choose_image_block(n, tp)
    hw_pad = _round_up(HW, tp)
    n_pad = _round_up(n, ib)

    cT = (jnp.zeros((f_pad, hw_pad), jnp.float32)
          .at[:width, :HW].set(c_feat.T).astype(jnp.bfloat16))   # (16, HW_pad)
    b_in = (jnp.zeros((n_pad, f_pad, 1), jnp.float32)
            .at[:n, :width, 0].set(b_feat).astype(jnp.bfloat16)) # (n_pad, 16, 1)

    y = cppn_mlp_pallas(cT, b_in, params["w_rest_T"],
                        tp=tp, ib=ib,
                        bf16_act=_has_bf16_vpu(kind))            # (n_pad,1,HW_pad)
    images = y[:n, 0, :HW].reshape(n, H, W)[:, None, :, :]       # NCHW, C=1
    return images


# pure-JAX f32 reference of the full MLP for the correctness check
def mlp_ref(x, weights):
    h = x
    for w in weights[:-1]:
        h = h @ w
        h = jnp.where(h > 0, h, LEAKY_SLOPE * h)
    return jnp.tanh(h @ weights[-1])


if __name__ == "__main__":
    key = jax.random.PRNGKey(0)
    k_param, k_inp = jax.random.split(key)

    # module config (small, consistent with the PyTorch module)
    img_res = (16, 16)
    channels = 1
    num_neurons = 2
    embedding_dim = 3
    num_invariances = 2
    with_periodic_invariances = True
    layers = 8
    layers_width = 15
    weights_scale = 0.35     # larger than default 0.1 so outputs are O(0.1)
    aux_dim_scale = 1.0      # and the numerical check is meaningful
    num_imgs_per_neuron = 4

    params = init_params(
        k_param,
        num_neurons=num_neurons,
        embedding_dim=embedding_dim,
        num_invariances=num_invariances,
        with_periodic_invariances=with_periodic_invariances,
        layers=layers,
        layers_width=layers_width,
        out_channels=channels,
        weights_scale=weights_scale,
    )

    # inv_aux_input: [num_imgs_per_neuron, num_invariances]
    inv_aux_input = jax.random.uniform(
        k_inp, (num_imgs_per_neuron, num_invariances),
        dtype=jnp.float32) * (2.0 * np.pi)

    images = cppn_for_invariances_forward(
        inv_aux_input, params, img_res, aux_dim_scale=aux_dim_scale)
    images = jax.block_until_ready(images)

    # shape check: [num_neurons * num_imgs_per_neuron, channels, H, W]
    expected_shape = (num_neurons * num_imgs_per_neuron, channels, *img_res)
    assert images.shape == expected_shape, images.shape
    assert bool(jnp.all(jnp.isfinite(images)))

    # correctness check against a pure-JAX f32 reference that materializes the
    # full (M, in_dim) CPPN input matrix exactly like the PyTorch module.
    aux = _build_aux(inv_aux_input, params, aux_dim_scale)
    coords = _coord_grid(img_res)
    n = aux.shape[0]
    H, W = img_res
    x_full = jnp.concatenate(
        [jnp.broadcast_to(coords[None], (n, H * W, 2)),
         jnp.broadcast_to(aux[:, None, :], (n, H * W, aux.shape[1]))],
        axis=-1).reshape(-1, params["in_dim"])
    y_ref = mlp_ref(x_full, params["weights"])[:, 0].reshape(n, H, W)[:, None]
    np.testing.assert_allclose(np.asarray(images), np.asarray(y_ref),
                               atol=3e-2, rtol=5e-2)

    print("KERNEL_OK")
</pallas_src>

<mosaic_0001>
module attributes {stable_mosaic.version = 11 : i64} {
  func.func @cppn_mlp_kernel(%arg0: i32, %arg1: i32, %arg2: memref<16x256xbf16, #tpu.memory_space<vmem>>, %arg3: memref<8x16x1xbf16, #tpu.memory_space<vmem>>, %arg4: memref<7x16x16xbf16, #tpu.memory_space<vmem>>, %arg5: memref<8x1x256xf32, #tpu.memory_space<vmem>>) attributes {dimension_semantics = [#tpu.dimension_semantics<parallel>, #tpu.dimension_semantics<parallel>], iteration_bounds = array<i64: 1, 1>, scalar_prefetch = 0 : i64, scratch_operands = 0 : i64, tpu.core_type = #tpu.core_type<tc>, window_params = [{transform_indices = @transform_0, window_bounds = array<i64: 16, 256>}, {transform_indices = @transform_1, window_bounds = array<i64: 8, 16, 1>}, {pipeline_mode = #tpu.pipeline_mode<synchronous>, transform_indices = @transform_2, window_bounds = array<i64: 7, 16, 16>}, {transform_indices = @transform_3, window_bounds = array<i64: 8, 1, 256>}]} {
    %c0 = arith.constant 0 : index
    %c0_0 = arith.constant 0 : index
    %0 = vector.load %arg2[%c0, %c0_0] : memref<16x256xbf16, #tpu.memory_space<vmem>>, vector<16x256xbf16>
    %c0_1 = arith.constant 0 : index
    %c0_2 = arith.constant 0 : index
    %c0_3 = arith.constant 0 : index
    %1 = vector.load %arg4[%c0_1, %c0_2, %c0_3] : memref<7x16x16xbf16, #tpu.memory_space<vmem>>, vector<1x16x16xbf16>
    %2 = vector.shape_cast %1 : vector<1x16x16xbf16> to vector<16x16xbf16>
    %c1 = arith.constant 1 : index
    %c0_4 = arith.constant 0 : index
    %c0_5 = arith.constant 0 : index
    %3 = vector.load %arg4[%c1, %c0_4, %c0_5] : memref<7x16x16xbf16, #tpu.memory_space<vmem>>, vector<1x16x16xbf16>
    %4 = vector.shape_cast %3 : vector<1x16x16xbf16> to vector<16x16xbf16>
    %c2 = arith.constant 2 : index
    %c0_6 = arith.constant 0 : index
    %c0_7 = arith.constant 0 : index
    %5 = vector.load %arg4[%c2, %c0_6, %c0_7] : memref<7x16x16xbf16, #tpu.memory_space<vmem>>, vector<1x16x16xbf16>
    %6 = vector.shape_cast %5 : vector<1x16x16xbf16> to vector<16x16xbf16>
    %c3 = arith.constant 3 : index
    %c0_8 = arith.constant 0 : index
    %c0_9 = arith.constant 0 : index
    %7 = vector.load %arg4[%c3, %c0_8, %c0_9] : memref<7x16x16xbf16, #tpu.memory_space<vmem>>, vector<1x16x16xbf16>
    %8 = vector.shape_cast %7 : vector<1x16x16xbf16> to vector<16x16xbf16>
    %c4 = arith.constant 4 : index
    %c0_10 = arith.constant 0 : index
    %c0_11 = arith.constant 0 : index
    %9 = vector.load %arg4[%c4, %c0_10, %c0_11] : memref<7x16x16xbf16, #tpu.memory_space<vmem>>, vector<1x16x16xbf16>
    %10 = vector.shape_cast %9 : vector<1x16x16xbf16> to vector<16x16xbf16>
    %c5 = arith.constant 5 : index
    %c0_12 = arith.constant 0 : index
    %c0_13 = arith.constant 0 : index
    %11 = vector.load %arg4[%c5, %c0_12, %c0_13] : memref<7x16x16xbf16, #tpu.memory_space<vmem>>, vector<1x16x16xbf16>
    %12 = vector.shape_cast %11 : vector<1x16x16xbf16> to vector<16x16xbf16>
    %c6 = arith.constant 6 : index
    %c0_14 = arith.constant 0 : index
    %c0_15 = arith.constant 0 : index
    %13 = vector.load %arg4[%c6, %c0_14, %c0_15] : memref<7x16x16xbf16, #tpu.memory_space<vmem>>, vector<1x16x16xbf16>
    %14 = vector.shape_cast %13 : vector<1x16x16xbf16> to vector<16x16xbf16>
    %c0_16 = arith.constant 0 : index
    %c0_17 = arith.constant 0 : index
    %c0_18 = arith.constant 0 : index
    %15 = vector.load %arg3[%c0_16, %c0_17, %c0_18] : memref<8x16x1xbf16, #tpu.memory_space<vmem>>, vector<1x16x1xbf16>
    %16 = vector.shape_cast %15 : vector<1x16x1xbf16> to vector<16x1xbf16>
    %17 = arith.extf %0 : vector<16x256xbf16> to vector<16x256xf32>
    %18 = arith.extf %16 : vector<16x1xbf16> to vector<16x1xf32>
    %19 = vector.broadcast %18 : vector<16x1xf32> to vector<16x256xf32>
    %20 = arith.addf %17, %19 : vector<16x256xf32>
    %cst = arith.constant 0.00999999977 : f32
    %21 = vector.broadcast %cst : f32 to vector<16x256xf32>
    %22 = arith.mulf %21, %20 : vector<16x256xf32>
    %23 = arith.maximumf %20, %22 : vector<16x256xf32>
    %24 = arith.truncf %23 : vector<16x256xf32> to vector<16x256xbf16>
    %cst_19 = arith.constant dense<0.000000e+00> : vector<16x256xf32>
    %25 = tpu.matmul %2, %24, %cst_19 {dimension_numbers = #tpu.dot_dimension_numbers<[1], [0], [0], [1], [0, 0, 1, 1], [], []>} : vector<16x16xbf16>, vector<16x256xbf16>, vector<16x256xf32> -> vector<16x256xf32>
    %cst_20 = arith.constant 0.00999999977 : f32
    %26 = vector.broadcast %cst_20 : f32 to vector<16x256xf32>
    %27 = arith.mulf %26, %25 : vector<16x256xf32>
    %28 = arith.maximumf %25, %27 : vector<16x256xf32>
    %29 = arith.truncf %28 : vector<16x256xf32> to vector<16x256xbf16>
    %cst_21 = arith.constant dense<0.000000e+00> : vector<16x256xf32>
    %30 = tpu.matmul %4, %29, %cst_21 {dimension_numbers = #tpu.dot_dimension_numbers<[1], [0], [0], [1], [0, 0, 1, 1], [], []>} : vector<16x16xbf16>, vector<16x256xbf16>, vector<16x256xf32> -> vector<16x256xf32>
    %cst_22 = arith.constant 0.00999999977 : f32
    %31 = vector.broadcast %cst_22 : f32 to vector<16x256xf32>
    %32 = arith.mulf %31, %30 : vector<16x256xf32>
    %33 = arith.maximumf %30, %32 : vector<16x256xf32>
    %34 = arith.truncf %33 : vector<16x256xf32> to vector<16x256xbf16>
    %cst_23 = arith.constant dense<0.000000e+00> : vector<16x256xf32>
    %35 = tpu.matmul %6, %34, %cst_23 {dimension_numbers = #tpu.dot_dimension_numbers<[1], [0], [0], [1], [0, 0, 1, 1], [], []>} : vector<16x16xbf16>, vector<16x256xbf16>, vector<16x256xf32> -> vector<16x256xf32>
    %cst_24 = arith.constant 0.00999999977 : f32
    %36 = vector.broadcast %cst_24 : f32 to vector<16x256xf32>
    %37 = arith.mulf %36, %35 : vector<16x256xf32>
    %38 = arith.maximumf %35, %37 : vector<16x256xf32>
    %39 = arith.truncf %38 : vector<16x256xf32> to vector<16x256xbf16>
    %cst_25 = arith.constant dense<0.000000e+00> : vector<16x256xf32>
    %40 = tpu.matmul %8, %39, %cst_25 {dimension_numbers = #tpu.dot_dimension_numbers<[1], [0], [0], [1], [0, 0, 1, 1], [], []>} : vector<16x16xbf16>, vector<16x256xbf16>, vector<16x256xf32> -> vector<16x256xf32>
    %cst_26 = arith.constant 0.00999999977 : f32
    %41 = vector.broadcast %cst_26 : f32 to vector<16x256xf32>
    %42 = arith.mulf %41, %40 : vector<16x256xf32>
    %43 = arith.maximumf %40, %42 : vector<16x256xf32>
    %44 = arith.truncf %43 : vector<16x256xf32> to vector<16x256xbf16>
    %cst_27 = arith.constant dense<0.000000e+00> : vector<16x256xf32>
    %45 = tpu.matmul %10, %44, %cst_27 {dimension_numbers = #tpu.dot_dimension_numbers<[1], [0], [0], [1], [0, 0, 1, 1], [], []>} : vector<16x16xbf16>, vector<16x256xbf16>, vector<16x256xf32> -> vector<16x256xf32>
    %cst_28 = arith.constant 0.00999999977 : f32
    %46 = vector.broadcast %cst_28 : f32 to vector<16x256xf32>
    %47 = arith.mulf %46, %45 : vector<16x256xf32>
    %48 = arith.maximumf %45, %47 : vector<16x256xf32>
    %49 = arith.truncf %48 : vector<16x256xf32> to vector<16x256xbf16>
    %cst_29 = arith.constant dense<0.000000e+00> : vector<16x256xf32>
    %50 = tpu.matmul %12, %49, %cst_29 {dimension_numbers = #tpu.dot_dimension_numbers<[1], [0], [0], [1], [0, 0, 1, 1], [], []>} : vector<16x16xbf16>, vector<16x256xbf16>, vector<16x256xf32> -> vector<16x256xf32>
    %cst_30 = arith.constant 0.00999999977 : f32
    %51 = vector.broadcast %cst_30 : f32 to vector<16x256xf32>
    %52 = arith.mulf %51, %50 : vector<16x256xf32>
    %53 = arith.maximumf %50, %52 : vector<16x256xf32>
    %54 = arith.truncf %53 : vector<16x256xf32> to vector<16x256xbf16>
    %cst_31 = arith.constant dense<0.000000e+00> : vector<16x256xf32>
    %55 = tpu.matmul %14, %54, %cst_31 {dimension_numbers = #tpu.dot_dimension_numbers<[1], [0], [0], [1], [0, 0, 1, 1], [], []>} : vector<16x16xbf16>, vector<16x256xbf16>, vector<16x256xf32> -> vector<16x256xf32>
    %56 = vector.extract_strided_slice %55 {offsets = [0, 0], sizes = [1, 256], strides = [1, 1]} : vector<16x256xf32> to vector<1x256xf32>
    %57 = math.tanh %56 : vector<1x256xf32>
    %c0_32 = arith.constant 0 : index
    %c0_33 = arith.constant 0 : index
    %c0_34 = arith.constant 0 : index
    %58 = vector.load %arg5[%c0_32, %c0_33, %c0_34] : memref<8x1x256xf32, #tpu.memory_space<vmem>>, vector<1x1x256xf32>
    %59 = vector.shape_cast %58 : vector<1x1x256xf32> to vector<1x256xf32>
    %60 = vector.shape_cast %57 : vector<1x256xf32> to vector<1x1x256xf32>
    tpu.vector_store %arg5[%c0_32, %c0_33, %c0_34], %60 {strides = array<i32>} : memref<8x1x256xf32, #tpu.memory_space<vmem>>, vector<1x1x256xf32>,
    %c1_35 = arith.constant 1 : index
    %c0_36 = arith.constant 0 : index
    %c0_37 = arith.constant 0 : index
    %61 = vector.load %arg3[%c1_35, %c0_36, %c0_37] : memref<8x16x1xbf16, #tpu.memory_space<vmem>>, vector<1x16x1xbf16>
    %62 = vector.shape_cast %61 : vector<1x16x1xbf16> to vector<16x1xbf16>
    %63 = arith.extf %0 : vector<16x256xbf16> to vector<16x256xf32>
    %64 = arith.extf %62 : vector<16x1xbf16> to vector<16x1xf32>
    %65 = vector.broadcast %64 : vector<16x1xf32> to vector<16x256xf32>
    %66 = arith.addf %63, %65 : vector<16x256xf32>
    %cst_38 = arith.constant 0.00999999977 : f32
    %67 = vector.broadcast %cst_38 : f32 to vector<16x256xf32>
    %68 = arith.mulf %67, %66 : vector<16x256xf32>
    %69 = arith.maximumf %66, %68 : vector<16x256xf32>
    %70 = arith.truncf %69 : vector<16x256xf32> to vector<16x256xbf16>
    %cst_39 = arith.constant dense<0.000000e+00> : vector<16x256xf32>
    %71 = tpu.matmul %2, %70, %cst_39 {dimension_numbers = #tpu.dot_dimension_numbers<[1], [0], [0], [1], [0, 0, 1, 1], [], []>} : vector<16x16xbf16>, vector<16x256xbf16>, vector<16x256xf32> -> vector<16x256xf32>
    %cst_40 = arith.constant 0.00999999977 : f32
    %72 = vector.broadcast %cst_40 : f32 to vector<16x256xf32>
    %73 = arith.mulf %72, %71 : vector<16x256xf32>
    %74 = arith.maximumf %71, %73 : vector<16x256xf32>
    %75 = arith.truncf %74 : vector<16x256xf32> to vector<16x256xbf16>
    %cst_41 = arith.constant dense<0.000000e+00> : vector<16x256xf32>
    %76 = tpu.matmul %4, %75, %cst_41 {dimension_numbers = #tpu.dot_dimension_numbers<[1], [0], [0], [1], [0, 0, 1, 1], [], []>} : vector<16x16xbf16>, vector<16x256xbf16>, vector<16x256xf32> -> vector<16x256xf32>
    %cst_42 = arith.constant 0.00999999977 : f32
    %77 = vector.broadcast %cst_42 : f32 to vector<16x256xf32>
    %78 = arith.mulf %77, %76 : vector<16x256xf32>
    %79 = arith.maximumf %76, %78 : vector<16x256xf32>
    %80 = arith.truncf %79 : vector<16x256xf32> to vector<16x256xbf16>
    %cst_43 = arith.constant dense<0.000000e+00> : vector<16x256xf32>
    %81 = tpu.matmul %6, %80, %cst_43 {dimension_numbers = #tpu.dot_dimension_numbers<[1], [0], [0], [1], [0, 0, 1, 1], [], []>} : vector<16x16xbf16>, vector<16x256xbf16>, vector<16x256xf32> -> vector<16x256xf32>
    %cst_44 = arith.constant 0.00999999977 : f32
    %82 = vector.broadcast %cst_44 : f32 to vector<16x256xf32>
    %83 = arith.mulf %82, %81 : vector<16x256xf32>
    %84 = arith.maximumf %81, %83 : vector<16x256xf32>
    %85 = arith.truncf %84 : vector<16x256xf32> to vector<16x256xbf16>
    %cst_45 = arith.constant dense<0.000000e+00> : vector<16x256xf32>
    %86 = tpu.matmul %8, %85, %cst_45 {dimension_numbers = #tpu.dot_dimension_numbers<[1], [0], [0], [1], [0, 0, 1, 1], [], []>} : vector<16x16xbf16>, vector<16x256xbf16>, vector<16x256xf32> -> vector<16x256xf32>
    %cst_46 = arith.constant 0.00999999977 : f32
    %87 = vector.broadcast %cst_46 : f32 to vector<16x256xf32>
    %88 = arith.mulf %87, %86 : vector<16x256xf32>
    %89 = arith.maximumf %86, %88 : vector<16x256xf32>
    %90 = arith.truncf %89 : vector<16x256xf32> to vector<16x256xbf16>
    %cst_47 = arith.constant dense<0.000000e+00> : vector<16x256xf32>
    %91 = tpu.matmul %10, %90, %cst_47 {dimension_numbers = #tpu.dot_dimension_numbers<[1], [0], [0], [1], [0, 0, 1, 1], [], []>} : vector<16x16xbf16>, vector<16x256xbf16>, vector<16x256xf32> -> vector<16x256xf32>
    %cst_48 = arith.constant 0.00999999977 : f32
    %92 = vector.broadcast %cst_48 : f32 to vector<16x256xf32>
    %93 = arith.mulf %92, %91 : vector<16x256xf32>
    %94 = arith.maximumf %91, %93 : vector<16x256xf32>
    %95 = arith.truncf %94 : vector<16x256xf32> to vector<16x256xbf16>
    %cst_49 = arith.constant dense<0.000000e+00> : vector<16x256xf32>
    %96 = tpu.matmul %12, %95, %cst_49 {dimension_numbers = #tpu.dot_dimension_numbers<[1], [0], [0], [1], [0, 0, 1, 1], [], []>} : vector<16x16xbf16>, vector<16x256xbf16>, vector<16x256xf32> -> vector<16x256xf32>
    %cst_50 = arith.constant 0.00999999977 : f32
    %97 = vector.broadcast %cst_50 : f32 to vector<16x256xf32>
    %98 = arith.mulf %97, %96 : vector<16x256xf32>
    %99 = arith.maximumf %96, %98 : vector<16x256xf32>
    %100 = arith.truncf %99 : vector<16x256xf32> to vector<16x256xbf16>
    %cst_51 = arith.constant dense<0.000000e+00> : vector<16x256xf32>
    %101 = tpu.matmul %14, %100, %cst_51 {dimension_numbers = #tpu.dot_dimension_numbers<[1], [0], [0], [1], [0, 0, 1, 1], [], []>} : vector<16x16xbf16>, vector<16x256xbf16>, vector<16x256xf32> -> vector<16x256xf32>
    %102 = vector.extract_strided_slice %101 {offsets = [0, 0], sizes = [1, 256], strides = [1, 1]} : vector<16x256xf32> to vector<1x256xf32>
    %103 = math.tanh %102 : vector<1x256xf32>
    %c1_52 = arith.constant 1 : index
    %c0_53 = arith.constant 0 : index
    %c0_54 = arith.constant 0 : index
    %104 = vector.load %arg5[%c1_52, %c0_53, %c0_54] : memref<8x1x256xf32, #tpu.memory_space<vmem>>, vector<1x1x256xf32>
    %105 = vector.shape_cast %104 : vector<1x1x256xf32> to vector<1x256xf32>
    %106 = vector.shape_cast %103 : vector<1x256xf32> to vector<1x1x256xf32>
    tpu.vector_store %arg5[%c1_52, %c0_53, %c0_54], %106 {strides = array<i32>} : memref<8x1x256xf32, #tpu.memory_space<vmem>>, vector<1x1x256xf32>,
    %c2_55 = arith.constant 2 : index
    %c0_56 = arith.constant 0 : index
    %c0_57 = arith.constant 0 : index
    %107 = vector.load %arg3[%c2_55, %c0_56, %c0_57] : memref<8x16x1xbf16, #tpu.memory_space<vmem>>, vector<1x16x1xbf16>
    %108 = vector.shape_cast %107 : vector<1x16x1xbf16> to vector<16x1xbf16>
    %109 = arith.extf %0 : vector<16x256xbf16> to vector<16x256xf32>
    %110 = arith.extf %108 : vector<16x1xbf16> to vector<16x1xf32>
    %111 = vector.broadcast %110 : vector<16x1xf32> to vector<16x256xf32>
    %112 = arith.addf %109, %111 : vector<16x256xf32>
    %cst_58 = arith.constant 0.00999999977 : f32
    %113 = vector.broadcast %cst_58 : f32 to vector<16x256xf32>
    %114 = arith.mulf %113, %112 : vector<16x256xf32>
    %115 = arith.maximumf %112, %114 : vector<16x256xf32>
    %116 = arith.truncf %115 : vector<16x256xf32> to vector<16x256xbf16>
    %cst_59 = arith.constant dense<0.000000e+00> : vector<16x256xf32>
    %117 = tpu.matmul %2, %116, %cst_59 {dimension_numbers = #tpu.dot_dimension_numbers<[1], [0], [0], [1], [0, 0, 1, 1], [], []>} : vector<16x16xbf16>, vector<16x256xbf16>, vector<16x256xf32> -> vector<16x256xf32>
    %cst_60 = arith.constant 0.00999999977 : f32
    %118 = vector.broadcast %cst_60 : f32 to vector<16x256xf32>
    %119 = arith.mulf %118, %117 : vector<16x256xf32>
    %120 = arith.maximumf %117, %119 : vector<16x256xf32>
    %121 = arith.truncf %120 : vector<16x256xf32> to vector<16x256xbf16>
    %cst_61 = arith.constant dense<0.000000e+00> : vector<16x256xf32>
    %122 = tpu.matmul %4, %121, %cst_61 {dimension_numbers = #tpu.dot_dimension_numbers<[1], [0], [0], [1], [0, 0, 1, 1], [], []>} : vector<16x16xbf16>, vector<16x256xbf16>, vector<16x256xf32> -> vector<16x256xf32>
    %cst_62 = arith.constant 0.00999999977 : f32
    %123 = vector.broadcast %cst_62 : f32 to vector<16x256xf32>
    %124 = arith.mulf %123, %122 : vector<16x256xf32>
    %125 = arith.maximumf %122, %124 : vector<16x256xf32>
    %126 = arith.truncf %125 : vector<16x256xf32> to vector<16x256xbf16>
    %cst_63 = arith.constant dense<0.000000e+00> : vector<16x256xf32>
    %127 = tpu.matmul %6, %126, %cst_63 {dimension_numbers = #tpu.dot_dimension_numbers<[1], [0], [0], [1], [0, 0, 1, 1], [], []>} : vector<16x16xbf16>, vector<16x256xbf16>, vector<16x256xf32> -> vector<16x256xf32>
    %cst_64 = arith.constant 0.00999999977 : f32
    %128 = vector.broadcast %cst_64 : f32 to vector<16x256xf32>
    %129 = arith.mulf %128, %127 : vector<16x256xf32>
    %130 = arith.maximumf %127, %129 : vector<16x256xf32>
    %131 = arith.truncf %130 : vector<16x256xf32> to vector<16x256xbf16>
    %cst_65 = arith.constant dense<0.000000e+00> : vector<16x256xf32>
    %132 = tpu.matmul %8, %131, %cst_65 {dimension_numbers = #tpu.dot_dimension_numbers<[1], [0], [0], [1], [0, 0, 1, 1], [], []>} : vector<16x16xbf16>, vector<16x256xbf16>, vector<16x256xf32> -> vector<16x256xf32>
    %cst_66 = arith.constant 0.00999999977 : f32
    %133 = vector.broadcast %cst_66 : f32 to vector<16x256xf32>
    %134 = arith.mulf %133, %132 : vector<16x256xf32>
    %135 = arith.maximumf %132, %134 : vector<16x256xf32>
    %136 = arith.truncf %135 : vector<16x256xf32> to vector<16x256xbf16>
    %cst_67 = arith.constant dense<0.000000e+00> : vector<16x256xf32>
    %137 = tpu.matmul %10, %136, %cst_67 {dimension_numbers = #tpu.dot_dimension_numbers<[1], [0], [0], [1], [0, 0, 1, 1], [], []>} : vector<16x16xbf16>, vector<16x256xbf16>, vector<16x256xf32> -> vector<16x256xf32>
    %cst_68 = arith.constant 0.00999999977 : f32
    %138 = vector.broadcast %cst_68 : f32 to vector<16x256xf32>
    %139 = arith.mulf %138, %137 : vector<16x256xf32>
    %140 = arith.maximumf %137, %139 : vector<16x256xf32>
    %141 = arith.truncf %140 : vector<16x256xf32> to vector<16x256xbf16>
    %cst_69 = arith.constant dense<0.000000e+00> : vector<16x256xf32>
    %142 = tpu.matmul %12, %141, %cst_69 {dimension_numbers = #tpu.dot_dimension_numbers<[1], [0], [0], [1], [0, 0, 1, 1], [], []>} : vector<16x16xbf16>, vector<16x256xbf16>, vector<16x256xf32> -> vector<16x256xf32>
    %cst_70 = arith.constant 0.00999999977 : f32
    %143 = vector.broadcast %cst_70 : f32 to vector<16x256xf32>
    %144 = arith.mulf %143, %142 : vector<16x256xf32>
    %145 = arith.maximumf %142, %144 : vector<16x256xf32>
    %146 = arith.truncf %145 : vector<16x256xf32> to vector<16x256xbf16>
    %cst_71 = arith.constant dense<0.000000e+00> : vector<16x256xf32>
    %147 = tpu.matmul %14, %146, %cst_71 {dimension_numbers = #tpu.dot_dimension_numbers<[1], [0], [0], [1], [0, 0, 1, 1], [], []>} : vector<16x16xbf16>, vector<16x256xbf16>, vector<16x256xf32> -> vector<16x256xf32>
    %148 = vector.extract_strided_slice %147 {offsets = [0, 0], sizes = [1, 256], strides = [1, 1]} : vector<16x256xf32> to vector<1x256xf32>
    %149 = math.tanh %148 : vector<1x256xf32>
    %c2_72 = arith.constant 2 : index
    %c0_73 = arith.constant 0 : index
    %c0_74 = arith.constant 0 : index
    %150 = vector.load %arg5[%c2_72, %c0_73, %c0_74] : memref<8x1x256xf32, #tpu.memory_space<vmem>>, vector<1x1x256xf32>
    %151 = vector.shape_cast %150 : vector<1x1x256xf32> to vector<1x256xf32>
    %152 = vector.shape_cast %149 : vector<1x256xf32> to vector<1x1x256xf32>
    tpu.vector_store %arg5[%c2_72, %c0_73, %c0_74], %152 {strides = array<i32>} : memref<8x1x256xf32, #tpu.memory_space<vmem>>, vector<1x1x256xf32>,
    %c3_75 = arith.constant 3 : index
    %c0_76 = arith.constant 0 : index
    %c0_77 = arith.constant 0 : index
    %153 = vector.load %arg3[%c3_75, %c0_76, %c0_77] : memref<8x16x1xbf16, #tpu.memory_space<vmem>>, vector<1x16x1xbf16>
    %154 = vector.shape_cast %153 : vector<1x16x1xbf16> to vector<16x1xbf16>
    %155 = arith.extf %0 : vector<16x256xbf16> to vector<16x256xf32>
    %156 = arith.extf %154 : vector<16x1xbf16> to vector<16x1xf32>
    %157 = vector.broadcast %156 : vector<16x1xf32> to vector<16x256xf32>
    %158 = arith.addf %155, %157 : vector<16x256xf32>
    %cst_78 = arith.constant 0.00999999977 : f32
    %159 = vector.broadcast %cst_78 : f32 to vector<16x256xf32>
    %160 = arith.mulf %159, %158 : vector<16x256xf32>
    %161 = arith.maximumf %158, %160 : vector<16x256xf32>
    %162 = arith.truncf %161 : vector<16x256xf32> to vector<16x256xbf16>
    %cst_79 = arith.constant dense<0.000000e+00> : vector<16x256xf32>
    %163 = tpu.matmul %2, %162, %cst_79 {dimension_numbers = #tpu.dot_dimension_numbers<[1], [0], [0], [1], [0, 0, 1, 1], [], []>} : vector<16x16xbf16>, vector<16x256xbf16>, vector<16x256xf32> -> vector<16x256xf32>
    %cst_80 = arith.constant 0.00999999977 : f32
    %164 = vector.broadcast %cst_80 : f32 to vector<16x256xf32>
    %165 = arith.mulf %164, %163 : vector<16x256xf32>
    %166 = arith.maximumf %163, %165 : vector<16x256xf32>
    %167 = arith.truncf %166 : vector<16x256xf32> to vector<16x256xbf16>
    %cst_81 = arith.constant dense<0.000000e+00> : vector<16x256xf32>
    %168 = tpu.matmul %4, %167, %cst_81 {dimension_numbers = #tpu.dot_dimension_numbers<[1], [0], [0], [1], [0, 0, 1, 1], [], []>} : vector<16x16xbf16>, vector<16x256xbf16>, vector<16x256xf32> -> vector<16x256xf32>
    %cst_82 = arith.constant 0.00999999977 : f32
    %169 = vector.broadcast %cst_82 : f32 to vector<16x256xf32>
    %170 = arith.mulf %169, %168 : vector<16x256xf32>
    %171 = arith.maximumf %168, %170 : vector<16x256xf32>
    %172 = arith.truncf %171 : vector<16x256xf32> to vector<16x256xbf16>
    %cst_83 = arith.constant dense<0.000000e+00> : vector<16x256xf32>
    %173 = tpu.matmul %6, %172, %cst_83 {dimension_numbers = #tpu.dot_dimension_numbers<[1], [0], [0], [1], [0, 0, 1, 1], [], []>} : vector<16x16xbf16>, vector<16x256xbf16>, vector<16x256xf32> -> vector<16x256xf32>
    %cst_84 = arith.constant 0.00999999977 : f32
    %174 = vector.broadcast %cst_84 : f32 to vector<16x256xf32>
    %175 = arith.mulf %174, %173 : vector<16x256xf32>
    %176 = arith.maximumf %173, %175 : vector<16x256xf32>
    %177 = arith.truncf %176 : vector<16x256xf32> to vector<16x256xbf16>
    %cst_85 = arith.constant dense<0.000000e+00> : vector<16x256xf32>
    %178 = tpu.matmul %8, %177, %cst_85 {dimension_numbers = #tpu.dot_dimension_numbers<[1], [0], [0], [1], [0, 0, 1, 1], [], []>} : vector<16x16xbf16>, vector<16x256xbf16>, vector<16x256xf32> -> vector<16x256xf32>
    %cst_86 = arith.constant 0.00999999977 : f32
    %179 = vector.broadcast %cst_86 : f32 to vector<16x256xf32>
    %180 = arith.mulf %179, %178 : vector<16x256xf32>
    %181 = arith.maximumf %178, %180 : vector<16x256xf32>
    %182 = arith.truncf %181 : vector<16x256xf32> to vector<16x256xbf16>
    %cst_87 = arith.constant dense<0.000000e+00> : vector<16x256xf32>
    %183 = tpu.matmul %10, %182, %cst_87 {dimension_numbers = #tpu.dot_dimension_numbers<[1], [0], [0], [1], [0, 0, 1, 1], [], []>} : vector<16x16xbf16>, vector<16x256xbf16>, vector<16x256xf32> -> vector<16x256xf32>
    %cst_88 = arith.constant 0.00999999977 : f32
    %184 = vector.broadcast %cst_88 : f32 to vector<16x256xf32>
    %185 = arith.mulf %184, %183 : vector<16x256xf32>
    %186 = arith.maximumf %183, %185 : vector<16x256xf32>
    %187 = arith.truncf %186 : vector<16x256xf32> to vector<16x256xbf16>
    %cst_89 = arith.constant dense<0.000000e+00> : vector<16x256xf32>
    %188 = tpu.matmul %12, %187, %cst_89 {dimension_numbers = #tpu.dot_dimension_numbers<[1], [0], [0], [1], [0, 0, 1, 1], [], []>} : vector<16x16xbf16>, vector<16x256xbf16>, vector<16x256xf32> -> vector<16x256xf32>
    %cst_90 = arith.constant 0.00999999977 : f32
    %189 = vector.broadcast %cst_90 : f32 to vector<16x256xf32>
    %190 = arith.mulf %189, %188 : vector<16x256xf32>
    %191 = arith.maximumf %188, %190 : vector<16x256xf32>
    %192 = arith.truncf %191 : vector<16x256xf32> to vector<16x256xbf16>
    %cst_91 = arith.constant dense<0.000000e+00> : vector<16x256xf32>
    %193 = tpu.matmul %14, %192, %cst_91 {dimension_numbers = #tpu.dot_dimension_numbers<[1], [0], [0], [1], [0, 0, 1, 1], [], []>} : vector<16x16xbf16>, vector<16x256xbf16>, vector<16x256xf32> -> vector<16x256xf32>
    %194 = vector.extract_strided_slice %193 {offsets = [0, 0], sizes = [1, 256], strides = [1, 1]} : vector<16x256xf32> to vector<1x256xf32>
    %195 = math.tanh %194 : vector<1x256xf32>
    %c3_92 = arith.constant 3 : index
    %c0_93 = arith.constant 0 : index
    %c0_94 = arith.constant 0 : index
    %196 = vector.load %arg5[%c3_92, %c0_93, %c0_94] : memref<8x1x256xf32, #tpu.memory_space<vmem>>, vector<1x1x256xf32>
    %197 = vector.shape_cast %196 : vector<1x1x256xf32> to vector<1x256xf32>
    %198 = vector.shape_cast %195 : vector<1x256xf32> to vector<1x1x256xf32>
    tpu.vector_store %arg5[%c3_92, %c0_93, %c0_94], %198 {strides = array<i32>} : memref<8x1x256xf32, #tpu.memory_space<vmem>>, vector<1x1x256xf32>,
    %c4_95 = arith.constant 4 : index
    %c0_96 = arith.constant 0 : index
    %c0_97 = arith.constant 0 : index
    %199 = vector.load %arg3[%c4_95, %c0_96, %c0_97] : memref<8x16x1xbf16, #tpu.memory_space<vmem>>, vector<1x16x1xbf16>
    %200 = vector.shape_cast %199 : vector<1x16x1xbf16> to vector<16x1xbf16>
    %201 = arith.extf %0 : vector<16x256xbf16> to vector<16x256xf32>
    %202 = arith.extf %200 : vector<16x1xbf16> to vector<16x1xf32>
    %203 = vector.broadcast %202 : vector<16x1xf32> to vector<16x256xf32>
    %204 = arith.addf %201, %203 : vector<16x256xf32>
    %cst_98 = arith.constant 0.00999999977 : f32
    %205 = vector.broadcast %cst_98 : f32 to vector<16x256xf32>
    %206 = arith.mulf %205, %204 : vector<16x256xf32>
    %207 = arith.maximumf %204, %206 : vector<16x256xf32>
    %208 = arith.truncf %207 : vector<16x256xf32> to vector<16x256xbf16>
    %cst_99 = arith.constant dense<0.000000e+00> : vector<16x256xf32>
    %209 = tpu.matmul %2, %208, %cst_99 {dimension_numbers = #tpu.dot_dimension_numbers<[1], [0], [0], [1], [0, 0, 1, 1], [], []>} : vector<16x16xbf16>, vector<16x256xbf16>, vector<16x256xf32> -> vector<16x256xf32>
    %cst_100 = arith.constant 0.00999999977 : f32
    %210 = vector.broadcast %cst_100 : f32 to vector<16x256xf32>
    %211 = arith.mulf %210, %209 : vector<16x256xf32>
    %212 = arith.maximumf %209, %211 : vector<16x256xf32>
    %213 = arith.truncf %212 : vector<16x256xf32> to vector<16x256xbf16>
    %cst_101 = arith.constant dense<0.000000e+00> : vector<16x256xf32>
    %214 = tpu.matmul %4, %213, %cst_101 {dimension_numbers = #tpu.dot_dimension_numbers<[1], [0], [0], [1], [0, 0, 1, 1], [], []>} : vector<16x16xbf16>, vector<16x256xbf16>, vector<16x256xf32> -> vector<16x256xf32>
    %cst_102 = arith.constant 0.00999999977 : f32
    %215 = vector.broadcast %cst_102 : f32 to vector<16x256xf32>
    %216 = arith.mulf %215, %214 : vector<16x256xf32>
    %217 = arith.maximumf %214, %216 : vector<16x256xf32>
    %218 = arith.truncf %217 : vector<16x256xf32> to vector<16x256xbf16>
    %cst_103 = arith.constant dense<0.000000e+00> : vector<16x256xf32>
    %219 = tpu.matmul %6, %218, %cst_103 {dimension_numbers = #tpu.dot_dimension_numbers<[1], [0], [0], [1], [0, 0, 1, 1], [], []>} : vector<16x16xbf16>, vector<16x256xbf16>, vector<16x256xf32> -> vector<16x256xf32>
    %cst_104 = arith.constant 0.00999999977 : f32
    %220 = vector.broadcast %cst_104 : f32 to vector<16x256xf32>
    %221 = arith.mulf %220, %219 : vector<16x256xf32>
    %222 = arith.maximumf %219, %221 : vector<16x256xf32>
    %223 = arith.truncf %222 : vector<16x256xf32> to vector<16x256xbf16>
    %cst_105 = arith.constant dense<0.000000e+00> : vector<16x256xf32>
    %224 = tpu.matmul %8, %223, %cst_105 {dimension_numbers = #tpu.dot_dimension_numbers<[1], [0], [0], [1], [0, 0, 1, 1], [], []>} : vector<16x16xbf16>, vector<16x256xbf16>, vector<16x256xf32> -> vector<16x256xf32>
    %cst_106 = arith.constant 0.00999999977 : f32
    %225 = vector.broadcast %cst_106 : f32 to vector<16x256xf32>
    %226 = arith.mulf %225, %224 : vector<16x256xf32>
    %227 = arith.maximumf %224, %226 : vector<16x256xf32>
    %228 = arith.truncf %227 : vector<16x256xf32> to vector<16x256xbf16>
    %cst_107 = arith.constant dense<0.000000e+00> : vector<16x256xf32>
    %229 = tpu.matmul %10, %228, %cst_107 {dimension_numbers = #tpu.dot_dimension_numbers<[1], [0], [0], [1], [0, 0, 1, 1], [], []>} : vector<16x16xbf16>, vector<16x256xbf16>, vector<16x256xf32> -> vector<16x256xf32>
    %cst_108 = arith.constant 0.00999999977 : f32
    %230 = vector.broadcast %cst_108 : f32 to vector<16x256xf32>
    %231 = arith.mulf %230, %229 : vector<16x256xf32>
    %232 = arith.maximumf %229, %231 : vector<16x256xf32>
    %233 = arith.truncf %232 : vector<16x256xf32> to vector<16x256xbf16>
    %cst_109 = arith.constant dense<0.000000e+00> : vector<16x256xf32>
    %234 = tpu.matmul %12, %233, %cst_109 {dimension_numbers = #tpu.dot_dimension_numbers<[1], [0], [0], [1], [0, 0, 1, 1], [], []>} : vector<16x16xbf16>, vector<16x256xbf16>, vector<16x256xf32> -> vector<16x256xf32>
    %cst_110 = arith.constant 0.00999999977 : f32
    %235 = vector.broadcast %cst_110 : f32 to vector<16x256xf32>
    %236 = arith.mulf %235, %234 : vector<16x256xf32>
    %237 = arith.maximumf %234, %236 : vector<16x256xf32>
    %238 = arith.truncf %237 : vector<16x256xf32> to vector<16x256xbf16>
    %cst_111 = arith.constant dense<0.000000e+00> : vector<16x256xf32>
    %239 = tpu.matmul %14, %238, %cst_111 {dimension_numbers = #tpu.dot_dimension_numbers<[1], [0], [0], [1], [0, 0, 1, 1], [], []>} : vector<16x16xbf16>, vector<16x256xbf16>, vector<16x256xf32> -> vector<16x256xf32>
    %240 = vector.extract_strided_slice %239 {offsets = [0, 0], sizes = [1, 256], strides = [1, 1]} : vector<16x256xf32> to vector<1x256xf32>
    %241 = math.tanh %240 : vector<1x256xf32>
    %c4_112 = arith.constant 4 : index
    %c0_113 = arith.constant 0 : index
    %c0_114 = arith.constant 0 : index
    %242 = vector.load %arg5[%c4_112, %c0_113, %c0_114] : memref<8x1x256xf32, #tpu.memory_space<vmem>>, vector<1x1x256xf32>
    %243 = vector.shape_cast %242 : vector<1x1x256xf32> to vector<1x256xf32>
    %244 = vector.shape_cast %241 : vector<1x256xf32> to vector<1x1x256xf32>
    tpu.vector_store %arg5[%c4_112, %c0_113, %c0_114], %244 {strides = array<i32>} : memref<8x1x256xf32, #tpu.memory_space<vmem>>, vector<1x1x256xf32>,
    %c5_115 = arith.constant 5 : index
    %c0_116 = arith.constant 0 : index
    %c0_117 = arith.constant 0 : index
    %245 = vector.load %arg3[%c5_115, %c0_116, %c0_117] : memref<8x16x1xbf16, #tpu.memory_space<vmem>>, vector<1x16x1xbf16>
    %246 = vector.shape_cast %245 : vector<1x16x1xbf16> to vector<16x1xbf16>
    %247 = arith.extf %0 : vector<16x256xbf16> to vector<16x256xf32>
    %248 = arith.extf %246 : vector<16x1xbf16> to vector<16x1xf32>
    %249 = vector.broadcast %248 : vector<16x1xf32> to vector<16x256xf32>
    %250 = arith.addf %247, %249 : vector<16x256xf32>
    %cst_118 = arith.constant 0.00999999977 : f32
    %251 = vector.broadcast %cst_118 : f32 to vector<16x256xf32>
    %252 = arith.mulf %251, %250 : vector<16x256xf32>
    %253 = arith.maximumf %250, %252 : vector<16x256xf32>
    %254 = arith.truncf %253 : vector<16x256xf32> to vector<16x256xbf16>
    %cst_119 = arith.constant dense<0.000000e+00> : vector<16x256xf32>
    %255 = tpu.matmul %2, %254, %cst_119 {dimension_numbers = #tpu.dot_dimension_numbers<[1], [0], [0], [1], [0, 0, 1, 1], [], []>} : vector<16x16xbf16>, vector<16x256xbf16>, vector<16x256xf32> -> vector<16x256xf32>
    %cst_120 = arith.constant 0.00999999977 : f32
    %256 = vector.broadcast %cst_120 : f32 to vector<16x256xf32>
    %257 = arith.mulf %256, %255 : vector<16x256xf32>
    %258 = arith.maximumf %255, %257 : vector<16x256xf32>
    %259 = arith.truncf %258 : vector<16x256xf32> to vector<16x256xbf16>
    %cst_121 = arith.constant dense<0.000000e+00> : vector<16x256xf32>
    %260 = tpu.matmul %4, %259, %cst_121 {dimension_numbers = #tpu.dot_dimension_numbers<[1], [0], [0], [1], [0, 0, 1, 1], [], []>} : vector<16x16xbf16>, vector<16x256xbf16>, vector<16x256xf32> -> vector<16x256xf32>
    %cst_122 = arith.constant 0.00999999977 : f32
    %261 = vector.broadcast %cst_122 : f32 to vector<16x256xf32>
    %262 = arith.mulf %261, %260 : vector<16x256xf32>
    %263 = arith.maximumf %260, %262 : vector<16x256xf32>
    %264 = arith.truncf %263 : vector<16x256xf32> to vector<16x256xbf16>
    %cst_123 = arith.constant dense<0.000000e+00> : vector<16x256xf32>
    %265 = tpu.matmul %6, %264, %cst_123 {dimension_numbers = #tpu.dot_dimension_numbers<[1], [0], [0], [1], [0, 0, 1, 1], [], []>} : vector<16x16xbf16>, vector<16x256xbf16>, vector<16x256xf32> -> vector<16x256xf32>
    %cst_124 = arith.constant 0.00999999977 : f32
    %266 = vector.broadcast %cst_124 : f32 to vector<16x256xf32>
    %267 = arith.mulf %266, %265 : vector<16x256xf32>
    %268 = arith.maximumf %265, %267 : vector<16x256xf32>
    %269 = arith.truncf %268 : vector<16x256xf32> to vector<16x256xbf16>
    %cst_125 = arith.constant dense<0.000000e+00> : vector<16x256xf32>
    %270 = tpu.matmul %8, %269, %cst_125 {dimension_numbers = #tpu.dot_dimension_numbers<[1], [0], [0], [1], [0, 0, 1, 1], [], []>} : vector<16x16xbf16>, vector<16x256xbf16>, vector<16x256xf32> -> vector<16x256xf32>
    %cst_126 = arith.constant 0.00999999977 : f32
    %271 = vector.broadcast %cst_126 : f32 to vector<16x256xf32>
    %272 = arith.mulf %271, %270 : vector<16x256xf32>
    %273 = arith.maximumf %270, %272 : vector<16x256xf32>
    %274 = arith.truncf %273 : vector<16x256xf32> to vector<16x256xbf16>
    %cst_127 = arith.constant dense<0.000000e+00> : vector<16x256xf32>
    %275 = tpu.matmul %10, %274, %cst_127 {dimension_numbers = #tpu.dot_dimension_numbers<[1], [0], [0], [1], [0, 0, 1, 1], [], []>} : vector<16x16xbf16>, vector<16x256xbf16>, vector<16x256xf32> -> vector<16x256xf32>
    %cst_128 = arith.constant 0.00999999977 : f32
    %276 = vector.broadcast %cst_128 : f32 to vector<16x256xf32>
    %277 = arith.mulf %276, %275 : vector<16x256xf32>
    %278 = arith.maximumf %275, %277 : vector<16x256xf32>
    %279 = arith.truncf %278 : vector<16x256xf32> to vector<16x256xbf16>
    %cst_129 = arith.constant dense<0.000000e+00> : vector<16x256xf32>
    %280 = tpu.matmul %12, %279, %cst_129 {dimension_numbers = #tpu.dot_dimension_numbers<[1], [0], [0], [1], [0, 0, 1, 1], [], []>} : vector<16x16xbf16>, vector<16x256xbf16>, vector<16x256xf32> -> vector<16x256xf32>
    %cst_130 = arith.constant 0.00999999977 : f32
    %281 = vector.broadcast %cst_130 : f32 to vector<16x256xf32>
    %282 = arith.mulf %281, %280 : vector<16x256xf32>
    %283 = arith.maximumf %280, %282 : vector<16x256xf32>
    %284 = arith.truncf %283 : vector<16x256xf32> to vector<16x256xbf16>
    %cst_131 = arith.constant dense<0.000000e+00> : vector<16x256xf32>
    %285 = tpu.matmul %14, %284, %cst_131 {dimension_numbers = #tpu.dot_dimension_numbers<[1], [0], [0], [1], [0, 0, 1, 1], [], []>} : vector<16x16xbf16>, vector<16x256xbf16>, vector<16x256xf32> -> vector<16x256xf32>
    %286 = vector.extract_strided_slice %285 {offsets = [0, 0], sizes = [1, 256], strides = [1, 1]} : vector<16x256xf32> to vector<1x256xf32>
    %287 = math.tanh %286 : vector<1x256xf32>
    %c5_132 = arith.constant 5 : index
    %c0_133 = arith.constant 0 : index
    %c0_134 = arith.constant 0 : index
    %288 = vector.load %arg5[%c5_132, %c0_133, %c0_134] : memref<8x1x256xf32, #tpu.memory_space<vmem>>, vector<1x1x256xf32>
    %289 = vector.shape_cast %288 : vector<1x1x256xf32> to vector<1x256xf32>
    %290 = vector.shape_cast %287 : vector<1x256xf32> to vector<1x1x256xf32>
    tpu.vector_store %arg5[%c5_132, %c0_133, %c0_134], %290 {strides = array<i32>} : memref<8x1x256xf32, #tpu.memory_space<vmem>>, vector<1x1x256xf32>,
    %c6_135 = arith.constant 6 : index
    %c0_136 = arith.constant 0 : index
    %c0_137 = arith.constant 0 : index
    %291 = vector.load %arg3[%c6_135, %c0_136, %c0_137] : memref<8x16x1xbf16, #tpu.memory_space<vmem>>, vector<1x16x1xbf16>
    %292 = vector.shape_cast %291 : vector<1x16x1xbf16> to vector<16x1xbf16>
    %293 = arith.extf %0 : vector<16x256xbf16> to vector<16x256xf32>
    %294 = arith.extf %292 : vector<16x1xbf16> to vector<16x1xf32>
    %295 = vector.broadcast %294 : vector<16x1xf32> to vector<16x256xf32>
    %296 = arith.addf %293, %295 : vector<16x256xf32>
    %cst_138 = arith.constant 0.00999999977 : f32
    %297 = vector.broadcast %cst_138 : f32 to vector<16x256xf32>
    %298 = arith.mulf %297, %296 : vector<16x256xf32>
    %299 = arith.maximumf %296, %298 : vector<16x256xf32>
    %300 = arith.truncf %299 : vector<16x256xf32> to vector<16x256xbf16>
    %cst_139 = arith.constant dense<0.000000e+00> : vector<16x256xf32>
    %301 = tpu.matmul %2, %300, %cst_139 {dimension_numbers = #tpu.dot_dimension_numbers<[1], [0], [0], [1], [0, 0, 1, 1], [], []>} : vector<16x16xbf16>, vector<16x256xbf16>, vector<16x256xf32> -> vector<16x256xf32>
    %cst_140 = arith.constant 0.00999999977 : f32
    %302 = vector.broadcast %cst_140 : f32 to vector<16x256xf32>
    %303 = arith.mulf %302, %301 : vector<16x256xf32>
    %304 = arith.maximumf %301, %303 : vector<16x256xf32>
    %305 = arith.truncf %304 : vector<16x256xf32> to vector<16x256xbf16>
    %cst_141 = arith.constant dense<0.000000e+00> : vector<16x256xf32>
    %306 = tpu.matmul %4, %305, %cst_141 {dimension_numbers = #tpu.dot_dimension_numbers<[1], [0], [0], [1], [0, 0, 1, 1], [], []>} : vector<16x16xbf16>, vector<16x256xbf16>, vector<16x256xf32> -> vector<16x256xf32>
    %cst_142 = arith.constant 0.00999999977 : f32
    %307 = vector.broadcast %cst_142 : f32 to vector<16x256xf32>
    %308 = arith.mulf %307, %306 : vector<16x256xf32>
    %309 = arith.maximumf %306, %308 : vector<16x256xf32>
    %310 = arith.truncf %309 : vector<16x256xf32> to vector<16x256xbf16>
    %cst_143 = arith.constant dense<0.000000e+00> : vector<16x256xf32>
    %311 = tpu.matmul %6, %310, %cst_143 {dimension_numbers = #tpu.dot_dimension_numbers<[1], [0], [0], [1], [0, 0, 1, 1], [], []>} : vector<16x16xbf16>, vector<16x256xbf16>, vector<16x256xf32> -> vector<16x256xf32>
    %cst_144 = arith.constant 0.00999999977 : f32
    %312 = vector.broadcast %cst_144 : f32 to vector<16x256xf32>
    %313 = arith.mulf %312, %311 : vector<16x256xf32>
    %314 = arith.maximumf %311, %313 : vector<16x256xf32>
    %315 = arith.truncf %314 : vector<16x256xf32> to vector<16x256xbf16>
    %cst_145 = arith.constant dense<0.000000e+00> : vector<16x256xf32>
    %316 = tpu.matmul %8, %315, %cst_145 {dimension_numbers = #tpu.dot_dimension_numbers<[1], [0], [0], [1], [0, 0, 1, 1], [], []>} : vector<16x16xbf16>, vector<16x256xbf16>, vector<16x256xf32> -> vector<16x256xf32>
    %cst_146 = arith.constant 0.00999999977 : f32
    %317 = vector.broadcast %cst_146 : f32 to vector<16x256xf32>
    %318 = arith.mulf %317, %316 : vector<16x256xf32>
    %319 = arith.maximumf %316, %318 : vector<16x256xf32>
    %320 = arith.truncf %319 : vector<16x256xf32> to vector<16x256xbf16>
    %cst_147 = arith.constant dense<0.000000e+00> : vector<16x256xf32>
    %321 = tpu.matmul %10, %320, %cst_147 {dimension_numbers = #tpu.dot_dimension_numbers<[1], [0], [0], [1], [0, 0, 1, 1], [], []>} : vector<16x16xbf16>, vector<16x256xbf16>, vector<16x256xf32> -> vector<16x256xf32>
    %cst_148 = arith.constant 0.00999999977 : f32
    %322 = vector.broadcast %cst_148 : f32 to vector<16x256xf32>
    %323 = arith.mulf %322, %321 : vector<16x256xf32>
    %324 = arith.maximumf %321, %323 : vector<16x256xf32>
    %325 = arith.truncf %324 : vector<16x256xf32> to vector<16x256xbf16>
    %cst_149 = arith.constant dense<0.000000e+00> : vector<16x256xf32>
    %326 = tpu.matmul %12, %325, %cst_149 {dimension_numbers = #tpu.dot_dimension_numbers<[1], [0], [0], [1], [0, 0, 1, 1], [], []>} : vector<16x16xbf16>, vector<16x256xbf16>, vector<16x256xf32> -> vector<16x256xf32>
    %cst_150 = arith.constant 0.00999999977 : f32
    %327 = vector.broadcast %cst_150 : f32 to vector<16x256xf32>
    %328 = arith.mulf %327, %326 : vector<16x256xf32>
    %329 = arith.maximumf %326, %328 : vector<16x256xf32>
    %330 = arith.truncf %329 : vector<16x256xf32> to vector<16x256xbf16>
    %cst_151 = arith.constant dense<0.000000e+00> : vector<16x256xf32>
    %331 = tpu.matmul %14, %330, %cst_151 {dimension_numbers = #tpu.dot_dimension_numbers<[1], [0], [0], [1], [0, 0, 1, 1], [], []>} : vector<16x16xbf16>, vector<16x256xbf16>, vector<16x256xf32> -> vector<16x256xf32>
    %332 = vector.extract_strided_slice %331 {offsets = [0, 0], sizes = [1, 256], strides = [1, 1]} : vector<16x256xf32> to vector<1x256xf32>
    %333 = math.tanh %332 : vector<1x256xf32>
    %c6_152 = arith.constant 6 : index
    %c0_153 = arith.constant 0 : index
    %c0_154 = arith.constant 0 : index
    %334 = vector.load %arg5[%c6_152, %c0_153, %c0_154] : memref<8x1x256xf32, #tpu.memory_space<vmem>>, vector<1x1x256xf32>
    %335 = vector.shape_cast %334 : vector<1x1x256xf32> to vector<1x256xf32>
    %336 = vector.shape_cast %333 : vector<1x256xf32> to vector<1x1x256xf32>
    tpu.vector_store %arg5[%c6_152, %c0_153, %c0_154], %336 {strides = array<i32>} : memref<8x1x256xf32, #tpu.memory_space<vmem>>, vector<1x1x256xf32>,
    %c7 = arith.constant 7 : index
    %c0_155 = arith.constant 0 : index
    %c0_156 = arith.constant 0 : index
    %337 = vector.load %arg3[%c7, %c0_155, %c0_156] : memref<8x16x1xbf16, #tpu.memory_space<vmem>>, vector<1x16x1xbf16>
    %338 = vector.shape_cast %337 : vector<1x16x1xbf16> to vector<16x1xbf16>
    %339 = arith.extf %0 : vector<16x256xbf16> to vector<16x256xf32>
    %340 = arith.extf %338 : vector<16x1xbf16> to vector<16x1xf32>
    %341 = vector.broadcast %340 : vector<16x1xf32> to vector<16x256xf32>
    %342 = arith.addf %339, %341 : vector<16x256xf32>
    %cst_157 = arith.constant 0.00999999977 : f32
    %343 = vector.broadcast %cst_157 : f32 to vector<16x256xf32>
    %344 = arith.mulf %343, %342 : vector<16x256xf32>
    %345 = arith.maximumf %342, %344 : vector<16x256xf32>
    %346 = arith.truncf %345 : vector<16x256xf32> to vector<16x256xbf16>
    %cst_158 = arith.constant dense<0.000000e+00> : vector<16x256xf32>
    %347 = tpu.matmul %2, %346, %cst_158 {dimension_numbers = #tpu.dot_dimension_numbers<[1], [0], [0], [1], [0, 0, 1, 1], [], []>} : vector<16x16xbf16>, vector<16x256xbf16>, vector<16x256xf32> -> vector<16x256xf32>
    %cst_159 = arith.constant 0.00999999977 : f32
    %348 = vector.broadcast %cst_159 : f32 to vector<16x256xf32>
    %349 = arith.mulf %348, %347 : vector<16x256xf32>
    %350 = arith.maximumf %347, %349 : vector<16x256xf32>
    %351 = arith.truncf %350 : vector<16x256xf32> to vector<16x256xbf16>
    %cst_160 = arith.constant dense<0.000000e+00> : vector<16x256xf32>
    %352 = tpu.matmul %4, %351, %cst_160 {dimension_numbers = #tpu.dot_dimension_numbers<[1], [0], [0], [1], [0, 0, 1, 1], [], []>} : vector<16x16xbf16>, vector<16x256xbf16>, vector<16x256xf32> -> vector<16x256xf32>
    %cst_161 = arith.constant 0.00999999977 : f32
    %353 = vector.broadcast %cst_161 : f32 to vector<16x256xf32>
    %354 = arith.mulf %353, %352 : vector<16x256xf32>
    %355 = arith.maximumf %352, %354 : vector<16x256xf32>
    %356 = arith.truncf %355 : vector<16x256xf32> to vector<16x256xbf16>
    %cst_162 = arith.constant dense<0.000000e+00> : vector<16x256xf32>
    %357 = tpu.matmul %6, %356, %cst_162 {dimension_numbers = #tpu.dot_dimension_numbers<[1], [0], [0], [1], [0, 0, 1, 1], [], []>} : vector<16x16xbf16>, vector<16x256xbf16>, vector<16x256xf32> -> vector<16x256xf32>
    %cst_163 = arith.constant 0.00999999977 : f32
    %358 = vector.broadcast %cst_163 : f32 to vector<16x256xf32>
    %359 = arith.mulf %358, %357 : vector<16x256xf32>
    %360 = arith.maximumf %357, %359 : vector<16x256xf32>
    %361 = arith.truncf %360 : vector<16x256xf32> to vector<16x256xbf16>
    %cst_164 = arith.constant dense<0.000000e+00> : vector<16x256xf32>
    %362 = tpu.matmul %8, %361, %cst_164 {dimension_numbers = #tpu.dot_dimension_numbers<[1], [0], [0], [1], [0, 0, 1, 1], [], []>} : vector<16x16xbf16>, vector<16x256xbf16>, vector<16x256xf32> -> vector<16x256xf32>
    %cst_165 = arith.constant 0.00999999977 : f32
    %363 = vector.broadcast %cst_165 : f32 to vector<16x256xf32>
    %364 = arith.mulf %363, %362 : vector<16x256xf32>
    %365 = arith.maximumf %362, %364 : vector<16x256xf32>
    %366 = arith.truncf %365 : vector<16x256xf32> to vector<16x256xbf16>
    %cst_166 = arith.constant dense<0.000000e+00> : vector<16x256xf32>
    %367 = tpu.matmul %10, %366, %cst_166 {dimension_numbers = #tpu.dot_dimension_numbers<[1], [0], [0], [1], [0, 0, 1, 1], [], []>} : vector<16x16xbf16>, vector<16x256xbf16>, vector<16x256xf32> -> vector<16x256xf32>
    %cst_167 = arith.constant 0.00999999977 : f32
    %368 = vector.broadcast %cst_167 : f32 to vector<16x256xf32>
    %369 = arith.mulf %368, %367 : vector<16x256xf32>
    %370 = arith.maximumf %367, %369 : vector<16x256xf32>
    %371 = arith.truncf %370 : vector<16x256xf32> to vector<16x256xbf16>
    %cst_168 = arith.constant dense<0.000000e+00> : vector<16x256xf32>
    %372 = tpu.matmul %12, %371, %cst_168 {dimension_numbers = #tpu.dot_dimension_numbers<[1], [0], [0], [1], [0, 0, 1, 1], [], []>} : vector<16x16xbf16>, vector<16x256xbf16>, vector<16x256xf32> -> vector<16x256xf32>
    %cst_169 = arith.constant 0.00999999977 : f32
    %373 = vector.broadcast %cst_169 : f32 to vector<16x256xf32>
    %374 = arith.mulf %373, %372 : vector<16x256xf32>
    %375 = arith.maximumf %372, %374 : vector<16x256xf32>
    %376 = arith.truncf %375 : vector<16x256xf32> to vector<16x256xbf16>
    %cst_170 = arith.constant dense<0.000000e+00> : vector<16x256xf32>
    %377 = tpu.matmul %14, %376, %cst_170 {dimension_numbers = #tpu.dot_dimension_numbers<[1], [0], [0], [1], [0, 0, 1, 1], [], []>} : vector<16x16xbf16>, vector<16x256xbf16>, vector<16x256xf32> -> vector<16x256xf32>
    %378 = vector.extract_strided_slice %377 {offsets = [0, 0], sizes = [1, 256], strides = [1, 1]} : vector<16x256xf32> to vector<1x256xf32>
    %379 = math.tanh %378 : vector<1x256xf32>
    %c7_171 = arith.constant 7 : index
    %c0_172 = arith.constant 0 : index
    %c0_173 = arith.constant 0 : index
    %380 = vector.load %arg5[%c7_171, %c0_172, %c0_173] : memref<8x1x256xf32, #tpu.memory_space<vmem>>, vector<1x1x256xf32>
    %381 = vector.shape_cast %380 : vector<1x1x256xf32> to vector<1x256xf32>
    %382 = vector.shape_cast %379 : vector<1x256xf32> to vector<1x1x256xf32>
    tpu.vector_store %arg5[%c7_171, %c0_172, %c0_173], %382 {strides = array<i32>} : memref<8x1x256xf32, #tpu.memory_space<vmem>>, vector<1x1x256xf32>,
    return
  }
  func.func @transform_0(%arg0: i32, %arg1: i32) -> (i32, i32) {
    %c0_i32 = arith.constant 0 : i32
    %c0_i32_0 = arith.constant 0 : i32
    return %c0_i32, %arg0 : i32, i32
  }
  func.func @transform_1(%arg0: i32, %arg1: i32) -> (i32, i32, i32) {
    %c0_i32 = arith.constant 0 : i32
    %c0_i32_0 = arith.constant 0 : i32
    %c0_i32_1 = arith.constant 0 : i32
    return %arg1, %c0_i32, %c0_i32_0 : i32, i32, i32
  }
  func.func @transform_2(%arg0: i32, %arg1: i32) -> (i32, i32, i32) {
    %c0_i32 = arith.constant 0 : i32
    %c0_i32_0 = arith.constant 0 : i32
    %c0_i32_1 = arith.constant 0 : i32
    %c0_i32_2 = arith.constant 0 : i32
    return %c0_i32, %c0_i32_0, %c0_i32_1 : i32, i32, i32
  }
  func.func @transform_3(%arg0: i32, %arg1: i32) -> (i32, i32, i32) {
    %c0_i32 = arith.constant 0 : i32
    %c0_i32_0 = arith.constant 0 : i32
    return %arg1, %c0_i32, %arg0 : i32, i32, i32
  }
}

</mosaic_0001>

<llo_original>
// kernel: tpu_custom_call.1
$region0: #{tpu_custom_call.1}
  #allocation0 [shape = 'u32[]', space=smem, size = 0x4, offset = 0x4, fixed_abs, tag = 'smem constant byte address 0x4 - core index']
  #allocation1 [shape = 'u32[72,128]{1,0:T(1,128)}', space=vmem, size = 0x9000, scoped, tag = 'internal scratch']
  %s0 = inlined_call_operand.hbm [shape: bf16[16,256], index: 0, kind: input, shape index: {}]
  %s1 = inlined_call_operand.vmem [shape: bf16[8,16,1], index: 1, kind: input, shape index: {}]
  %s2 = inlined_call_operand.vmem [shape: bf16[7,16,16], index: 2, kind: input, shape index: {}]
  %s3 = inlined_call_operand.hbm [shape: f32[8,1,256], index: 3, kind: output, shape index: {}]
  %s4 = sld [smem:[#allocation0]]
  $region26: #{tpu_custom_call.1} parent=0
    _
  %s6 = ssub.s32 1, %s4
  %s7 = scalar_select 0, %s6, %s4
  $region1: #{tpu_custom_call.1} parent=0
    #allocation2 [shape = 'u8[8192]{0}', space=vmem, size = 0x2000, scoped, tag = 'input window, operand 0, single buffered']
    #allocation3 [shape = 's32[1]{0}', space=sflag, size = 0x4, scoped, tag = 'scoped memory for tpu_custom_call.1']
    #allocation4 [shape = 's32[1]{0}', space=sflag, size = 0x4, scoped, tag = 'scoped memory for tpu_custom_call.1']
    #allocation5 [shape = 'u8[8192]{0}', space=vmem, size = 0x2000, scoped, tag = 'output window, operand 0, single buffered']
    %8 = vsyncpa [#allocation3], 0
    %9 = vsyncpa [#allocation4], 0
    // Predicated region
    $region2: #{tpu_custom_call.1} parent=1 // pred_check
      _
    $region3: #{tpu_custom_call.1} parent=1 // pred_check_branch
      %11 = sbr.rel (0) target = $region5
    $region4: #{tpu_custom_call.1} parent=1 // pred_region
      %13 = vsyncadd [#allocation3], 0
      %s14 = sshll.u32 %s0, 4
      %s15 = int_to_ptr.hbm [resolvable:$true] %s14
      %s16 = sshll.u32 [#allocation2], 4
      %s17 = int_to_ptr.vmem [resolvable:$true] %s16
      %22 = dma.hbm_to_vmem [thread:$0]  %s15, 256, %s17, [#allocation3], 128, 128, 8
    $region5: #{tpu_custom_call.1} parent=1 // pred_fallthru
      _
    // Predicated region
    $region6: #{tpu_custom_call.1} parent=1 // pred_check
      _
    $region7: #{tpu_custom_call.1} parent=1 // pred_check_branch
      %24 = sbr.rel (0) target = $region9
    $region8: #{tpu_custom_call.1} parent=1 // pred_region
      _
    $region9: #{tpu_custom_call.1} parent=1 // pred_fallthru
      _
    // Predicated region
    $region10: #{tpu_custom_call.1} parent=1 // pred_check
      _
    $region11: #{tpu_custom_call.1} parent=1 // pred_check_branch
      %26 = sbr.rel (0) target = $region13
    $region12: #{tpu_custom_call.1} parent=1 // pred_region
      _
    $region13: #{tpu_custom_call.1} parent=1 // pred_fallthru
      _
    // Predicated region
    $region14: #{tpu_custom_call.1} parent=1 // pred_check
      _
    $region15: #{tpu_custom_call.1} parent=1 // pred_check_branch
      %28 = sbr.rel (0) target = $region17
    $region16: #{tpu_custom_call.1} parent=1 // pred_region
      %30 = dma.done [#allocation3], 256
    $region17: #{tpu_custom_call.1} parent=1 // pred_fallthru
      _
    %v32 = vld [vmem:[#allocation2] sm:$0xff]
    %v33 = vld [vmem:[#allocation2 + $0x8] sm:$0xff]
    %v34 = vld [vmem:[%s2] sm:$0xf]
    %v35 = vld [vmem:[%s2 + $0x4] sm:$0xf]
    %s36 = scalar_lea.vmem %s2, 8
    %v37 = vld [vmem:[%s36] sm:$0xf]
    %v38 = vld [vmem:[%s36 + $0x4] sm:$0xf]
    %s39 = scalar_lea.vmem %s2, 16
    %v40 = vld [vmem:[%s39] sm:$0xf]
    %v41 = vld [vmem:[%s39 + $0x4] sm:$0xf]
    %s42 = scalar_lea.vmem %s2, 24
    %v43 = vld [vmem:[%s42] sm:$0xf]
    %v44 = vld [vmem:[%s42 + $0x4] sm:$0xf]
    %s45 = scalar_lea.vmem %s2, 32
    %v46 = vld [vmem:[%s45] sm:$0xf]
    %v47 = vld [vmem:[%s45 + $0x4] sm:$0xf]
    %s48 = scalar_lea.vmem %s2, 40
    %v49 = vld [vmem:[%s48] sm:$0xf]
    %v50 = vld [vmem:[%s48 + $0x4] sm:$0xf]
    %s51 = scalar_lea.vmem %s2, 48
    %v52 = vld [vmem:[%s51] sm:$0xf]
    %v53 = vld [vmem:[%s51 + $0x4] sm:$0xf]
    %v54 = vld [vmem:[%s1] sm:$0xf]
    %v55 = vld [vmem:[%s1 + $0x4] sm:$0xf]
    %v56 = vunpack.c.l.bf16 %v32
    %v57 = vunpack.c.h.bf16 %v32
    %v58 = vunpack.c.l.bf16 %v33
    %v59 = vunpack.c.h.bf16 %v33
    %v60 = vunpack.c.l.bf16 %v54
    %v61 = vunpack.c.l.bf16 %v55
    %63 = vset.pattern.permute.xlu0 0
    %64 = vperm.xlu0 %63, %v60
    %v65 = vpop.permute.xlu0 %64
    %68 = vset.pattern.permute.xlu0 0
    %69 = vperm.xlu0 %68, %v61
    %v70 = vpop.permute.xlu0 %69
    %v72 = vadd.f32 %v56, %v65
    %v73 = vadd.f32 %v57, %v65
    %v74 = vadd.f32 %v58, %v70
    %v75 = vadd.f32 %v59, %v70
    %v76 = vmul.f32 %v72, 0.01
    %v77 = vmul.f32 %v73, 0.01
    %v78 = vmul.f32 %v74, 0.01
    %v79 = vmul.f32 %v75, 0.01
    %v80 = vmax.f32 %v72, %v76
    %v81 = vmax.f32 %v73, %v77
    %v82 = vmax.f32 %v74, %v78
    %v83 = vmax.f32 %v75, %v79
    %v84 = vpack.c.bf16 %v82, %v80
    %v85 = vpack.c.bf16 %v83, %v81
    %v88 = vunpack.c.l.b16 %v34
    %v89 = vunpack.c.l.b16 %v35
    %v90 = vpack.c.b16 %v89, %v88
    %vm91 = vcmask 130048
    %v93 = vsel %vm91, %v90, 0
    %95 = vmatpush.bf16.msra.mxu0 0
    %96 = vmatpush.bf16.msra.mxu0 0
    %97 = vmatpush.bf16.msra.mxu0 0
    %98 = vmatpush.bf16.msra.mxu0 0
    %99 = vmatpush.bf16.msra.mxu0 0
    %100 = vmatpush.bf16.msra.mxu0 0
    %101 = vmatpush.bf16.msra.mxu0 0
    %102 = vmatpush.bf16.msra.mxu0 %v84
    %103 = vmatmul.bf16.gmra.mxu0 %v93
    %v104 = vpop.f32.mrf.mxu0
    %v105 = vadd.f32 0.0, %v104
    %v106 = vpop.f32.mrf.mxu0
    %v107 = vadd.f32 0.0, %v106
    %108 = vdwg.mxu0
    %109 = vmatpush.bf16.msra.mxu0 0
    %110 = vmatpush.bf16.msra.mxu0 0
    %111 = vmatpush.bf16.msra.mxu0 0
    %112 = vmatpush.bf16.msra.mxu0 0
    %113 = vmatpush.bf16.msra.mxu0 0
    %114 = vmatpush.bf16.msra.mxu0 0
    %115 = vmatpush.bf16.msra.mxu0 0
    %116 = vmatpush.bf16.msra.mxu0 %v85
    %117 = vmatmul.bf16.gmra.mxu0 %v93
    %v118 = vpop.f32.mrf.mxu0
    %v119 = vadd.f32 0.0, %v118
    %v120 = vpop.f32.mrf.mxu0
    %v121 = vadd.f32 0.0, %v120
    %122 = vdwg.mxu0
    %v123 = vmul.f32 %v105, 0.01
    %v124 = vmul.f32 %v119, 0.01
    %v125 = vmul.f32 %v107, 0.01
    %v126 = vmul.f32 %v121, 0.01
    %v127 = vmax.f32 %v105, %v123
    %v128 = vmax.f32 %v119, %v124
    %v129 = vmax.f32 %v107, %v125
    %v130 = vmax.f32 %v121, %v126
    %v131 = vpack.c.bf16 %v129, %v127
    %v132 = vpack.c.bf16 %v130, %v128
    %v135 = vunpack.c.l.b16 %v37
    %v136 = vunpack.c.l.b16 %v38
    %v137 = vpack.c.b16 %v136, %v135
    %v139 = vsel %vm91, %v137, 0
    %141 = vmatpush.bf16.msra.mxu0 0
    %142 = vmatpush.bf16.msra.mxu0 0
    %143 = vmatpush.bf16.msra.mxu0 0
    %144 = vmatpush.bf16.msra.mxu0 0
    %145 = vmatpush.bf16.msra.mxu0 0
    %146 = vmatpush.bf16.msra.mxu0 0
    %147 = vmatpush.bf16.msra.mxu0 0
    %148 = vmatpush.bf16.msra.mxu0 %v131
    %149 = vmatmul.bf16.gmra.mxu0 %v139
    %v150 = vpop.f32.mrf.mxu0
    %v151 = vadd.f32 0.0, %v150
    %v152 = vpop.f32.mrf.mxu0
    %v153 = vadd.f32 0.0, %v152
    %154 = vdwg.mxu0
    %155 = vmatpush.bf16.msra.mxu0 0
    %156 = vmatpush.bf16.msra.mxu0 0
    %157 = vmatpush.bf16.msra.mxu0 0
    %158 = vmatpush.bf16.msra.mxu0 0
    %159 = vmatpush.bf16.msra.mxu0 0
    %160 = vmatpush.bf16.msra.mxu0 0
    %161 = vmatpush.bf16.msra.mxu0 0
    %162 = vmatpush.bf16.msra.mxu0 %v132
    %163 = vmatmul.bf16.gmra.mxu0 %v139
    %v164 = vpop.f32.mrf.mxu0
    %v165 = vadd.f32 0.0, %v164
    %v166 = vpop.f32.mrf.mxu0
    %v167 = vadd.f32 0.0, %v166
    %168 = vdwg.mxu0
    %v169 = vmul.f32 %v151, 0.01
    %v170 = vmul.f32 %v165, 0.01
    %v171 = vmul.f32 %v153, 0.01
    %v172 = vmul.f32 %v167, 0.01
    %v173 = vmax.f32 %v151, %v169
    %v174 = vmax.f32 %v165, %v170
    %v175 = vmax.f32 %v153, %v171
    %v176 = vmax.f32 %v167, %v172
    %v177 = vpack.c.bf16 %v175, %v173
    %v178 = vpack.c.bf16 %v176, %v174
    %v181 = vunpack.c.l.b16 %v40
    %v182 = vunpack.c.l.b16 %v41
    %v183 = vpack.c.b16 %v182, %v181
    %v185 = vsel %vm91, %v183, 0
    %187 = vmatpush.bf16.msra.mxu0 0
    %188 = vmatpush.bf16.msra.mxu0 0
    %189 = vmatpush.bf16.msra.mxu0 0
    %190 = vmatpush.bf16.msra.mxu0 0
    %191 = vmatpush.bf16.msra.mxu0 0
    %192 = vmatpush.bf16.msra.mxu0 0
    %193 = vmatpush.bf16.msra.mxu0 0
    %194 = vmatpush.bf16.msra.mxu0 %v177
    %195 = vmatmul.bf16.gmra.mxu0 %v185
    %v196 = vpop.f32.mrf.mxu0
    %v197 = vadd.f32 0.0, %v196
    %v198 = vpop.f32.mrf.mxu0
    %v199 = vadd.f32 0.0, %v198
    %200 = vdwg.mxu0
    %201 = vmatpush.bf16.msra.mxu0 0
    %202 = vmatpush.bf16.msra.mxu0 0
    %203 = vmatpush.bf16.msra.mxu0 0
    %204 = vmatpush.bf16.msra.mxu0 0
    %205 = vmatpush.bf16.msra.mxu0 0
    %206 = vmatpush.bf16.msra.mxu0 0
    %207 = vmatpush.bf16.msra.mxu0 0
    %208 = vmatpush.bf16.msra.mxu0 %v178
    %209 = vmatmul.bf16.gmra.mxu0 %v185
    %v210 = vpop.f32.mrf.mxu0
    %v211 = vadd.f32 0.0, %v210
    %v212 = vpop.f32.mrf.mxu0
    %v213 = vadd.f32 0.0, %v212
    %214 = vdwg.mxu0
    %v215 = vmul.f32 %v197, 0.01
    %v216 = vmul.f32 %v211, 0.01
    %v217 = vmul.f32 %v199, 0.01
    %v218 = vmul.f32 %v213, 0.01
    %v219 = vmax.f32 %v197, %v215
    %v220 = vmax.f32 %v211, %v216
    %v221 = vmax.f32 %v199, %v217
    %v222 = vmax.f32 %v213, %v218
    %v223 = vpack.c.bf16 %v221, %v219
    %v224 = vpack.c.bf16 %v222, %v220
    %v227 = vunpack.c.l.b16 %v43
    %v228 = vunpack.c.l.b16 %v44
    %v229 = vpack.c.b16 %v228, %v227
    %v231 = vsel %vm91, %v229, 0
    %233 = vmatpush.bf16.msra.mxu0 0
    %234 = vmatpush.bf16.msra.mxu0 0
    %235 = vmatpush.bf16.msra.mxu0 0
    %236 = vmatpush.bf16.msra.mxu0 0
    %237 = vmatpush.bf16.msra.mxu0 0
    %238 = vmatpush.bf16.msra.mxu0 0
    %239 = vmatpush.bf16.msra.mxu0 0
    %240 = vmatpush.bf16.msra.mxu0 %v223
    %241 = vmatmul.bf16.gmra.mxu0 %v231
    %v242 = vpop.f32.mrf.mxu0
    %v243 = vadd.f32 0.0, %v242
    %v244 = vpop.f32.mrf.mxu0
    %v245 = vadd.f32 0.0, %v244
    %246 = vdwg.mxu0
    %247 = vmatpush.bf16.msra.mxu0 0
    %248 = vmatpush.bf16.msra.mxu0 0
    %249 = vmatpush.bf16.msra.mxu0 0
    %250 = vmatpush.bf16.msra.mxu0 0
    %251 = vmatpush.bf16.msra.mxu0 0
    %252 = vmatpush.bf16.msra.mxu0 0
    %253 = vmatpush.bf16.msra.mxu0 0
    %254 = vmatpush.bf16.msra.mxu0 %v224
    %255 = vmatmul.bf16.gmra.mxu0 %v231
    %v256 = vpop.f32.mrf.mxu0
    %v257 = vadd.f32 0.0, %v256
    %v258 = vpop.f32.mrf.mxu0
    %v259 = vadd.f32 0.0, %v258
    %260 = vdwg.mxu0
    %v261 = vmul.f32 %v243, 0.01
    %v262 = vmul.f32 %v257, 0.01
    %v263 = vmul.f32 %v245, 0.01
    %v264 = vmul.f32 %v259, 0.01
    %v265 = vmax.f32 %v243, %v261
    %v266 = vmax.f32 %v257, %v262
    %v267 = vmax.f32 %v245, %v263
    %v268 = vmax.f32 %v259, %v264
    %v269 = vpack.c.bf16 %v267, %v265
    %v270 = vpack.c.bf16 %v268, %v266
    %v273 = vunpack.c.l.b16 %v46
    %v274 = vunpack.c.l.b16 %v47
    %v275 = vpack.c.b16 %v274, %v273
    %v277 = vsel %vm91, %v275, 0
    %279 = vmatpush.bf16.msra.mxu0 0
    %280 = vmatpush.bf16.msra.mxu0 0
    %281 = vmatpush.bf16.msra.mxu0 0
    %282 = vmatpush.bf16.msra.mxu0 0
    %283 = vmatpush.bf16.msra.mxu0 0
    %284 = vmatpush.bf16.msra.mxu0 0
    %285 = vmatpush.bf16.msra.mxu0 0
    %286 = vmatpush.bf16.msra.mxu0 %v269
    %287 = vmatmul.bf16.gmra.mxu0 %v277
    %v288 = vpop.f32.mrf.mxu0
    %v289 = vadd.f32 0.0, %v288
    %v290 = vpop.f32.mrf.mxu0
    %v291 = vadd.f32 0.0, %v290
    %292 = vdwg.mxu0
    %293 = vmatpush.bf16.msra.mxu0 0
    %294 = vmatpush.bf16.msra.mxu0 0
    %295 = vmatpush.bf16.msra.mxu0 0
    %296 = vmatpush.bf16.msra.mxu0 0
    %297 = vmatpush.bf16.msra.mxu0 0
    %298 = vmatpush.bf16.msra.mxu0 0
    %299 = vmatpush.bf16.msra.mxu0 0
    %300 = vmatpush.bf16.msra.mxu0 %v270
    %301 = vmatmul.bf16.gmra.mxu0 %v277
    %v302 = vpop.f32.mrf.mxu0
    %v303 = vadd.f32 0.0, %v302
    %v304 = vpop.f32.mrf.mxu0
    %v305 = vadd.f32 0.0, %v304
    %306 = vdwg.mxu0
    %v307 = vmul.f32 %v289, 0.01
    %v308 = vmul.f32 %v303, 0.01
    %v309 = vmul.f32 %v291, 0.01
    %v310 = vmul.f32 %v305, 0.01
    %v311 = vmax.f32 %v289, %v307
    %v312 = vmax.f32 %v303, %v308
    %v313 = vmax.f32 %v291, %v309
    %v314 = vmax.f32 %v305, %v310
    %v315 = vpack.c.bf16 %v313, %v311
    %v316 = vpack.c.bf16 %v314, %v312
    %v319 = vunpack.c.l.b16 %v49
    %v320 = vunpack.c.l.b16 %v50
    %v321 = vpack.c.b16 %v320, %v319
    %v323 = vsel %vm91, %v321, 0
    %325 = vmatpush.bf16.msra.mxu0 0
    %326 = vmatpush.bf16.msra.mxu0 0
    %327 = vmatpush.bf16.msra.mxu0 0
    %328 = vmatpush.bf16.msra.mxu0 0
    %329 = vmatpush.bf16.msra.mxu0 0
    %330 = vmatpush.bf16.msra.mxu0 0
    %331 = vmatpush.bf16.msra.mxu0 0
    %332 = vmatpush.bf16.msra.mxu0 %v315
    %333 = vmatmul.bf16.gmra.mxu0 %v323
    %v334 = vpop.f32.mrf.mxu0
    %v335 = vadd.f32 0.0, %v334
    %v336 = vpop.f32.mrf.mxu0
    %v337 = vadd.f32 0.0, %v336
    %338 = vdwg.mxu0
    %339 = vmatpush.bf16.msra.mxu0 0
    %340 = vmatpush.bf16.msra.mxu0 0
    %341 = vmatpush.bf16.msra.mxu0 0
    %342 = vmatpush.bf16.msra.mxu0 0
    %343 = vmatpush.bf16.msra.mxu0 0
    %344 = vmatpush.bf16.msra.mxu0 0
    %345 = vmatpush.bf16.msra.mxu0 0
    %346 = vmatpush.bf16.msra.mxu0 %v316
    %347 = vmatmul.bf16.gmra.mxu0 %v323
    %v348 = vpop.f32.mrf.mxu0
    %v349 = vadd.f32 0.0, %v348
    %v350 = vpop.f32.mrf.mxu0
    %v351 = vadd.f32 0.0, %v350
    %352 = vdwg.mxu0
    %v353 = vmul.f32 %v335, 0.01
    %v354 = vmul.f32 %v349, 0.01
    %v355 = vmul.f32 %v337, 0.01
    %v356 = vmul.f32 %v351, 0.01
    %v357 = vmax.f32 %v335, %v353
    %v358 = vmax.f32 %v349, %v354
    %v359 = vmax.f32 %v337, %v355
    %v360 = vmax.f32 %v351, %v356
    %v361 = vpack.c.bf16 %v359, %v357
    %v362 = vpack.c.bf16 %v360, %v358
    %v365 = vunpack.c.l.b16 %v52
    %v366 = vunpack.c.l.b16 %v53
    %v367 = vpack.c.b16 %v366, %v365
    %v369 = vsel %vm91, %v367, 0
    %371 = vmatpush.bf16.msra.mxu0 0
    %372 = vmatpush.bf16.msra.mxu0 0
    %373 = vmatpush.bf16.msra.mxu0 0
    %374 = vmatpush.bf16.msra.mxu0 0
    %375 = vmatpush.bf16.msra.mxu0 0
    %376 = vmatpush.bf16.msra.mxu0 0
    %377 = vmatpush.bf16.msra.mxu0 0
    %378 = vmatpush.bf16.msra.mxu0 %v361
    %379 = vmatmul.bf16.gmra.mxu0 %v369
    %v380 = vpop.f32.mrf.mxu0
    %v381 = vadd.f32 0.0, %v380
    %v382 = vpop.f32.mrf.mxu0
    %383 = vdwg.mxu0
    %384 = vmatpush.bf16.msra.mxu0 0
    %385 = vmatpush.bf16.msra.mxu0 0
    %386 = vmatpush.bf16.msra.mxu0 0
    %387 = vmatpush.bf16.msra.mxu0 0
    %388 = vmatpush.bf16.msra.mxu0 0
    %389 = vmatpush.bf16.msra.mxu0 0
    %390 = vmatpush.bf16.msra.mxu0 0
    %391 = vmatpush.bf16.msra.mxu0 %v362
    %392 = vmatmul.bf16.gmra.mxu0 %v369
    %v393 = vpop.f32.mrf.mxu0
    %v394 = vadd.f32 0.0, %v393
    %v395 = vpop.f32.mrf.mxu0
    %396 = vdwg.mxu0
    %v397 = vtanh.pop %v381
    %v398 = vtanh.pop %v394
    %v401 = vrot.slane %v398, 7
    %vm402 = vcmask 1040384
    %v403 = vsel %vm402, %v397, %v401
    %v405 = vlaneseq
    %vm406 = vcmp.ge.s32.totalorder %v405, 0
    %vm407 = vcmp.lt.s32.totalorder %v405, 256
    %vm408 = vmand %vm406, %vm407
    %409 = vst.msk [vmem:[#allocation5] sm:$0x3] %vm408, %v403
    %s410 = scalar_lea.vmem %s1, 8
    %v411 = vld [vmem:[%s410] sm:$0xf]
    %v412 = vld [vmem:[%s410 + $0x4] sm:$0xf]
    %v413 = vunpack.c.l.bf16 %v411
    %v414 = vunpack.c.l.bf16 %v412
    %416 = vset.pattern.permute.xlu0 0
    %417 = vperm.xlu0 %416, %v413
    %v418 = vpop.permute.xlu0 %417
    %421 = vset.pattern.permute.xlu0 0
    %422 = vperm.xlu0 %421, %v414
    %v423 = vpop.permute.xlu0 %422
    %v425 = vadd.f32 %v56, %v418
    %v426 = vadd.f32 %v57, %v418
    %v427 = vadd.f32 %v58, %v423
    %v428 = vadd.f32 %v59, %v423
    %v429 = vmul.f32 %v425, 0.01
    %v430 = vmul.f32 %v426, 0.01
    %v431 = vmul.f32 %v427, 0.01
    %v432 = vmul.f32 %v428, 0.01
    %v433 = vmax.f32 %v425, %v429
    %v434 = vmax.f32 %v426, %v430
    %v435 = vmax.f32 %v427, %v431
    %v436 = vmax.f32 %v428, %v432
    %v437 = vpack.c.bf16 %v435, %v433
    %v438 = vpack.c.bf16 %v436, %v434
    %439 = vmatpush.bf16.msra.mxu0 0
    %440 = vmatpush.bf16.msra.mxu0 0
    %441 = vmatpush.bf16.msra.mxu0 0
    %442 = vmatpush.bf16.msra.mxu0 0
    %443 = vmatpush.bf16.msra.mxu0 0
    %444 = vmatpush.bf16.msra.mxu0 0
    %445 = vmatpush.bf16.msra.mxu0 0
    %446 = vmatpush.bf16.msra.mxu0 %v437
    %447 = vmatmul.bf16.gmra.mxu0 %v93
    %v448 = vpop.f32.mrf.mxu0
    %v449 = vadd.f32 0.0, %v448
    %v450 = vpop.f32.mrf.mxu0
    %v451 = vadd.f32 0.0, %v450
    %452 = vdwg.mxu0
    %453 = vmatpush.bf16.msra.mxu0 0
    %454 = vmatpush.bf16.msra.mxu0 0
    %455 = vmatpush.bf16.msra.mxu0 0
    %456 = vmatpush.bf16.msra.mxu0 0
    %457 = vmatpush.bf16.msra.mxu0 0
    %458 = vmatpush.bf16.msra.mxu0 0
    %459 = vmatpush.bf16.msra.mxu0 0
    %460 = vmatpush.bf16.msra.mxu0 %v438
    %461 = vmatmul.bf16.gmra.mxu0 %v93
    %v462 = vpop.f32.mrf.mxu0
    %v463 = vadd.f32 0.0, %v462
    %v464 = vpop.f32.mrf.mxu0
    %v465 = vadd.f32 0.0, %v464
    %466 = vdwg.mxu0
    %v467 = vmul.f32 %v449, 0.01
    %v468 = vmul.f32 %v463, 0.01
    %v469 = vmul.f32 %v451, 0.01
    %v470 = vmul.f32 %v465, 0.01
    %v471 = vmax.f32 %v449, %v467
    %v472 = vmax.f32 %v463, %v468
    %v473 = vmax.f32 %v451, %v469
    %v474 = vmax.f32 %v465, %v470
    %v475 = vpack.c.bf16 %v473, %v471
    %v476 = vpack.c.bf16 %v474, %v472
    %477 = vmatpush.bf16.msra.mxu0 0
    %478 = vmatpush.bf16.msra.mxu0 0
    %479 = vmatpush.bf16.msra.mxu0 0
    %480 = vmatpush.bf16.msra.mxu0 0
    %481 = vmatpush.bf16.msra.mxu0 0
    %482 = vmatpush.bf16.msra.mxu0 0
    %483 = vmatpush.bf16.msra.mxu0 0
    %484 = vmatpush.bf16.msra.mxu0 %v475
    %485 = vmatmul.bf16.gmra.mxu0 %v139
    %v486 = vpop.f32.mrf.mxu0
    %v487 = vadd.f32 0.0, %v486
    %v488 = vpop.f32.mrf.mxu0
    %v489 = vadd.f32 0.0, %v488
    %490 = vdwg.mxu0
    %491 = vmatpush.bf16.msra.mxu0 0
    %492 = vmatpush.bf16.msra.mxu0 0
    %493 = vmatpush.bf16.msra.mxu0 0
    %494 = vmatpush.bf16.msra.mxu0 0
    %495 = vmatpush.bf16.msra.mxu0 0
    %496 = vmatpush.bf16.msra.mxu0 0
    %497 = vmatpush.bf16.msra.mxu0 0
    %498 = vmatpush.bf16.msra.mxu0 %v476
    %499 = vmatmul.bf16.gmra.mxu0 %v139
    %v500 = vpop.f32.mrf.mxu0
    %v501 = vadd.f32 0.0, %v500
    %v502 = vpop.f32.mrf.mxu0
    %v503 = vadd.f32 0.0, %v502
    %504 = vdwg.mxu0
    %v505 = vmul.f32 %v487, 0.01
    %v506 = vmul.f32 %v501, 0.01
    %v507 = vmul.f32 %v489, 0.01
    %v508 = vmul.f32 %v503, 0.01
    %v509 = vmax.f32 %v487, %v505
    %v510 = vmax.f32 %v501, %v506
    %v511 = vmax.f32 %v489, %v507
    %v512 = vmax.f32 %v503, %v508
    %v513 = vpack.c.bf16 %v511, %v509
    %v514 = vpack.c.bf16 %v512, %v510
    %515 = vmatpush.bf16.msra.mxu0 0
    %516 = vmatpush.bf16.msra.mxu0 0
    %517 = vmatpush.bf16.msra.mxu0 0
    %518 = vmatpush.bf16.msra.mxu0 0
    %519 = vmatpush.bf16.msra.mxu0 0
    %520 = vmatpush.bf16.msra.mxu0 0
    %521 = vmatpush.bf16.msra.mxu0 0
    %522 = vmatpush.bf16.msra.mxu0 %v513
    %523 = vmatmul.bf16.gmra.mxu0 %v185
    %v524 = vpop.f32.mrf.mxu0
    %v525 = vadd.f32 0.0, %v524
    %v526 = vpop.f32.mrf.mxu0
    %v527 = vadd.f32 0.0, %v526
    %528 = vdwg.mxu0
    %529 = vmatpush.bf16.msra.mxu0 0
    %530 = vmatpush.bf16.msra.mxu0 0
    %531 = vmatpush.bf16.msra.mxu0 0
    %532 = vmatpush.bf16.msra.mxu0 0
    %533 = vmatpush.bf16.msra.mxu0 0
    %534 = vmatpush.bf16.msra.mxu0 0
    %535 = vmatpush.bf16.msra.mxu0 0
    %536 = vmatpush.bf16.msra.mxu0 %v514
    %537 = vmatmul.bf16.gmra.mxu0 %v185
    %v538 = vpop.f32.mrf.mxu0
    %v539 = vadd.f32 0.0, %v538
    %v540 = vpop.f32.mrf.mxu0
    %v541 = vadd.f32 0.0, %v540
    %542 = vdwg.mxu0
    %v543 = vmul.f32 %v525, 0.01
    %v544 = vmul.f32 %v539, 0.01
    %v545 = vmul.f32 %v527, 0.01
    %v546 = vmul.f32 %v541, 0.01
    %v547 = vmax.f32 %v525, %v543
    %v548 = vmax.f32 %v539, %v544
    %v549 = vmax.f32 %v527, %v545
    %v550 = vmax.f32 %v541, %v546
    %v551 = vpack.c.bf16 %v549, %v547
    %v552 = vpack.c.bf16 %v550, %v548
    %553 = vmatpush.bf16.msra.mxu0 0
    %554 = vmatpush.bf16.msra.mxu0 0
    %555 = vmatpush.bf16.msra.mxu0 0
    %556 = vmatpush.bf16.msra.mxu0 0
    %557 = vmatpush.bf16.msra.mxu0 0
    %558 = vmatpush.bf16.msra.mxu0 0
    %559 = vmatpush.bf16.msra.mxu0 0
    %560 = vmatpush.bf16.msra.mxu0 %v551
    %561 = vmatmul.bf16.gmra.mxu0 %v231
    %v562 = vpop.f32.mrf.mxu0
    %v563 = vadd.f32 0.0, %v562
    %v564 = vpop.f32.mrf.mxu0
    %v565 = vadd.f32 0.0, %v564
    %566 = vdwg.mxu0
    %567 = vmatpush.bf16.msra.mxu0 0
    %568 = vmatpush.bf16.msra.mxu0 0
    %569 = vmatpush.bf16.msra.mxu0 0
    %570 = vmatpush.bf16.msra.mxu0 0
    %571 = vmatpush.bf16.msra.mxu0 0
    %572 = vmatpush.bf16.msra.mxu0 0
    %573 = vmatpush.bf16.msra.mxu0 0
    %574 = vmatpush.bf16.msra.mxu0 %v552
    %575 = vmatmul.bf16.gmra.mxu0 %v231
    %v576 = vpop.f32.mrf.mxu0
    %v577 = vadd.f32 0.0, %v576
    %v578 = vpop.f32.mrf.mxu0
    %v579 = vadd.f32 0.0, %v578
    %580 = vdwg.mxu0
    %v581 = vmul.f32 %v563, 0.01
    %v582 = vmul.f32 %v577, 0.01
    %v583 = vmul.f32 %v565, 0.01
    %v584 = vmul.f32 %v579, 0.01
    %v585 = vmax.f32 %v563, %v581
    %v586 = vmax.f32 %v577, %v582
    %v587 = vmax.f32 %v565, %v583
    %v588 = vmax.f32 %v579, %v584
    %v589 = vpack.c.bf16 %v587, %v585
    %v590 = vpack.c.bf16 %v588, %v586
    %591 = vmatpush.bf16.msra.mxu0 0
    %592 = vmatpush.bf16.msra.mxu0 0
    %593 = vmatpush.bf16.msra.mxu0 0
    %594 = vmatpush.bf16.msra.mxu0 0
    %595 = vmatpush.bf16.msra.mxu0 0
    %596 = vmatpush.bf16.msra.mxu0 0
    %597 = vmatpush.bf16.msra.mxu0 0
    %598 = vmatpush.bf16.msra.mxu0 %v589
    %599 = vmatmul.bf16.gmra.mxu0 %v277
    %v600 = vpop.f32.mrf.mxu0
    %v601 = vadd.f32 0.0, %v600
    %v602 = vpop.f32.mrf.mxu0
    %v603 = vadd.f32 0.0, %v602
    %604 = vdwg.mxu0
    %605 = vmatpush.bf16.msra.mxu0 0
    %606 = vmatpush.bf16.msra.mxu0 0
    %607 = vmatpush.bf16.msra.mxu0 0
    %608 = vmatpush.bf16.msra.mxu0 0
    %609 = vmatpush.bf16.msra.mxu0 0
    %610 = vmatpush.bf16.msra.mxu0 0
    %611 = vmatpush.bf16.msra.mxu0 0
    %612 = vmatpush.bf16.msra.mxu0 %v590
    %613 = vmatmul.bf16.gmra.mxu0 %v277
    %v614 = vpop.f32.mrf.mxu0
    %v615 = vadd.f32 0.0, %v614
    %v616 = vpop.f32.mrf.mxu0
    %v617 = vadd.f32 0.0, %v616
    %618 = vdwg.mxu0
    %v619 = vmul.f32 %v601, 0.01
    %v620 = vmul.f32 %v615, 0.01
    %v621 = vmul.f32 %v603, 0.01
    %v622 = vmul.f32 %v617, 0.01
    %v623 = vmax.f32 %v601, %v619
    %v624 = vmax.f32 %v615, %v620
    %v625 = vmax.f32 %v603, %v621
    %v626 = vmax.f32 %v617, %v622
    %v627 = vpack.c.bf16 %v625, %v623
    %v628 = vpack.c.bf16 %v626, %v624
    %629 = vmatpush.bf16.msra.mxu0 0
    %630 = vmatpush.bf16.msra.mxu0 0
    %631 = vmatpush.bf16.msra.mxu0 0
    %632 = vmatpush.bf16.msra.mxu0 0
    %633 = vmatpush.bf16.msra.mxu0 0
    %634 = vmatpush.bf16.msra.mxu0 0
    %635 = vmatpush.bf16.msra.mxu0 0
    %636 = vmatpush.bf16.msra.mxu0 %v627
    %637 = vmatmul.bf16.gmra.mxu0 %v323
    %v638 = vpop.f32.mrf.mxu0
    %v639 = vadd.f32 0.0, %v638
    %v640 = vpop.f32.mrf.mxu0
    %v641 = vadd.f32 0.0, %v640
    %642 = vdwg.mxu0
    %643 = vmatpush.bf16.msra.mxu0 0
    %644 = vmatpush.bf16.msra.mxu0 0
    %645 = vmatpush.bf16.msra.mxu0 0
    %646 = vmatpush.bf16.msra.mxu0 0
    %647 = vmatpush.bf16.msra.mxu0 0
    %648 = vmatpush.bf16.msra.mxu0 0
    %649 = vmatpush.bf16.msra.mxu0 0
    %650 = vmatpush.bf16.msra.mxu0 %v628
    %651 = vmatmul.bf16.gmra.mxu0 %v323
    %v652 = vpop.f32.mrf.mxu0
    %v653 = vadd.f32 0.0, %v652
    %v654 = vpop.f32.mrf.mxu0
    %v655 = vadd.f32 0.0, %v654
    %656 = vdwg.mxu0
    %v657 = vmul.f32 %v639, 0.01
    %v658 = vmul.f32 %v653, 0.01
    %v659 = vmul.f32 %v641, 0.01
    %v660 = vmul.f32 %v655, 0.01
    %v661 = vmax.f32 %v639, %v657
    %v662 = vmax.f32 %v653, %v658
    %v663 = vmax.f32 %v641, %v659
    %v664 = vmax.f32 %v655, %v660
    %v665 = vpack.c.bf16 %v663, %v661
    %v666 = vpack.c.bf16 %v664, %v662
    %667 = vmatpush.bf16.msra.mxu0 0
    %668 = vmatpush.bf16.msra.mxu0 0
    %669 = vmatpush.bf16.msra.mxu0 0
    %670 = vmatpush.bf16.msra.mxu0 0
    %671 = vmatpush.bf16.msra.mxu0 0
    %672 = vmatpush.bf16.msra.mxu0 0
    %673 = vmatpush.bf16.msra.mxu0 0
    %674 = vmatpush.bf16.msra.mxu0 %v665
    %675 = vmatmul.bf16.gmra.mxu0 %v369
    %v676 = vpop.f32.mrf.mxu0
    %v677 = vadd.f32 0.0, %v676
    %v678 = vpop.f32.mrf.mxu0
    %679 = vdwg.mxu0
    %680 = vmatpush.bf16.msra.mxu0 0
    %681 = vmatpush.bf16.msra.mxu0 0
    %682 = vmatpush.bf16.msra.mxu0 0
    %683 = vmatpush.bf16.msra.mxu0 0
    %684 = vmatpush.bf16.msra.mxu0 0
    %685 = vmatpush.bf16.msra.mxu0 0
    %686 = vmatpush.bf16.msra.mxu0 0
    %687 = vmatpush.bf16.msra.mxu0 %v666
    %688 = vmatmul.bf16.gmra.mxu0 %v369
    %v689 = vpop.f32.mrf.mxu0
    %v690 = vadd.f32 0.0, %v689
    %v691 = vpop.f32.mrf.mxu0
    %692 = vdwg.mxu0
    %v693 = vtanh.pop %v677
    %v694 = vtanh.pop %v690
    %v697 = vrot.slane %v694, 7
    %v698 = vsel %vm402, %v693, %v697
    %s700 = scalar_lea.vmem [#allocation5], 2
    %701 = vst.msk [vmem:[%s700] sm:$0x3] %vm408, %v698
    %s702 = scalar_lea.vmem %s1, 16
    %v703 = vld [vmem:[%s702] sm:$0xf]
    %v704 = vld [vmem:[%s702 + $0x4] sm:$0xf]
    %v705 = vunpack.c.l.bf16 %v703
    %v706 = vunpack.c.l.bf16 %v704
    %708 = vset.pattern.permute.xlu0 0
    %709 = vperm.xlu0 %708, %v705
    %v710 = vpop.permute.xlu0 %709
    %713 = vset.pattern.permute.xlu0 0
    %714 = vperm.xlu0 %713, %v706
    %v715 = vpop.permute.xlu0 %714
    %v717 = vadd.f32 %v56, %v710
    %v718 = vadd.f32 %v57, %v710
    %v719 = vadd.f32 %v58, %v715
    %v720 = vadd.f32 %v59, %v715
    %v721 = vmul.f32 %v717, 0.01
    %v722 = vmul.f32 %v718, 0.01
    %v723 = vmul.f32 %v719, 0.01
    %v724 = vmul.f32 %v720, 0.01
    %v725 = vmax.f32 %v717, %v721
    %v726 = vmax.f32 %v718, %v722
    %v727 = vmax.f32 %v719, %v723
    %v728 = vmax.f32 %v720, %v724
    %v729 = vpack.c.bf16 %v727, %v725
    %v730 = vpack.c.bf16 %v728, %v726
    %731 = vmatpush.bf16.msra.mxu0 0
    %732 = vmatpush.bf16.msra.mxu0 0
    %733 = vmatpush.bf16.msra.mxu0 0
    %734 = vmatpush.bf16.msra.mxu0 0
    %735 = vmatpush.bf16.msra.mxu0 0
    %736 = vmatpush.bf16.msra.mxu0 0
    %737 = vmatpush.bf16.msra.mxu0 0
    %738 = vmatpush.bf16.msra.mxu0 %v729
    %739 = vmatmul.bf16.gmra.mxu0 %v93
    %v740 = vpop.f32.mrf.mxu0
    %v741 = vadd.f32 0.0, %v740
    %v742 = vpop.f32.mrf.mxu0
    %v743 = vadd.f32 0.0, %v742
    %744 = vdwg.mxu0
    %745 = vmatpush.bf16.msra.mxu0 0
    %746 = vmatpush.bf16.msra.mxu0 0
    %747 = vmatpush.bf16.msra.mxu0 0
    %748 = vmatpush.bf16.msra.mxu0 0
    %749 = vmatpush.bf16.msra.mxu0 0
    %750 = vmatpush.bf16.msra.mxu0 0
    %751 = vmatpush.bf16.msra.mxu0 0
    %752 = vmatpush.bf16.msra.mxu0 %v730
    %753 = vmatmul.bf16.gmra.mxu0 %v93
    %v754 = vpop.f32.mrf.mxu0
    %v755 = vadd.f32 0.0, %v754
    %v756 = vpop.f32.mrf.mxu0
    %v757 = vadd.f32 0.0, %v756
    %758 = vdwg.mxu0
    %v759 = vmul.f32 %v741, 0.01
    %v760 = vmul.f32 %v755, 0.01
    %v761 = vmul.f32 %v743, 0.01
    %v762 = vmul.f32 %v757, 0.01
    %v763 = vmax.f32 %v741, %v759
    %v764 = vmax.f32 %v755, %v760
    %v765 = vmax.f32 %v743, %v761
    %v766 = vmax.f32 %v757, %v762
    %v767 = vpack.c.bf16 %v765, %v763
    %v768 = vpack.c.bf16 %v766, %v764
    %769 = vmatpush.bf16.msra.mxu0 0
    %770 = vmatpush.bf16.msra.mxu0 0
    %771 = vmatpush.bf16.msra.mxu0 0
    %772 = vmatpush.bf16.msra.mxu0 0
    %773 = vmatpush.bf16.msra.mxu0 0
    %774 = vmatpush.bf16.msra.mxu0 0
    %775 = vmatpush.bf16.msra.mxu0 0
    %776 = vmatpush.bf16.msra.mxu0 %v767
    %777 = vmatmul.bf16.gmra.mxu0 %v139
    %v778 = vpop.f32.mrf.mxu0
    %v779 = vadd.f32 0.0, %v778
    %v780 = vpop.f32.mrf.mxu0
    %v781 = vadd.f32 0.0, %v780
    %782 = vdwg.mxu0
    %783 = vmatpush.bf16.msra.mxu0 0
    %784 = vmatpush.bf16.msra.mxu0 0
    %785 = vmatpush.bf16.msra.mxu0 0
    %786 = vmatpush.bf16.msra.mxu0 0
    %787 = vmatpush.bf16.msra.mxu0 0
    %788 = vmatpush.bf16.msra.mxu0 0
    %789 = vmatpush.bf16.msra.mxu0 0
    %790 = vmatpush.bf16.msra.mxu0 %v768
    %791 = vmatmul.bf16.gmra.mxu0 %v139
    %v792 = vpop.f32.mrf.mxu0
    %v793 = vadd.f32 0.0, %v792
    %v794 = vpop.f32.mrf.mxu0
    %v795 = vadd.f32 0.0, %v794
    %796 = vdwg.mxu0
    %v797 = vmul.f32 %v779, 0.01
    %v798 = vmul.f32 %v793, 0.01
    %v799 = vmul.f32 %v781, 0.01
    %v800 = vmul.f32 %v795, 0.01
    %v801 = vmax.f32 %v779, %v797
    %v802 = vmax.f32 %v793, %v798
    %v803 = vmax.f32 %v781, %v799
    %v804 = vmax.f32 %v795, %v800
    %v805 = vpack.c.bf16 %v803, %v801
    %v806 = vpack.c.bf16 %v804, %v802
    %807 = vmatpush.bf16.msra.mxu0 0
    %808 = vmatpush.bf16.msra.mxu0 0
    %809 = vmatpush.bf16.msra.mxu0 0
    %810 = vmatpush.bf16.msra.mxu0 0
    %811 = vmatpush.bf16.msra.mxu0 0
    %812 = vmatpush.bf16.msra.mxu0 0
    %813 = vmatpush.bf16.msra.mxu0 0
    %814 = vmatpush.bf16.msra.mxu0 %v805
    %815 = vmatmul.bf16.gmra.mxu0 %v185
    %v816 = vpop.f32.mrf.mxu0
    %v817 = vadd.f32 0.0, %v816
    %v818 = vpop.f32.mrf.mxu0
    %v819 = vadd.f32 0.0, %v818
    %820 = vdwg.mxu0
    %821 = vmatpush.bf16.msra.mxu0 0
    %822 = vmatpush.bf16.msra.mxu0 0
    %823 = vmatpush.bf16.msra.mxu0 0
    %824 = vmatpush.bf16.msra.mxu0 0
    %825 = vmatpush.bf16.msra.mxu0 0
    %826 = vmatpush.bf16.msra.mxu0 0
    %827 = vmatpush.bf16.msra.mxu0 0
    %828 = vmatpush.bf16.msra.mxu0 %v806
    %829 = vmatmul.bf16.gmra.mxu0 %v185
    %v830 = vpop.f32.mrf.mxu0
    %v831 = vadd.f32 0.0, %v830
    %v832 = vpop.f32.mrf.mxu0
    %v833 = vadd.f32 0.0, %v832
    %834 = vdwg.mxu0
    %v835 = vmul.f32 %v817, 0.01
    %v836 = vmul.f32 %v831, 0.01
    %v837 = vmul.f32 %v819, 0.01
    %v838 = vmul.f32 %v833, 0.01
    %v839 = vmax.f32 %v817, %v835
    %v840 = vmax.f32 %v831, %v836
    %v841 = vmax.f32 %v819, %v837
    %v842 = vmax.f32 %v833, %v838
    %v843 = vpack.c.bf16 %v841, %v839
    %v844 = vpack.c.bf16 %v842, %v840
    %845 = vmatpush.bf16.msra.mxu0 0
    %846 = vmatpush.bf16.msra.mxu0 0
    %847 = vmatpush.bf16.msra.mxu0 0
    %848 = vmatpush.bf16.msra.mxu0 0
    %849 = vmatpush.bf16.msra.mxu0 0
    %850 = vmatpush.bf16.msra.mxu0 0
    %851 = vmatpush.bf16.msra.mxu0 0
    %852 = vmatpush.bf16.msra.mxu0 %v843
    %853 = vmatmul.bf16.gmra.mxu0 %v231
    %v854 = vpop.f32.mrf.mxu0
    %v855 = vadd.f32 0.0, %v854
    %v856 = vpop.f32.mrf.mxu0
    %v857 = vadd.f32 0.0, %v856
    %858 = vdwg.mxu0
    %859 = vmatpush.bf16.msra.mxu0 0
    %860 = vmatpush.bf16.msra.mxu0 0
    %861 = vmatpush.bf16.msra.mxu0 0
    %862 = vmatpush.bf16.msra.mxu0 0
    %863 = vmatpush.bf16.msra.mxu0 0
    %864 = vmatpush.bf16.msra.mxu0 0
    %865 = vmatpush.bf16.msra.mxu0 0
    %866 = vmatpush.bf16.msra.mxu0 %v844
    %867 = vmatmul.bf16.gmra.mxu0 %v231
    %v868 = vpop.f32.mrf.mxu0
    %v869 = vadd.f32 0.0, %v868
    %v870 = vpop.f32.mrf.mxu0
    %v871 = vadd.f32 0.0, %v870
    %872 = vdwg.mxu0
    %v873 = vmul.f32 %v855, 0.01
    %v874 = vmul.f32 %v869, 0.01
    %v875 = vmul.f32 %v857, 0.01
    %v876 = vmul.f32 %v871, 0.01
    %v877 = vmax.f32 %v855, %v873
    %v878 = vmax.f32 %v869, %v874
    %v879 = vmax.f32 %v857, %v875
    %v880 = vmax.f32 %v871, %v876
    %v881 = vpack.c.bf16 %v879, %v877
    %v882 = vpack.c.bf16 %v880, %v878
    %883 = vmatpush.bf16.msra.mxu0 0
    %884 = vmatpush.bf16.msra.mxu0 0
    %885 = vmatpush.bf16.msra.mxu0 0
    %886 = vmatpush.bf16.msra.mxu0 0
    %887 = vmatpush.bf16.msra.mxu0 0
    %888 = vmatpush.bf16.msra.mxu0 0
    %889 = vmatpush.bf16.msra.mxu0 0
    %890 = vmatpush.bf16.msra.mxu0 %v881
    %891 = vmatmul.bf16.gmra.mxu0 %v277
    %v892 = vpop.f32.mrf.mxu0
    %v893 = vadd.f32 0.0, %v892
    %v894 = vpop.f32.mrf.mxu0
    %v895 = vadd.f32 0.0, %v894
    %896 = vdwg.mxu0
    %897 = vmatpush.bf16.msra.mxu0 0
    %898 = vmatpush.bf16.msra.mxu0 0
    %899 = vmatpush.bf16.msra.mxu0 0
    %900 = vmatpush.bf16.msra.mxu0 0
    %901 = vmatpush.bf16.msra.mxu0 0
    %902 = vmatpush.bf16.msra.mxu0 0
    %903 = vmatpush.bf16.msra.mxu0 0
    %904 = vmatpush.bf16.msra.mxu0 %v882
    %905 = vmatmul.bf16.gmra.mxu0 %v277
    %v906 = vpop.f32.mrf.mxu0
    %v907 = vadd.f32 0.0, %v906
    %v908 = vpop.f32.mrf.mxu0
    %v909 = vadd.f32 0.0, %v908
    %910 = vdwg.mxu0
    %v911 = vmul.f32 %v893, 0.01
    %v912 = vmul.f32 %v907, 0.01
    %v913 = vmul.f32 %v895, 0.01
    %v914 = vmul.f32 %v909, 0.01
    %v915 = vmax.f32 %v893, %v911
    %v916 = vmax.f32 %v907, %v912
    %v917 = vmax.f32 %v895, %v913
    %v918 = vmax.f32 %v909, %v914
    %v919 = vpack.c.bf16 %v917, %v915
    %v920 = vpack.c.bf16 %v918, %v916
    %921 = vmatpush.bf16.msra.mxu0 0
    %922 = vmatpush.bf16.msra.mxu0 0
    %923 = vmatpush.bf16.msra.mxu0 0
    %924 = vmatpush.bf16.msra.mxu0 0
    %925 = vmatpush.bf16.msra.mxu0 0
    %926 = vmatpush.bf16.msra.mxu0 0
    %927 = vmatpush.bf16.msra.mxu0 0
    %928 = vmatpush.bf16.msra.mxu0 %v919
    %929 = vmatmul.bf16.gmra.mxu0 %v323
    %v930 = vpop.f32.mrf.mxu0
    %v931 = vadd.f32 0.0, %v930
    %v932 = vpop.f32.mrf.mxu0
    %v933 = vadd.f32 0.0, %v932
    %934 = vdwg.mxu0
    %935 = vmatpush.bf16.msra.mxu0 0
    %936 = vmatpush.bf16.msra.mxu0 0
    %937 = vmatpush.bf16.msra.mxu0 0
    %938 = vmatpush.bf16.msra.mxu0 0
    %939 = vmatpush.bf16.msra.mxu0 0
    %940 = vmatpush.bf16.msra.mxu0 0
    %941 = vmatpush.bf16.msra.mxu0 0
    %942 = vmatpush.bf16.msra.mxu0 %v920
    %943 = vmatmul.bf16.gmra.mxu0 %v323
    %v944 = vpop.f32.mrf.mxu0
    %v945 = vadd.f32 0.0, %v944
    %v946 = vpop.f32.mrf.mxu0
    %v947 = vadd.f32 0.0, %v946
    %948 = vdwg.mxu0
    %v949 = vmul.f32 %v931, 0.01
    %v950 = vmul.f32 %v945, 0.01
    %v951 = vmul.f32 %v933, 0.01
    %v952 = vmul.f32 %v947, 0.01
    %v953 = vmax.f32 %v931, %v949
    %v954 = vmax.f32 %v945, %v950
    %v955 = vmax.f32 %v933, %v951
    %v956 = vmax.f32 %v947, %v952
    %v957 = vpack.c.bf16 %v955, %v953
    %v958 = vpack.c.bf16 %v956, %v954
    %959 = vmatpush.bf16.msra.mxu0 0
    %960 = vmatpush.bf16.msra.mxu0 0
    %961 = vmatpush.bf16.msra.mxu0 0
    %962 = vmatpush.bf16.msra.mxu0 0
    %963 = vmatpush.bf16.msra.mxu0 0
    %964 = vmatpush.bf16.msra.mxu0 0
    %965 = vmatpush.bf16.msra.mxu0 0
    %966 = vmatpush.bf16.msra.mxu0 %v957
    %967 = vmatmul.bf16.gmra.mxu0 %v369
    %v968 = vpop.f32.mrf.mxu0
    %v969 = vadd.f32 0.0, %v968
    %v970 = vpop.f32.mrf.mxu0
    %971 = vdwg.mxu0
    %972 = vmatpush.bf16.msra.mxu0 0
    %973 = vmatpush.bf16.msra.mxu0 0
    %974 = vmatpush.bf16.msra.mxu0 0
    %975 = vmatpush.bf16.msra.mxu0 0
    %976 = vmatpush.bf16.msra.mxu0 0
    %977 = vmatpush.bf16.msra.mxu0 0
    %978 = vmatpush.bf16.msra.mxu0 0
    %979 = vmatpush.bf16.msra.mxu0 %v958
    %980 = vmatmul.bf16.gmra.mxu0 %v369
    %v981 = vpop.f32.mrf.mxu0
    %v982 = vadd.f32 0.0, %v981
    %v983 = vpop.f32.mrf.mxu0
    %984 = vdwg.mxu0
    %v985 = vtanh.pop %v969
    %v986 = vtanh.pop %v982
    %v989 = vrot.slane %v986, 7
    %v990 = vsel %vm402, %v985, %v989
    %s992 = scalar_lea.vmem [#allocation5], 4
    %993 = vst.msk [vmem:[%s992] sm:$0x3] %vm408, %v990
    %s994 = scalar_lea.vmem %s1, 24
    %v995 = vld [vmem:[%s994] sm:$0xf]
    %v996 = vld [vmem:[%s994 + $0x4] sm:$0xf]
    %v997 = vunpack.c.l.bf16 %v995
    %v998 = vunpack.c.l.bf16 %v996
    %1000 = vset.pattern.permute.xlu0 0
    %1001 = vperm.xlu0 %1000, %v997
    %v1002 = vpop.permute.xlu0 %1001
    %1005 = vset.pattern.permute.xlu0 0
    %1006 = vperm.xlu0 %1005, %v998
    %v1007 = vpop.permute.xlu0 %1006
    %v1009 = vadd.f32 %v56, %v1002
    %v1010 = vadd.f32 %v57, %v1002
    %v1011 = vadd.f32 %v58, %v1007
    %v1012 = vadd.f32 %v59, %v1007
    %v1013 = vmul.f32 %v1009, 0.01
    %v1014 = vmul.f32 %v1010, 0.01
    %v1015 = vmul.f32 %v1011, 0.01
    %v1016 = vmul.f32 %v1012, 0.01
    %v1017 = vmax.f32 %v1009, %v1013
    %v1018 = vmax.f32 %v1010, %v1014
    %v1019 = vmax.f32 %v1011, %v1015
    %v1020 = vmax.f32 %v1012, %v1016
    %v1021 = vpack.c.bf16 %v1019, %v1017
    %v1022 = vpack.c.bf16 %v1020, %v1018
    %1023 = vmatpush.bf16.msra.mxu0 0
    %1024 = vmatpush.bf16.msra.mxu0 0
    %1025 = vmatpush.bf16.msra.mxu0 0
    %1026 = vmatpush.bf16.msra.mxu0 0
    %1027 = vmatpush.bf16.msra.mxu0 0
    %1028 = vmatpush.bf16.msra.mxu0 0
    %1029 = vmatpush.bf16.msra.mxu0 0
    %1030 = vmatpush.bf16.msra.mxu0 %v1021
    %1031 = vmatmul.bf16.gmra.mxu0 %v93
    %v1032 = vpop.f32.mrf.mxu0
    %v1033 = vadd.f32 0.0, %v1032
    %v1034 = vpop.f32.mrf.mxu0
    %v1035 = vadd.f32 0.0, %v1034
    %1036 = vdwg.mxu0
    %1037 = vmatpush.bf16.msra.mxu0 0
    %1038 = vmatpush.bf16.msra.mxu0 0
    %1039 = vmatpush.bf16.msra.mxu0 0
    %1040 = vmatpush.bf16.msra.mxu0 0
    %1041 = vmatpush.bf16.msra.mxu0 0
    %1042 = vmatpush.bf16.msra.mxu0 0
    %1043 = vmatpush.bf16.msra.mxu0 0
    %1044 = vmatpush.bf16.msra.mxu0 %v1022
    %1045 = vmatmul.bf16.gmra.mxu0 %v93
    %v1046 = vpop.f32.mrf.mxu0
    %v1047 = vadd.f32 0.0, %v1046
    %v1048 = vpop.f32.mrf.mxu0
    %v1049 = vadd.f32 0.0, %v1048
    %1050 = vdwg.mxu0
    %v1051 = vmul.f32 %v1033, 0.01
    %v1052 = vmul.f32 %v1047, 0.01
    %v1053 = vmul.f32 %v1035, 0.01
    %v1054 = vmul.f32 %v1049, 0.01
    %v1055 = vmax.f32 %v1033, %v1051
    %v1056 = vmax.f32 %v1047, %v1052
    %v1057 = vmax.f32 %v1035, %v1053
    %v1058 = vmax.f32 %v1049, %v1054
    %v1059 = vpack.c.bf16 %v1057, %v1055
    %v1060 = vpack.c.bf16 %v1058, %v1056
    %1061 = vmatpush.bf16.msra.mxu0 0
    %1062 = vmatpush.bf16.msra.mxu0 0
    %1063 = vmatpush.bf16.msra.mxu0 0
    %1064 = vmatpush.bf16.msra.mxu0 0
    %1065 = vmatpush.bf16.msra.mxu0 0
    %1066 = vmatpush.bf16.msra.mxu0 0
    %1067 = vmatpush.bf16.msra.mxu0 0
    %1068 = vmatpush.bf16.msra.mxu0 %v1059
    %1069 = vmatmul.bf16.gmra.mxu0 %v139
    %v1070 = vpop.f32.mrf.mxu0
    %v1071 = vadd.f32 0.0, %v1070
    %v1072 = vpop.f32.mrf.mxu0
    %v1073 = vadd.f32 0.0, %v1072
    %1074 = vdwg.mxu0
    %1075 = vmatpush.bf16.msra.mxu0 0
    %1076 = vmatpush.bf16.msra.mxu0 0
    %1077 = vmatpush.bf16.msra.mxu0 0
    %1078 = vmatpush.bf16.msra.mxu0 0
    %1079 = vmatpush.bf16.msra.mxu0 0
    %1080 = vmatpush.bf16.msra.mxu0 0
    %1081 = vmatpush.bf16.msra.mxu0 0
    %1082 = vmatpush.bf16.msra.mxu0 %v1060
    %1083 = vmatmul.bf16.gmra.mxu0 %v139
    %v1084 = vpop.f32.mrf.mxu0
    %v1085 = vadd.f32 0.0, %v1084
    %v1086 = vpop.f32.mrf.mxu0
    %v1087 = vadd.f32 0.0, %v1086
    %1088 = vdwg.mxu0
    %v1089 = vmul.f32 %v1071, 0.01
    %v1090 = vmul.f32 %v1085, 0.01
    %v1091 = vmul.f32 %v1073, 0.01
    %v1092 = vmul.f32 %v1087, 0.01
    %v1093 = vmax.f32 %v1071, %v1089
    %v1094 = vmax.f32 %v1085, %v1090
    %v1095 = vmax.f32 %v1073, %v1091
    %v1096 = vmax.f32 %v1087, %v1092
    %v1097 = vpack.c.bf16 %v1095, %v1093
    %v1098 = vpack.c.bf16 %v1096, %v1094
    %1099 = vmatpush.bf16.msra.mxu0 0
    %1100 = vmatpush.bf16.msra.mxu0 0
    %1101 = vmatpush.bf16.msra.mxu0 0
    %1102 = vmatpush.bf16.msra.mxu0 0
    %1103 = vmatpush.bf16.msra.mxu0 0
    %1104 = vmatpush.bf16.msra.mxu0 0
    %1105 = vmatpush.bf16.msra.mxu0 0
    %1106 = vmatpush.bf16.msra.mxu0 %v1097
    %1107 = vmatmul.bf16.gmra.mxu0 %v185
    %v1108 = vpop.f32.mrf.mxu0
    %v1109 = vadd.f32 0.0, %v1108
    %v1110 = vpop.f32.mrf.mxu0
    %v1111 = vadd.f32 0.0, %v1110
    %1112 = vdwg.mxu0
    %1113 = vmatpush.bf16.msra.mxu0 0
    %1114 = vmatpush.bf16.msra.mxu0 0
    %1115 = vmatpush.bf16.msra.mxu0 0
    %1116 = vmatpush.bf16.msra.mxu0 0
    %1117 = vmatpush.bf16.msra.mxu0 0
    %1118 = vmatpush.bf16.msra.mxu0 0
    %1119 = vmatpush.bf16.msra.mxu0 0
    %1120 = vmatpush.bf16.msra.mxu0 %v1098
    %1121 = vmatmul.bf16.gmra.mxu0 %v185
    %v1122 = vpop.f32.mrf.mxu0
    %v1123 = vadd.f32 0.0, %v1122
    %v1124 = vpop.f32.mrf.mxu0
    %v1125 = vadd.f32 0.0, %v1124
    %1126 = vdwg.mxu0
    %v1127 = vmul.f32 %v1109, 0.01
    %v1128 = vmul.f32 %v1123, 0.01
    %v1129 = vmul.f32 %v1111, 0.01
    %v1130 = vmul.f32 %v1125, 0.01
    %v1131 = vmax.f32 %v1109, %v1127
    %v1132 = vmax.f32 %v1123, %v1128
    %v1133 = vmax.f32 %v1111, %v1129
    %v1134 = vmax.f32 %v1125, %v1130
    %v1135 = vpack.c.bf16 %v1133, %v1131
    %v1136 = vpack.c.bf16 %v1134, %v1132
    %1137 = vmatpush.bf16.msra.mxu0 0
    %1138 = vmatpush.bf16.msra.mxu0 0
    %1139 = vmatpush.bf16.msra.mxu0 0
    %1140 = vmatpush.bf16.msra.mxu0 0
    %1141 = vmatpush.bf16.msra.mxu0 0
    %1142 = vmatpush.bf16.msra.mxu0 0
    %1143 = vmatpush.bf16.msra.mxu0 0
    %1144 = vmatpush.bf16.msra.mxu0 %v1135
    %1145 = vmatmul.bf16.gmra.mxu0 %v231
    %v1146 = vpop.f32.mrf.mxu0
    %v1147 = vadd.f32 0.0, %v1146
    %v1148 = vpop.f32.mrf.mxu0
    %v1149 = vadd.f32 0.0, %v1148
    %1150 = vdwg.mxu0
    %1151 = vmatpush.bf16.msra.mxu0 0
    %1152 = vmatpush.bf16.msra.mxu0 0
    %1153 = vmatpush.bf16.msra.mxu0 0
    %1154 = vmatpush.bf16.msra.mxu0 0
    %1155 = vmatpush.bf16.msra.mxu0 0
    %1156 = vmatpush.bf16.msra.mxu0 0
    %1157 = vmatpush.bf16.msra.mxu0 0
    %1158 = vmatpush.bf16.msra.mxu0 %v1136
    %1159 = vmatmul.bf16.gmra.mxu0 %v231
    %v1160 = vpop.f32.mrf.mxu0
    %v1161 = vadd.f32 0.0, %v1160
    %v1162 = vpop.f32.mrf.mxu0
    %v1163 = vadd.f32 0.0, %v1162
    %1164 = vdwg.mxu0
    %v1165 = vmul.f32 %v1147, 0.01
    %v1166 = vmul.f32 %v1161, 0.01
    %v1167 = vmul.f32 %v1149, 0.01
    %v1168 = vmul.f32 %v1163, 0.01
    %v1169 = vmax.f32 %v1147, %v1165
    %v1170 = vmax.f32 %v1161, %v1166
    %v1171 = vmax.f32 %v1149, %v1167
    %v1172 = vmax.f32 %v1163, %v1168
    %v1173 = vpack.c.bf16 %v1171, %v1169
    %v1174 = vpack.c.bf16 %v1172, %v1170
    %1175 = vmatpush.bf16.msra.mxu0 0
    %1176 = vmatpush.bf16.msra.mxu0 0
    %1177 = vmatpush.bf16.msra.mxu0 0
    %1178 = vmatpush.bf16.msra.mxu0 0
    %1179 = vmatpush.bf16.msra.mxu0 0
    %1180 = vmatpush.bf16.msra.mxu0 0
    %1181 = vmatpush.bf16.msra.mxu0 0
    %1182 = vmatpush.bf16.msra.mxu0 %v1173
    %1183 = vmatmul.bf16.gmra.mxu0 %v277
    %v1184 = vpop.f32.mrf.mxu0
    %v1185 = vadd.f32 0.0, %v1184
    %v1186 = vpop.f32.mrf.mxu0
    %v1187 = vadd.f32 0.0, %v1186
    %1188 = vdwg.mxu0
    %1189 = vmatpush.bf16.msra.mxu0 0
    %1190 = vmatpush.bf16.msra.mxu0 0
    %1191 = vmatpush.bf16.msra.mxu0 0
    %1192 = vmatpush.bf16.msra.mxu0 0
    %1193 = vmatpush.bf16.msra.mxu0 0
    %1194 = vmatpush.bf16.msra.mxu0 0
    %1195 = vmatpush.bf16.msra.mxu0 0
    %1196 = vmatpush.bf16.msra.mxu0 %v1174
    %1197 = vmatmul.bf16.gmra.mxu0 %v277
    %v1198 = vpop.f32.mrf.mxu0
    %v1199 = vadd.f32 0.0, %v1198
    %v1200 = vpop.f32.mrf.mxu0
    %v1201 = vadd.f32 0.0, %v1200
    %1202 = vdwg.mxu0
    %v1203 = vmul.f32 %v1185, 0.01
    %v1204 = vmul.f32 %v1199, 0.01
    %v1205 = vmul.f32 %v1187, 0.01
    %v1206 = vmul.f32 %v1201, 0.01
    %v1207 = vmax.f32 %v1185, %v1203
    %v1208 = vmax.f32 %v1199, %v1204
    %v1209 = vmax.f32 %v1187, %v1205
    %v1210 = vmax.f32 %v1201, %v1206
    %v1211 = vpack.c.bf16 %v1209, %v1207
    %v1212 = vpack.c.bf16 %v1210, %v1208
    %1213 = vmatpush.bf16.msra.mxu0 0
    %1214 = vmatpush.bf16.msra.mxu0 0
    %1215 = vmatpush.bf16.msra.mxu0 0
    %1216 = vmatpush.bf16.msra.mxu0 0
    %1217 = vmatpush.bf16.msra.mxu0 0
    %1218 = vmatpush.bf16.msra.mxu0 0
    %1219 = vmatpush.bf16.msra.mxu0 0
    %1220 = vmatpush.bf16.msra.mxu0 %v1211
    %1221 = vmatmul.bf16.gmra.mxu0 %v323
    %v1222 = vpop.f32.mrf.mxu0
    %v1223 = vadd.f32 0.0, %v1222
    %v1224 = vpop.f32.mrf.mxu0
    %v1225 = vadd.f32 0.0, %v1224
    %1226 = vdwg.mxu0
    %1227 = vmatpush.bf16.msra.mxu0 0
    %1228 = vmatpush.bf16.msra.mxu0 0
    %1229 = vmatpush.bf16.msra.mxu0 0
    %1230 = vmatpush.bf16.msra.mxu0 0
    %1231 = vmatpush.bf16.msra.mxu0 0
    %1232 = vmatpush.bf16.msra.mxu0 0
    %1233 = vmatpush.bf16.msra.mxu0 0
    %1234 = vmatpush.bf16.msra.mxu0 %v1212
    %1235 = vmatmul.bf16.gmra.mxu0 %v323
    %v1236 = vpop.f32.mrf.mxu0
    %v1237 = vadd.f32 0.0, %v1236
    %v1238 = vpop.f32.mrf.mxu0
    %v1239 = vadd.f32 0.0, %v1238
    %1240 = vdwg.mxu0
    %v1241 = vmul.f32 %v1223, 0.01
    %v1242 = vmul.f32 %v1237, 0.01
    %v1243 = vmul.f32 %v1225, 0.01
    %v1244 = vmul.f32 %v1239, 0.01
    %v1245 = vmax.f32 %v1223, %v1241
    %v1246 = vmax.f32 %v1237, %v1242
    %v1247 = vmax.f32 %v1225, %v1243
    %v1248 = vmax.f32 %v1239, %v1244
    %v1249 = vpack.c.bf16 %v1247, %v1245
    %v1250 = vpack.c.bf16 %v1248, %v1246
    %1251 = vmatpush.bf16.msra.mxu0 0
    %1252 = vmatpush.bf16.msra.mxu0 0
    %1253 = vmatpush.bf16.msra.mxu0 0
    %1254 = vmatpush.bf16.msra.mxu0 0
    %1255 = vmatpush.bf16.msra.mxu0 0
    %1256 = vmatpush.bf16.msra.mxu0 0
    %1257 = vmatpush.bf16.msra.mxu0 0
    %1258 = vmatpush.bf16.msra.mxu0 %v1249
    %1259 = vmatmul.bf16.gmra.mxu0 %v369
    %v1260 = vpop.f32.mrf.mxu0
    %v1261 = vadd.f32 0.0, %v1260
    %v1262 = vpop.f32.mrf.mxu0
    %1263 = vdwg.mxu0
    %1264 = vmatpush.bf16.msra.mxu0 0
    %1265 = vmatpush.bf16.msra.mxu0 0
    %1266 = vmatpush.bf16.msra.mxu0 0
    %1267 = vmatpush.bf16.msra.mxu0 0
    %1268 = vmatpush.bf16.msra.mxu0 0
    %1269 = vmatpush.bf16.msra.mxu0 0
    %1270 = vmatpush.bf16.msra.mxu0 0
    %1271 = vmatpush.bf16.msra.mxu0 %v1250
    %1272 = vmatmul.bf16.gmra.mxu0 %v369
    %v1273 = vpop.f32.mrf.mxu0
    %v1274 = vadd.f32 0.0, %v1273
    %v1275 = vpop.f32.mrf.mxu0
    %1276 = vdwg.mxu0
    %v1277 = vtanh.pop %v1261
    %v1278 = vtanh.pop %v1274
    %v1281 = vrot.slane %v1278, 7
    %v1282 = vsel %vm402, %v1277, %v1281
    %s1284 = scalar_lea.vmem [#allocation5], 6
    %1285 = vst.msk [vmem:[%s1284] sm:$0x3] %vm408, %v1282
    %s1286 = scalar_lea.vmem %s1, 32
    %v1287 = vld [vmem:[%s1286] sm:$0xf]
    %v1288 = vld [vmem:[%s1286 + $0x4] sm:$0xf]
    %v1289 = vunpack.c.l.bf16 %v1287
    %v1290 = vunpack.c.l.bf16 %v1288
    %1292 = vset.pattern.permute.xlu0 0
    %1293 = vperm.xlu0 %1292, %v1289
    %v1294 = vpop.permute.xlu0 %1293
    %1297 = vset.pattern.permute.xlu0 0
    %1298 = vperm.xlu0 %1297, %v1290
    %v1299 = vpop.permute.xlu0 %1298
    %v1301 = vadd.f32 %v56, %v1294
    %v1302 = vadd.f32 %v57, %v1294
    %v1303 = vadd.f32 %v58, %v1299
    %v1304 = vadd.f32 %v59, %v1299
    %v1305 = vmul.f32 %v1301, 0.01
    %v1306 = vmul.f32 %v1302, 0.01
    %v1307 = vmul.f32 %v1303, 0.01
    %v1308 = vmul.f32 %v1304, 0.01
    %v1309 = vmax.f32 %v1301, %v1305
    %v1310 = vmax.f32 %v1302, %v1306
    %v1311 = vmax.f32 %v1303, %v1307
    %v1312 = vmax.f32 %v1304, %v1308
    %v1313 = vpack.c.bf16 %v1311, %v1309
    %v1314 = vpack.c.bf16 %v1312, %v1310
    %1315 = vmatpush.bf16.msra.mxu0 0
    %1316 = vmatpush.bf16.msra.mxu0 0
    %1317 = vmatpush.bf16.msra.mxu0 0
    %1318 = vmatpush.bf16.msra.mxu0 0
    %1319 = vmatpush.bf16.msra.mxu0 0
    %1320 = vmatpush.bf16.msra.mxu0 0
    %1321 = vmatpush.bf16.msra.mxu0 0
    %1322 = vmatpush.bf16.msra.mxu0 %v1313
    %1323 = vmatmul.bf16.gmra.mxu0 %v93
    %v1324 = vpop.f32.mrf.mxu0
    %v1325 = vadd.f32 0.0, %v1324
    %v1326 = vpop.f32.mrf.mxu0
    %v1327 = vadd.f32 0.0, %v1326
    %1328 = vdwg.mxu0
    %1329 = vmatpush.bf16.msra.mxu0 0
    %1330 = vmatpush.bf16.msra.mxu0 0
    %1331 = vmatpush.bf16.msra.mxu0 0
    %1332 = vmatpush.bf16.msra.mxu0 0
    %1333 = vmatpush.bf16.msra.mxu0 0
    %1334 = vmatpush.bf16.msra.mxu0 0
    %1335 = vmatpush.bf16.msra.mxu0 0
    %1336 = vmatpush.bf16.msra.mxu0 %v1314
    %1337 = vmatmul.bf16.gmra.mxu0 %v93
    %v1338 = vpop.f32.mrf.mxu0
    %v1339 = vadd.f32 0.0, %v1338
    %v1340 = vpop.f32.mrf.mxu0
    %v1341 = vadd.f32 0.0, %v1340
    %1342 = vdwg.mxu0
    %v1343 = vmul.f32 %v1325, 0.01
    %v1344 = vmul.f32 %v1339, 0.01
    %v1345 = vmul.f32 %v1327, 0.01
    %v1346 = vmul.f32 %v1341, 0.01
    %v1347 = vmax.f32 %v1325, %v1343
    %v1348 = vmax.f32 %v1339, %v1344
    %v1349 = vmax.f32 %v1327, %v1345
    %v1350 = vmax.f32 %v1341, %v1346
    %v1351 = vpack.c.bf16 %v1349, %v1347
    %v1352 = vpack.c.bf16 %v1350, %v1348
    %1353 = vmatpush.bf16.msra.mxu0 0
    %1354 = vmatpush.bf16.msra.mxu0 0
    %1355 = vmatpush.bf16.msra.mxu0 0
    %1356 = vmatpush.bf16.msra.mxu0 0
    %1357 = vmatpush.bf16.msra.mxu0 0
    %1358 = vmatpush.bf16.msra.mxu0 0
    %1359 = vmatpush.bf16.msra.mxu0 0
    %1360 = vmatpush.bf16.msra.mxu0 %v1351
    %1361 = vmatmul.bf16.gmra.mxu0 %v139
    %v1362 = vpop.f32.mrf.mxu0
    %v1363 = vadd.f32 0.0, %v1362
    %v1364 = vpop.f32.mrf.mxu0
    %v1365 = vadd.f32 0.0, %v1364
    %1366 = vdwg.mxu0
    %1367 = vmatpush.bf16.msra.mxu0 0
    %1368 = vmatpush.bf16.msra.mxu0 0
    %1369 = vmatpush.bf16.msra.mxu0 0
    %1370 = vmatpush.bf16.msra.mxu0 0
    %1371 = vmatpush.bf16.msra.mxu0 0
    %1372 = vmatpush.bf16.msra.mxu0 0
    %1373 = vmatpush.bf16.msra.mxu0 0
    %1374 = vmatpush.bf16.msra.mxu0 %v1352
    %1375 = vmatmul.bf16.gmra.mxu0 %v139
    %v1376 = vpop.f32.mrf.mxu0
    %v1377 = vadd.f32 0.0, %v1376
    %v1378 = vpop.f32.mrf.mxu0
    %v1379 = vadd.f32 0.0, %v1378
    %1380 = vdwg.mxu0
    %v1381 = vmul.f32 %v1363, 0.01
    %v1382 = vmul.f32 %v1377, 0.01
    %v1383 = vmul.f32 %v1365, 0.01
    %v1384 = vmul.f32 %v1379, 0.01
    %v1385 = vmax.f32 %v1363, %v1381
    %v1386 = vmax.f32 %v1377, %v1382
    %v1387 = vmax.f32 %v1365, %v1383
    %v1388 = vmax.f32 %v1379, %v1384
    %v1389 = vpack.c.bf16 %v1387, %v1385
    %v1390 = vpack.c.bf16 %v1388, %v1386
    %1391 = vmatpush.bf16.msra.mxu0 0
    %1392 = vmatpush.bf16.msra.mxu0 0
    %1393 = vmatpush.bf16.msra.mxu0 0
    %1394 = vmatpush.bf16.msra.mxu0 0
    %1395 = vmatpush.bf16.msra.mxu0 0
    %1396 = vmatpush.bf16.msra.mxu0 0
    %1397 = vmatpush.bf16.msra.mxu0 0
    %1398 = vmatpush.bf16.msra.mxu0 %v1389
    %1399 = vmatmul.bf16.gmra.mxu0 %v185
    %v1400 = vpop.f32.mrf.mxu0
    %v1401 = vadd.f32 0.0, %v1400
    %v1402 = vpop.f32.mrf.mxu0
    %v1403 = vadd.f32 0.0, %v1402
    %1404 = vdwg.mxu0
    %1405 = vmatpush.bf16.msra.mxu0 0
    %1406 = vmatpush.bf16.msra.mxu0 0
    %1407 = vmatpush.bf16.msra.mxu0 0
    %1408 = vmatpush.bf16.msra.mxu0 0
    %1409 = vmatpush.bf16.msra.mxu0 0
    %1410 = vmatpush.bf16.msra.mxu0 0
    %1411 = vmatpush.bf16.msra.mxu0 0
    %1412 = vmatpush.bf16.msra.mxu0 %v1390
    %1413 = vmatmul.bf16.gmra.mxu0 %v185
    %v1414 = vpop.f32.mrf.mxu0
    %v1415 = vadd.f32 0.0, %v1414
    %v1416 = vpop.f32.mrf.mxu0
    %v1417 = vadd.f32 0.0, %v1416
    %1418 = vdwg.mxu0
    %v1419 = vmul.f32 %v1401, 0.01
    %v1420 = vmul.f32 %v1415, 0.01
    %v1421 = vmul.f32 %v1403, 0.01
    %v1422 = vmul.f32 %v1417, 0.01
    %v1423 = vmax.f32 %v1401, %v1419
    %v1424 = vmax.f32 %v1415, %v1420
    %v1425 = vmax.f32 %v1403, %v1421
    %v1426 = vmax.f32 %v1417, %v1422
    %v1427 = vpack.c.bf16 %v1425, %v1423
    %v1428 = vpack.c.bf16 %v1426, %v1424
    %1429 = vmatpush.bf16.msra.mxu0 0
    %1430 = vmatpush.bf16.msra.mxu0 0
    %1431 = vmatpush.bf16.msra.mxu0 0
    %1432 = vmatpush.bf16.msra.mxu0 0
    %1433 = vmatpush.bf16.msra.mxu0 0
    %1434 = vmatpush.bf16.msra.mxu0 0
    %1435 = vmatpush.bf16.msra.mxu0 0
    %1436 = vmatpush.bf16.msra.mxu0 %v1427
    %1437 = vmatmul.bf16.gmra.mxu0 %v231
    %v1438 = vpop.f32.mrf.mxu0
    %v1439 = vadd.f32 0.0, %v1438
    %v1440 = vpop.f32.mrf.mxu0
    %v1441 = vadd.f32 0.0, %v1440
    %1442 = vdwg.mxu0
    %1443 = vmatpush.bf16.msra.mxu0 0
    %1444 = vmatpush.bf16.msra.mxu0 0
    %1445 = vmatpush.bf16.msra.mxu0 0
    %1446 = vmatpush.bf16.msra.mxu0 0
    %1447 = vmatpush.bf16.msra.mxu0 0
    %1448 = vmatpush.bf16.msra.mxu0 0
    %1449 = vmatpush.bf16.msra.mxu0 0
    %1450 = vmatpush.bf16.msra.mxu0 %v1428
    %1451 = vmatmul.bf16.gmra.mxu0 %v231
    %v1452 = vpop.f32.mrf.mxu0
    %v1453 = vadd.f32 0.0, %v1452
    %v1454 = vpop.f32.mrf.mxu0
    %v1455 = vadd.f32 0.0, %v1454
    %1456 = vdwg.mxu0
    %v1457 = vmul.f32 %v1439, 0.01
    %v1458 = vmul.f32 %v1453, 0.01
    %v1459 = vmul.f32 %v1441, 0.01
    %v1460 = vmul.f32 %v1455, 0.01
    %v1461 = vmax.f32 %v1439, %v1457
    %v1462 = vmax.f32 %v1453, %v1458
    %v1463 = vmax.f32 %v1441, %v1459
    %v1464 = vmax.f32 %v1455, %v1460
    %v1465 = vpack.c.bf16 %v1463, %v1461
    %v1466 = vpack.c.bf16 %v1464, %v1462
    %1467 = vmatpush.bf16.msra.mxu0 0
    %1468 = vmatpush.bf16.msra.mxu0 0
    %1469 = vmatpush.bf16.msra.mxu0 0
    %1470 = vmatpush.bf16.msra.mxu0 0
    %1471 = vmatpush.bf16.msra.mxu0 0
    %1472 = vmatpush.bf16.msra.mxu0 0
    %1473 = vmatpush.bf16.msra.mxu0 0
    %1474 = vmatpush.bf16.msra.mxu0 %v1465
    %1475 = vmatmul.bf16.gmra.mxu0 %v277
    %v1476 = vpop.f32.mrf.mxu0
    %v1477 = vadd.f32 0.0, %v1476
    %v1478 = vpop.f32.mrf.mxu0
    %v1479 = vadd.f32 0.0, %v1478
    %1480 = vdwg.mxu0
    %1481 = vmatpush.bf16.msra.mxu0 0
    %1482 = vmatpush.bf16.msra.mxu0 0
    %1483 = vmatpush.bf16.msra.mxu0 0
    %1484 = vmatpush.bf16.msra.mxu0 0
    %1485 = vmatpush.bf16.msra.mxu0 0
    %1486 = vmatpush.bf16.msra.mxu0 0
    %1487 = vmatpush.bf16.msra.mxu0 0
    %1488 = vmatpush.bf16.msra.mxu0 %v1466
    %1489 = vmatmul.bf16.gmra.mxu0 %v277
    %v1490 = vpop.f32.mrf.mxu0
    %v1491 = vadd.f32 0.0, %v1490
    %v1492 = vpop.f32.mrf.mxu0
    %v1493 = vadd.f32 0.0, %v1492
    %1494 = vdwg.mxu0
    %v1495 = vmul.f32 %v1477, 0.01
    %v1496 = vmul.f32 %v1491, 0.01
    %v1497 = vmul.f32 %v1479, 0.01
    %v1498 = vmul.f32 %v1493, 0.01
    %v1499 = vmax.f32 %v1477, %v1495
    %v1500 = vmax.f32 %v1491, %v1496
    %v1501 = vmax.f32 %v1479, %v1497
    %v1502 = vmax.f32 %v1493, %v1498
    %v1503 = vpack.c.bf16 %v1501, %v1499
    %v1504 = vpack.c.bf16 %v1502, %v1500
    %1505 = vmatpush.bf16.msra.mxu0 0
    %1506 = vmatpush.bf16.msra.mxu0 0
    %1507 = vmatpush.bf16.msra.mxu0 0
    %1508 = vmatpush.bf16.msra.mxu0 0
    %1509 = vmatpush.bf16.msra.mxu0 0
    %1510 = vmatpush.bf16.msra.mxu0 0
    %1511 = vmatpush.bf16.msra.mxu0 0
    %1512 = vmatpush.bf16.msra.mxu0 %v1503
    %1513 = vmatmul.bf16.gmra.mxu0 %v323
    %v1514 = vpop.f32.mrf.mxu0
    %v1515 = vadd.f32 0.0, %v1514
    %v1516 = vpop.f32.mrf.mxu0
    %v1517 = vadd.f32 0.0, %v1516
    %1518 = vdwg.mxu0
    %1519 = vmatpush.bf16.msra.mxu0 0
    %1520 = vmatpush.bf16.msra.mxu0 0
    %1521 = vmatpush.bf16.msra.mxu0 0
    %1522 = vmatpush.bf16.msra.mxu0 0
    %1523 = vmatpush.bf16.msra.mxu0 0
    %1524 = vmatpush.bf16.msra.mxu0 0
    %1525 = vmatpush.bf16.msra.mxu0 0
    %1526 = vmatpush.bf16.msra.mxu0 %v1504
    %1527 = vmatmul.bf16.gmra.mxu0 %v323
    %v1528 = vpop.f32.mrf.mxu0
    %v1529 = vadd.f32 0.0, %v1528
    %v1530 = vpop.f32.mrf.mxu0
    %v1531 = vadd.f32 0.0, %v1530
    %1532 = vdwg.mxu0
    %v1533 = vmul.f32 %v1515, 0.01
    %v1534 = vmul.f32 %v1529, 0.01
    %v1535 = vmul.f32 %v1517, 0.01
    %v1536 = vmul.f32 %v1531, 0.01
    %v1537 = vmax.f32 %v1515, %v1533
    %v1538 = vmax.f32 %v1529, %v1534
    %v1539 = vmax.f32 %v1517, %v1535
    %v1540 = vmax.f32 %v1531, %v1536
    %v1541 = vpack.c.bf16 %v1539, %v1537
    %v1542 = vpack.c.bf16 %v1540, %v1538
    %1543 = vmatpush.bf16.msra.mxu0 0
    %1544 = vmatpush.bf16.msra.mxu0 0
    %1545 = vmatpush.bf16.msra.mxu0 0
    %1546 = vmatpush.bf16.msra.mxu0 0
    %1547 = vmatpush.bf16.msra.mxu0 0
    %1548 = vmatpush.bf16.msra.mxu0 0
    %1549 = vmatpush.bf16.msra.mxu0 0
    %1550 = vmatpush.bf16.msra.mxu0 %v1541
    %1551 = vmatmul.bf16.gmra.mxu0 %v369
    %v1552 = vpop.f32.mrf.mxu0
    %v1553 = vadd.f32 0.0, %v1552
    %v1554 = vpop.f32.mrf.mxu0
    %1555 = vdwg.mxu0
    %1556 = vmatpush.bf16.msra.mxu0 0
    %1557 = vmatpush.bf16.msra.mxu0 0
    %1558 = vmatpush.bf16.msra.mxu0 0
    %1559 = vmatpush.bf16.msra.mxu0 0
    %1560 = vmatpush.bf16.msra.mxu0 0
    %1561 = vmatpush.bf16.msra.mxu0 0
    %1562 = vmatpush.bf16.msra.mxu0 0
    %1563 = vmatpush.bf16.msra.mxu0 %v1542
    %1564 = vmatmul.bf16.gmra.mxu0 %v369
    %v1565 = vpop.f32.mrf.mxu0
    %v1566 = vadd.f32 0.0, %v1565
    %v1567 = vpop.f32.mrf.mxu0
    %1568 = vdwg.mxu0
    %v1569 = vtanh.pop %v1553
    %v1570 = vtanh.pop %v1566
    %v1573 = vrot.slane %v1570, 7
    %v1574 = vsel %vm402, %v1569, %v1573
    %s1576 = scalar_lea.vmem [#allocation5], 8
    %1577 = vst.msk [vmem:[%s1576] sm:$0x3] %vm408, %v1574
    %s1578 = scalar_lea.vmem %s1, 40
    %v1579 = vld [vmem:[%s1578] sm:$0xf]
    %v1580 = vld [vmem:[%s1578 + $0x4] sm:$0xf]
    %v1581 = vunpack.c.l.bf16 %v1579
    %v1582 = vunpack.c.l.bf16 %v1580
    %1584 = vset.pattern.permute.xlu0 0
    %1585 = vperm.xlu0 %1584, %v1581
    %v1586 = vpop.permute.xlu0 %1585
    %1589 = vset.pattern.permute.xlu0 0
    %1590 = vperm.xlu0 %1589, %v1582
    %v1591 = vpop.permute.xlu0 %1590
    %v1593 = vadd.f32 %v56, %v1586
    %v1594 = vadd.f32 %v57, %v1586
    %v1595 = vadd.f32 %v58, %v1591
    %v1596 = vadd.f32 %v59, %v1591
    %v1597 = vmul.f32 %v1593, 0.01
    %v1598 = vmul.f32 %v1594, 0.01
    %v1599 = vmul.f32 %v1595, 0.01
    %v1600 = vmul.f32 %v1596, 0.01
    %v1601 = vmax.f32 %v1593, %v1597
    %v1602 = vmax.f32 %v1594, %v1598
    %v1603 = vmax.f32 %v1595, %v1599
    %v1604 = vmax.f32 %v1596, %v1600
    %v1605 = vpack.c.bf16 %v1603, %v1601
    %v1606 = vpack.c.bf16 %v1604, %v1602
    %1607 = vmatpush.bf16.msra.mxu0 0
    %1608 = vmatpush.bf16.msra.mxu0 0
    %1609 = vmatpush.bf16.msra.mxu0 0
    %1610 = vmatpush.bf16.msra.mxu0 0
    %1611 = vmatpush.bf16.msra.mxu0 0
    %1612 = vmatpush.bf16.msra.mxu0 0
    %1613 = vmatpush.bf16.msra.mxu0 0
    %1614 = vmatpush.bf16.msra.mxu0 %v1605
    %1615 = vmatmul.bf16.gmra.mxu0 %v93
    %v1616 = vpop.f32.mrf.mxu0
    %v1617 = vadd.f32 0.0, %v1616
    %v1618 = vpop.f32.mrf.mxu0
    %v1619 = vadd.f32 0.0, %v1618
    %1620 = vdwg.mxu0
    %1621 = vmatpush.bf16.msra.mxu0 0
    %1622 = vmatpush.bf16.msra.mxu0 0
    %1623 = vmatpush.bf16.msra.mxu0 0
    %1624 = vmatpush.bf16.msra.mxu0 0
    %1625 = vmatpush.bf16.msra.mxu0 0
    %1626 = vmatpush.bf16.msra.mxu0 0
    %1627 = vmatpush.bf16.msra.mxu0 0
    %1628 = vmatpush.bf16.msra.mxu0 %v1606
    %1629 = vmatmul.bf16.gmra.mxu0 %v93
    %v1630 = vpop.f32.mrf.mxu0
    %v1631 = vadd.f32 0.0, %v1630
    %v1632 = vpop.f32.mrf.mxu0
    %v1633 = vadd.f32 0.0, %v1632
    %1634 = vdwg.mxu0
    %v1635 = vmul.f32 %v1617, 0.01
    %v1636 = vmul.f32 %v1631, 0.01
    %v1637 = vmul.f32 %v1619, 0.01
    %v1638 = vmul.f32 %v1633, 0.01
    %v1639 = vmax.f32 %v1617, %v1635
    %v1640 = vmax.f32 %v1631, %v1636
    %v1641 = vmax.f32 %v1619, %v1637
    %v1642 = vmax.f32 %v1633, %v1638
    %v1643 = vpack.c.bf16 %v1641, %v1639
    %v1644 = vpack.c.bf16 %v1642, %v1640
    %1645 = vmatpush.bf16.msra.mxu0 0
    %1646 = vmatpush.bf16.msra.mxu0 0
    %1647 = vmatpush.bf16.msra.mxu0 0
    %1648 = vmatpush.bf16.msra.mxu0 0
    %1649 = vmatpush.bf16.msra.mxu0 0
    %1650 = vmatpush.bf16.msra.mxu0 0
    %1651 = vmatpush.bf16.msra.mxu0 0
    %1652 = vmatpush.bf16.msra.mxu0 %v1643
    %1653 = vmatmul.bf16.gmra.mxu0 %v139
    %v1654 = vpop.f32.mrf.mxu0
    %v1655 = vadd.f32 0.0, %v1654
    %v1656 = vpop.f32.mrf.mxu0
    %v1657 = vadd.f32 0.0, %v1656
    %1658 = vdwg.mxu0
    %1659 = vmatpush.bf16.msra.mxu0 0
    %1660 = vmatpush.bf16.msra.mxu0 0
    %1661 = vmatpush.bf16.msra.mxu0 0
    %1662 = vmatpush.bf16.msra.mxu0 0
    %1663 = vmatpush.bf16.msra.mxu0 0
    %1664 = vmatpush.bf16.msra.mxu0 0
    %1665 = vmatpush.bf16.msra.mxu0 0
    %1666 = vmatpush.bf16.msra.mxu0 %v1644
    %1667 = vmatmul.bf16.gmra.mxu0 %v139
    %v1668 = vpop.f32.mrf.mxu0
    %v1669 = vadd.f32 0.0, %v1668
    %v1670 = vpop.f32.mrf.mxu0
    %v1671 = vadd.f32 0.0, %v1670
    %1672 = vdwg.mxu0
    %v1673 = vmul.f32 %v1655, 0.01
    %v1674 = vmul.f32 %v1669, 0.01
    %v1675 = vmul.f32 %v1657, 0.01
    %v1676 = vmul.f32 %v1671, 0.01
    %v1677 = vmax.f32 %v1655, %v1673
    %v1678 = vmax.f32 %v1669, %v1674
    %v1679 = vmax.f32 %v1657, %v1675
    %v1680 = vmax.f32 %v1671, %v1676
    %v1681 = vpack.c.bf16 %v1679, %v1677
    %v1682 = vpack.c.bf16 %v1680, %v1678
    %1683 = vmatpush.bf16.msra.mxu0 0
    %1684 = vmatpush.bf16.msra.mxu0 0
    %1685 = vmatpush.bf16.msra.mxu0 0
    %1686 = vmatpush.bf16.msra.mxu0 0
    %1687 = vmatpush.bf16.msra.mxu0 0
    %1688 = vmatpush.bf16.msra.mxu0 0
    %1689 = vmatpush.bf16.msra.mxu0 0
    %1690 = vmatpush.bf16.msra.mxu0 %v1681
    %1691 = vmatmul.bf16.gmra.mxu0 %v185
    %v1692 = vpop.f32.mrf.mxu0
    %v1693 = vadd.f32 0.0, %v1692
    %v1694 = vpop.f32.mrf.mxu0
    %v1695 = vadd.f32 0.0, %v1694
    %1696 = vdwg.mxu0
    %1697 = vmatpush.bf16.msra.mxu0 0
    %1698 = vmatpush.bf16.msra.mxu0 0
    %1699 = vmatpush.bf16.msra.mxu0 0
    %1700 = vmatpush.bf16.msra.mxu0 0
    %1701 = vmatpush.bf16.msra.mxu0 0
    %1702 = vmatpush.bf16.msra.mxu0 0
    %1703 = vmatpush.bf16.msra.mxu0 0
    %1704 = vmatpush.bf16.msra.mxu0 %v1682
    %1705 = vmatmul.bf16.gmra.mxu0 %v185
    %v1706 = vpop.f32.mrf.mxu0
    %v1707 = vadd.f32 0.0, %v1706
    %v1708 = vpop.f32.mrf.mxu0
    %v1709 = vadd.f32 0.0, %v1708
    %1710 = vdwg.mxu0
    %v1711 = vmul.f32 %v1693, 0.01
    %v1712 = vmul.f32 %v1707, 0.01
    %v1713 = vmul.f32 %v1695, 0.01
    %v1714 = vmul.f32 %v1709, 0.01
    %v1715 = vmax.f32 %v1693, %v1711
    %v1716 = vmax.f32 %v1707, %v1712
    %v1717 = vmax.f32 %v1695, %v1713
    %v1718 = vmax.f32 %v1709, %v1714
    %v1719 = vpack.c.bf16 %v1717, %v1715
    %v1720 = vpack.c.bf16 %v1718, %v1716
    %1721 = vmatpush.bf16.msra.mxu0 0
    %1722 = vmatpush.bf16.msra.mxu0 0
    %1723 = vmatpush.bf16.msra.mxu0 0
    %1724 = vmatpush.bf16.msra.mxu0 0
    %1725 = vmatpush.bf16.msra.mxu0 0
    %1726 = vmatpush.bf16.msra.mxu0 0
    %1727 = vmatpush.bf16.msra.mxu0 0
    %1728 = vmatpush.bf16.msra.mxu0 %v1719
    %1729 = vmatmul.bf16.gmra.mxu0 %v231
    %v1730 = vpop.f32.mrf.mxu0
    %v1731 = vadd.f32 0.0, %v1730
    %v1732 = vpop.f32.mrf.mxu0
    %v1733 = vadd.f32 0.0, %v1732
    %1734 = vdwg.mxu0
    %1735 = vmatpush.bf16.msra.mxu0 0
    %1736 = vmatpush.bf16.msra.mxu0 0
    %1737 = vmatpush.bf16.msra.mxu0 0
    %1738 = vmatpush.bf16.msra.mxu0 0
    %1739 = vmatpush.bf16.msra.mxu0 0
    %1740 = vmatpush.bf16.msra.mxu0 0
    %1741 = vmatpush.bf16.msra.mxu0 0
    %1742 = vmatpush.bf16.msra.mxu0 %v1720
    %1743 = vmatmul.bf16.gmra.mxu0 %v231
    %v1744 = vpop.f32.mrf.mxu0
    %v1745 = vadd.f32 0.0, %v1744
    %v1746 = vpop.f32.mrf.mxu0
    %v1747 = vadd.f32 0.0, %v1746
    %1748 = vdwg.mxu0
    %v1749 = vmul.f32 %v1731, 0.01
    %v1750 = vmul.f32 %v1745, 0.01
    %v1751 = vmul.f32 %v1733, 0.01
    %v1752 = vmul.f32 %v1747, 0.01
    %v1753 = vmax.f32 %v1731, %v1749
    %v1754 = vmax.f32 %v1745, %v1750
    %v1755 = vmax.f32 %v1733, %v1751
    %v1756 = vmax.f32 %v1747, %v1752
    %v1757 = vpack.c.bf16 %v1755, %v1753
    %v1758 = vpack.c.bf16 %v1756, %v1754
    %1759 = vmatpush.bf16.msra.mxu0 0
    %1760 = vmatpush.bf16.msra.mxu0 0
    %1761 = vmatpush.bf16.msra.mxu0 0
    %1762 = vmatpush.bf16.msra.mxu0 0
    %1763 = vmatpush.bf16.msra.mxu0 0
    %1764 = vmatpush.bf16.msra.mxu0 0
    %1765 = vmatpush.bf16.msra.mxu0 0
    %1766 = vmatpush.bf16.msra.mxu0 %v1757
    %1767 = vmatmul.bf16.gmra.mxu0 %v277
    %v1768 = vpop.f32.mrf.mxu0
    %v1769 = vadd.f32 0.0, %v1768
    %v1770 = vpop.f32.mrf.mxu0
    %v1771 = vadd.f32 0.0, %v1770
    %1772 = vdwg.mxu0
    %1773 = vmatpush.bf16.msra.mxu0 0
    %1774 = vmatpush.bf16.msra.mxu0 0
    %1775 = vmatpush.bf16.msra.mxu0 0
    %1776 = vmatpush.bf16.msra.mxu0 0
    %1777 = vmatpush.bf16.msra.mxu0 0
    %1778 = vmatpush.bf16.msra.mxu0 0
    %1779 = vmatpush.bf16.msra.mxu0 0
    %1780 = vmatpush.bf16.msra.mxu0 %v1758
    %1781 = vmatmul.bf16.gmra.mxu0 %v277
    %v1782 = vpop.f32.mrf.mxu0
    %v1783 = vadd.f32 0.0, %v1782
    %v1784 = vpop.f32.mrf.mxu0
    %v1785 = vadd.f32 0.0, %v1784
    %1786 = vdwg.mxu0
    %v1787 = vmul.f32 %v1769, 0.01
    %v1788 = vmul.f32 %v1783, 0.01
    %v1789 = vmul.f32 %v1771, 0.01
    %v1790 = vmul.f32 %v1785, 0.01
    %v1791 = vmax.f32 %v1769, %v1787
    %v1792 = vmax.f32 %v1783, %v1788
    %v1793 = vmax.f32 %v1771, %v1789
    %v1794 = vmax.f32 %v1785, %v1790
    %v1795 = vpack.c.bf16 %v1793, %v1791
    %v1796 = vpack.c.bf16 %v1794, %v1792
    %1797 = vmatpush.bf16.msra.mxu0 0
    %1798 = vmatpush.bf16.msra.mxu0 0
    %1799 = vmatpush.bf16.msra.mxu0 0
    %1800 = vmatpush.bf16.msra.mxu0 0
    %1801 = vmatpush.bf16.msra.mxu0 0
    %1802 = vmatpush.bf16.msra.mxu0 0
    %1803 = vmatpush.bf16.msra.mxu0 0
    %1804 = vmatpush.bf16.msra.mxu0 %v1795
    %1805 = vmatmul.bf16.gmra.mxu0 %v323
    %v1806 = vpop.f32.mrf.mxu0
    %v1807 = vadd.f32 0.0, %v1806
    %v1808 = vpop.f32.mrf.mxu0
    %v1809 = vadd.f32 0.0, %v1808
    %1810 = vdwg.mxu0
    %1811 = vmatpush.bf16.msra.mxu0 0
    %1812 = vmatpush.bf16.msra.mxu0 0
    %1813 = vmatpush.bf16.msra.mxu0 0
    %1814 = vmatpush.bf16.msra.mxu0 0
    %1815 = vmatpush.bf16.msra.mxu0 0
    %1816 = vmatpush.bf16.msra.mxu0 0
    %1817 = vmatpush.bf16.msra.mxu0 0
    %1818 = vmatpush.bf16.msra.mxu0 %v1796
    %1819 = vmatmul.bf16.gmra.mxu0 %v323
    %v1820 = vpop.f32.mrf.mxu0
    %v1821 = vadd.f32 0.0, %v1820
    %v1822 = vpop.f32.mrf.mxu0
    %v1823 = vadd.f32 0.0, %v1822
    %1824 = vdwg.mxu0
    %v1825 = vmul.f32 %v1807, 0.01
    %v1826 = vmul.f32 %v1821, 0.01
    %v1827 = vmul.f32 %v1809, 0.01
    %v1828 = vmul.f32 %v1823, 0.01
    %v1829 = vmax.f32 %v1807, %v1825
    %v1830 = vmax.f32 %v1821, %v1826
    %v1831 = vmax.f32 %v1809, %v1827
    %v1832 = vmax.f32 %v1823, %v1828
    %v1833 = vpack.c.bf16 %v1831, %v1829
    %v1834 = vpack.c.bf16 %v1832, %v1830
    %1835 = vmatpush.bf16.msra.mxu0 0
    %1836 = vmatpush.bf16.msra.mxu0 0
    %1837 = vmatpush.bf16.msra.mxu0 0
    %1838 = vmatpush.bf16.msra.mxu0 0
    %1839 = vmatpush.bf16.msra.mxu0 0
    %1840 = vmatpush.bf16.msra.mxu0 0
    %1841 = vmatpush.bf16.msra.mxu0 0
    %1842 = vmatpush.bf16.msra.mxu0 %v1833
    %1843 = vmatmul.bf16.gmra.mxu0 %v369
    %v1844 = vpop.f32.mrf.mxu0
    %v1845 = vadd.f32 0.0, %v1844
    %v1846 = vpop.f32.mrf.mxu0
    %1847 = vdwg.mxu0
    %1848 = vmatpush.bf16.msra.mxu0 0
    %1849 = vmatpush.bf16.msra.mxu0 0
    %1850 = vmatpush.bf16.msra.mxu0 0
    %1851 = vmatpush.bf16.msra.mxu0 0
    %1852 = vmatpush.bf16.msra.mxu0 0
    %1853 = vmatpush.bf16.msra.mxu0 0
    %1854 = vmatpush.bf16.msra.mxu0 0
    %1855 = vmatpush.bf16.msra.mxu0 %v1834
    %1856 = vmatmul.bf16.gmra.mxu0 %v369
    %v1857 = vpop.f32.mrf.mxu0
    %v1858 = vadd.f32 0.0, %v1857
    %v1859 = vpop.f32.mrf.mxu0
    %1860 = vdwg.mxu0
    %v1861 = vtanh.pop %v1845
    %v1862 = vtanh.pop %v1858
    %v1865 = vrot.slane %v1862, 7
    %v1866 = vsel %vm402, %v1861, %v1865
    %s1868 = scalar_lea.vmem [#allocation5], 10
    %1869 = vst.msk [vmem:[%s1868] sm:$0x3] %vm408, %v1866
    %s1870 = scalar_lea.vmem %s1, 48
    %v1871 = vld [vmem:[%s1870] sm:$0xf]
    %v1872 = vld [vmem:[%s1870 + $0x4] sm:$0xf]
    %v1873 = vunpack.c.l.bf16 %v1871
    %v1874 = vunpack.c.l.bf16 %v1872
    %1876 = vset.pattern.permute.xlu0 0
    %1877 = vperm.xlu0 %1876, %v1873
    %v1878 = vpop.permute.xlu0 %1877
    %1881 = vset.pattern.permute.xlu0 0
    %1882 = vperm.xlu0 %1881, %v1874
    %v1883 = vpop.permute.xlu0 %1882
    %v1885 = vadd.f32 %v56, %v1878
    %v1886 = vadd.f32 %v57, %v1878
    %v1887 = vadd.f32 %v58, %v1883
    %v1888 = vadd.f32 %v59, %v1883
    %v1889 = vmul.f32 %v1885, 0.01
    %v1890 = vmul.f32 %v1886, 0.01
    %v1891 = vmul.f32 %v1887, 0.01
    %v1892 = vmul.f32 %v1888, 0.01
    %v1893 = vmax.f32 %v1885, %v1889
    %v1894 = vmax.f32 %v1886, %v1890
    %v1895 = vmax.f32 %v1887, %v1891
    %v1896 = vmax.f32 %v1888, %v1892
    %v1897 = vpack.c.bf16 %v1895, %v1893
    %v1898 = vpack.c.bf16 %v1896, %v1894
    %1899 = vmatpush.bf16.msra.mxu0 0
    %1900 = vmatpush.bf16.msra.mxu0 0
    %1901 = vmatpush.bf16.msra.mxu0 0
    %1902 = vmatpush.bf16.msra.mxu0 0
    %1903 = vmatpush.bf16.msra.mxu0 0
    %1904 = vmatpush.bf16.msra.mxu0 0
    %1905 = vmatpush.bf16.msra.mxu0 0
    %1906 = vmatpush.bf16.msra.mxu0 %v1897
    %1907 = vmatmul.bf16.gmra.mxu0 %v93
    %v1908 = vpop.f32.mrf.mxu0
    %v1909 = vadd.f32 0.0, %v1908
    %v1910 = vpop.f32.mrf.mxu0
    %v1911 = vadd.f32 0.0, %v1910
    %1912 = vdwg.mxu0
    %1913 = vmatpush.bf16.msra.mxu0 0
    %1914 = vmatpush.bf16.msra.mxu0 0
    %1915 = vmatpush.bf16.msra.mxu0 0
    %1916 = vmatpush.bf16.msra.mxu0 0
    %1917 = vmatpush.bf16.msra.mxu0 0
    %1918 = vmatpush.bf16.msra.mxu0 0
    %1919 = vmatpush.bf16.msra.mxu0 0
    %1920 = vmatpush.bf16.msra.mxu0 %v1898
    %1921 = vmatmul.bf16.gmra.mxu0 %v93
    %v1922 = vpop.f32.mrf.mxu0
    %v1923 = vadd.f32 0.0, %v1922
    %v1924 = vpop.f32.mrf.mxu0
    %v1925 = vadd.f32 0.0, %v1924
    %1926 = vdwg.mxu0
    %v1927 = vmul.f32 %v1909, 0.01
    %v1928 = vmul.f32 %v1923, 0.01
    %v1929 = vmul.f32 %v1911, 0.01
    %v1930 = vmul.f32 %v1925, 0.01
    %v1931 = vmax.f32 %v1909, %v1927
    %v1932 = vmax.f32 %v1923, %v1928
    %v1933 = vmax.f32 %v1911, %v1929
    %v1934 = vmax.f32 %v1925, %v1930
    %v1935 = vpack.c.bf16 %v1933, %v1931
    %v1936 = vpack.c.bf16 %v1934, %v1932
    %1937 = vmatpush.bf16.msra.mxu0 0
    %1938 = vmatpush.bf16.msra.mxu0 0
    %1939 = vmatpush.bf16.msra.mxu0 0
    %1940 = vmatpush.bf16.msra.mxu0 0
    %1941 = vmatpush.bf16.msra.mxu0 0
    %1942 = vmatpush.bf16.msra.mxu0 0
    %1943 = vmatpush.bf16.msra.mxu0 0
    %1944 = vmatpush.bf16.msra.mxu0 %v1935
    %1945 = vmatmul.bf16.gmra.mxu0 %v139
    %v1946 = vpop.f32.mrf.mxu0
    %v1947 = vadd.f32 0.0, %v1946
    %v1948 = vpop.f32.mrf.mxu0
    %v1949 = vadd.f32 0.0, %v1948
    %1950 = vdwg.mxu0
    %1951 = vmatpush.bf16.msra.mxu0 0
    %1952 = vmatpush.bf16.msra.mxu0 0
    %1953 = vmatpush.bf16.msra.mxu0 0
    %1954 = vmatpush.bf16.msra.mxu0 0
    %1955 = vmatpush.bf16.msra.mxu0 0
    %1956 = vmatpush.bf16.msra.mxu0 0
    %1957 = vmatpush.bf16.msra.mxu0 0
    %1958 = vmatpush.bf16.msra.mxu0 %v1936
    %1959 = vmatmul.bf16.gmra.mxu0 %v139
    %v1960 = vpop.f32.mrf.mxu0
    %v1961 = vadd.f32 0.0, %v1960
    %v1962 = vpop.f32.mrf.mxu0
    %v1963 = vadd.f32 0.0, %v1962
    %1964 = vdwg.mxu0
    %v1965 = vmul.f32 %v1947, 0.01
    %v1966 = vmul.f32 %v1961, 0.01
    %v1967 = vmul.f32 %v1949, 0.01
    %v1968 = vmul.f32 %v1963, 0.01
    %v1969 = vmax.f32 %v1947, %v1965
    %v1970 = vmax.f32 %v1961, %v1966
    %v1971 = vmax.f32 %v1949, %v1967
    %v1972 = vmax.f32 %v1963, %v1968
    %v1973 = vpack.c.bf16 %v1971, %v1969
    %v1974 = vpack.c.bf16 %v1972, %v1970
    %1975 = vmatpush.bf16.msra.mxu0 0
    %1976 = vmatpush.bf16.msra.mxu0 0
    %1977 = vmatpush.bf16.msra.mxu0 0
    %1978 = vmatpush.bf16.msra.mxu0 0
    %1979 = vmatpush.bf16.msra.mxu0 0
    %1980 = vmatpush.bf16.msra.mxu0 0
    %1981 = vmatpush.bf16.msra.mxu0 0
    %1982 = vmatpush.bf16.msra.mxu0 %v1973
    %1983 = vmatmul.bf16.gmra.mxu0 %v185
    %v1984 = vpop.f32.mrf.mxu0
    %v1985 = vadd.f32 0.0, %v1984
    %v1986 = vpop.f32.mrf.mxu0
    %v1987 = vadd.f32 0.0, %v1986
    %1988 = vdwg.mxu0
    %1989 = vmatpush.bf16.msra.mxu0 0
    %1990 = vmatpush.bf16.msra.mxu0 0
    %1991 = vmatpush.bf16.msra.mxu0 0
    %1992 = vmatpush.bf16.msra.mxu0 0
    %1993 = vmatpush.bf16.msra.mxu0 0
    %1994 = vmatpush.bf16.msra.mxu0 0
    %1995 = vmatpush.bf16.msra.mxu0 0
    %1996 = vmatpush.bf16.msra.mxu0 %v1974
    %1997 = vmatmul.bf16.gmra.mxu0 %v185
    %v1998 = vpop.f32.mrf.mxu0
    %v1999 = vadd.f32 0.0, %v1998
    %v2000 = vpop.f32.mrf.mxu0
    %v2001 = vadd.f32 0.0, %v2000
    %2002 = vdwg.mxu0
    %v2003 = vmul.f32 %v1985, 0.01
    %v2004 = vmul.f32 %v1999, 0.01
    %v2005 = vmul.f32 %v1987, 0.01
    %v2006 = vmul.f32 %v2001, 0.01
    %v2007 = vmax.f32 %v1985, %v2003
    %v2008 = vmax.f32 %v1999, %v2004
    %v2009 = vmax.f32 %v1987, %v2005
    %v2010 = vmax.f32 %v2001, %v2006
    %v2011 = vpack.c.bf16 %v2009, %v2007
    %v2012 = vpack.c.bf16 %v2010, %v2008
    %2013 = vmatpush.bf16.msra.mxu0 0
    %2014 = vmatpush.bf16.msra.mxu0 0
    %2015 = vmatpush.bf16.msra.mxu0 0
    %2016 = vmatpush.bf16.msra.mxu0 0
    %2017 = vmatpush.bf16.msra.mxu0 0
    %2018 = vmatpush.bf16.msra.mxu0 0
    %2019 = vmatpush.bf16.msra.mxu0 0
    %2020 = vmatpush.bf16.msra.mxu0 %v2011
    %2021 = vmatmul.bf16.gmra.mxu0 %v231
    %v2022 = vpop.f32.mrf.mxu0
    %v2023 = vadd.f32 0.0, %v2022
    %v2024 = vpop.f32.mrf.mxu0
    %v2025 = vadd.f32 0.0, %v2024
    %2026 = vdwg.mxu0
    %2027 = vmatpush.bf16.msra.mxu0 0
    %2028 = vmatpush.bf16.msra.mxu0 0
    %2029 = vmatpush.bf16.msra.mxu0 0
    %2030 = vmatpush.bf16.msra.mxu0 0
    %2031 = vmatpush.bf16.msra.mxu0 0
    %2032 = vmatpush.bf16.msra.mxu0 0
    %2033 = vmatpush.bf16.msra.mxu0 0
    %2034 = vmatpush.bf16.msra.mxu0 %v2012
    %2035 = vmatmul.bf16.gmra.mxu0 %v231
    %v2036 = vpop.f32.mrf.mxu0
    %v2037 = vadd.f32 0.0, %v2036
    %v2038 = vpop.f32.mrf.mxu0
    %v2039 = vadd.f32 0.0, %v2038
    %2040 = vdwg.mxu0
    %v2041 = vmul.f32 %v2023, 0.01
    %v2042 = vmul.f32 %v2037, 0.01
    %v2043 = vmul.f32 %v2025, 0.01
    %v2044 = vmul.f32 %v2039, 0.01
    %v2045 = vmax.f32 %v2023, %v2041
    %v2046 = vmax.f32 %v2037, %v2042
    %v2047 = vmax.f32 %v2025, %v2043
    %v2048 = vmax.f32 %v2039, %v2044
    %v2049 = vpack.c.bf16 %v2047, %v2045
    %v2050 = vpack.c.bf16 %v2048, %v2046
    %2051 = vmatpush.bf16.msra.mxu0 0
    %2052 = vmatpush.bf16.msra.mxu0 0
    %2053 = vmatpush.bf16.msra.mxu0 0
    %2054 = vmatpush.bf16.msra.mxu0 0
    %2055 = vmatpush.bf16.msra.mxu0 0
    %2056 = vmatpush.bf16.msra.mxu0 0
    %2057 = vmatpush.bf16.msra.mxu0 0
    %2058 = vmatpush.bf16.msra.mxu0 %v2049
    %2059 = vmatmul.bf16.gmra.mxu0 %v277
    %v2060 = vpop.f32.mrf.mxu0
    %v2061 = vadd.f32 0.0, %v2060
    %v2062 = vpop.f32.mrf.mxu0
    %v2063 = vadd.f32 0.0, %v2062
    %2064 = vdwg.mxu0
    %2065 = vmatpush.bf16.msra.mxu0 0
    %2066 = vmatpush.bf16.msra.mxu0 0
    %2067 = vmatpush.bf16.msra.mxu0 0
    %2068 = vmatpush.bf16.msra.mxu0 0
    %2069 = vmatpush.bf16.msra.mxu0 0
    %2070 = vmatpush.bf16.msra.mxu0 0
    %2071 = vmatpush.bf16.msra.mxu0 0
    %2072 = vmatpush.bf16.msra.mxu0 %v2050
    %2073 = vmatmul.bf16.gmra.mxu0 %v277
    %v2074 = vpop.f32.mrf.mxu0
    %v2075 = vadd.f32 0.0, %v2074
    %v2076 = vpop.f32.mrf.mxu0
    %v2077 = vadd.f32 0.0, %v2076
    %2078 = vdwg.mxu0
    %v2079 = vmul.f32 %v2061, 0.01
    %v2080 = vmul.f32 %v2075, 0.01
    %v2081 = vmul.f32 %v2063, 0.01
    %v2082 = vmul.f32 %v2077, 0.01
    %v2083 = vmax.f32 %v2061, %v2079
    %v2084 = vmax.f32 %v2075, %v2080
    %v2085 = vmax.f32 %v2063, %v2081
    %v2086 = vmax.f32 %v2077, %v2082
    %v2087 = vpack.c.bf16 %v2085, %v2083
    %v2088 = vpack.c.bf16 %v2086, %v2084
    %2089 = vmatpush.bf16.msra.mxu0 0
    %2090 = vmatpush.bf16.msra.mxu0 0
    %2091 = vmatpush.bf16.msra.mxu0 0
    %2092 = vmatpush.bf16.msra.mxu0 0
    %2093 = vmatpush.bf16.msra.mxu0 0
    %2094 = vmatpush.bf16.msra.mxu0 0
    %2095 = vmatpush.bf16.msra.mxu0 0
    %2096 = vmatpush.bf16.msra.mxu0 %v2087
    %2097 = vmatmul.bf16.gmra.mxu0 %v323
    %v2098 = vpop.f32.mrf.mxu0
    %v2099 = vadd.f32 0.0, %v2098
    %v2100 = vpop.f32.mrf.mxu0
    %v2101 = vadd.f32 0.0, %v2100
    %2102 = vdwg.mxu0
    %2103 = vmatpush.bf16.msra.mxu0 0
    %2104 = vmatpush.bf16.msra.mxu0 0
    %2105 = vmatpush.bf16.msra.mxu0 0
    %2106 = vmatpush.bf16.msra.mxu0 0
    %2107 = vmatpush.bf16.msra.mxu0 0
    %2108 = vmatpush.bf16.msra.mxu0 0
    %2109 = vmatpush.bf16.msra.mxu0 0
    %2110 = vmatpush.bf16.msra.mxu0 %v2088
    %2111 = vmatmul.bf16.gmra.mxu0 %v323
    %v2112 = vpop.f32.mrf.mxu0
    %v2113 = vadd.f32 0.0, %v2112
    %v2114 = vpop.f32.mrf.mxu0
    %v2115 = vadd.f32 0.0, %v2114
    %2116 = vdwg.mxu0
    %v2117 = vmul.f32 %v2099, 0.01
    %v2118 = vmul.f32 %v2113, 0.01
    %v2119 = vmul.f32 %v2101, 0.01
    %v2120 = vmul.f32 %v2115, 0.01
    %v2121 = vmax.f32 %v2099, %v2117
    %v2122 = vmax.f32 %v2113, %v2118
    %v2123 = vmax.f32 %v2101, %v2119
    %v2124 = vmax.f32 %v2115, %v2120
    %v2125 = vpack.c.bf16 %v2123, %v2121
    %v2126 = vpack.c.bf16 %v2124, %v2122
    %2127 = vmatpush.bf16.msra.mxu0 0
    %2128 = vmatpush.bf16.msra.mxu0 0
    %2129 = vmatpush.bf16.msra.mxu0 0
    %2130 = vmatpush.bf16.msra.mxu0 0
    %2131 = vmatpush.bf16.msra.mxu0 0
    %2132 = vmatpush.bf16.msra.mxu0 0
    %2133 = vmatpush.bf16.msra.mxu0 0
    %2134 = vmatpush.bf16.msra.mxu0 %v2125
    %2135 = vmatmul.bf16.gmra.mxu0 %v369
    %v2136 = vpop.f32.mrf.mxu0
    %v2137 = vadd.f32 0.0, %v2136
    %v2138 = vpop.f32.mrf.mxu0
    %2139 = vdwg.mxu0
    %2140 = vmatpush.bf16.msra.mxu0 0
    %2141 = vmatpush.bf16.msra.mxu0 0
    %2142 = vmatpush.bf16.msra.mxu0 0
    %2143 = vmatpush.bf16.msra.mxu0 0
    %2144 = vmatpush.bf16.msra.mxu0 0
    %2145 = vmatpush.bf16.msra.mxu0 0
    %2146 = vmatpush.bf16.msra.mxu0 0
    %2147 = vmatpush.bf16.msra.mxu0 %v2126
    %2148 = vmatmul.bf16.gmra.mxu0 %v369
    %v2149 = vpop.f32.mrf.mxu0
    %v2150 = vadd.f32 0.0, %v2149
    %v2151 = vpop.f32.mrf.mxu0
    %2152 = vdwg.mxu0
    %v2153 = vtanh.pop %v2137
    %v2154 = vtanh.pop %v2150
    %v2157 = vrot.slane %v2154, 7
    %v2158 = vsel %vm402, %v2153, %v2157
    %s2160 = scalar_lea.vmem [#allocation5], 12
    %2161 = vst.msk [vmem:[%s2160] sm:$0x3] %vm408, %v2158
    %s2162 = scalar_lea.vmem %s1, 56
    %v2163 = vld [vmem:[%s2162] sm:$0xf]
    %v2164 = vld [vmem:[%s2162 + $0x4] sm:$0xf]
    %v2165 = vunpack.c.l.bf16 %v2163
    %v2166 = vunpack.c.l.bf16 %v2164
    %2168 = vset.pattern.permute.xlu0 0
    %2169 = vperm.xlu0 %2168, %v2165
    %v2170 = vpop.permute.xlu0 %2169
    %2173 = vset.pattern.permute.xlu0 0
    %2174 = vperm.xlu0 %2173, %v2166
    %v2175 = vpop.permute.xlu0 %2174
    %v2177 = vadd.f32 %v56, %v2170
    %v2178 = vadd.f32 %v57, %v2170
    %v2179 = vadd.f32 %v58, %v2175
    %v2180 = vadd.f32 %v59, %v2175
    %v2181 = vmul.f32 %v2177, 0.01
    %v2182 = vmul.f32 %v2178, 0.01
    %v2183 = vmul.f32 %v2179, 0.01
    %v2184 = vmul.f32 %v2180, 0.01
    %v2185 = vmax.f32 %v2177, %v2181
    %v2186 = vmax.f32 %v2178, %v2182
    %v2187 = vmax.f32 %v2179, %v2183
    %v2188 = vmax.f32 %v2180, %v2184
    %v2189 = vpack.c.bf16 %v2187, %v2185
    %v2190 = vpack.c.bf16 %v2188, %v2186
    %2191 = vmatpush.bf16.msra.mxu0 0
    %2192 = vmatpush.bf16.msra.mxu0 0
    %2193 = vmatpush.bf16.msra.mxu0 0
    %2194 = vmatpush.bf16.msra.mxu0 0
    %2195 = vmatpush.bf16.msra.mxu0 0
    %2196 = vmatpush.bf16.msra.mxu0 0
    %2197 = vmatpush.bf16.msra.mxu0 0
    %2198 = vmatpush.bf16.msra.mxu0 %v2189
    %2199 = vmatmul.bf16.gmra.mxu0 %v93
    %v2200 = vpop.f32.mrf.mxu0
    %v2201 = vadd.f32 0.0, %v2200
    %v2202 = vpop.f32.mrf.mxu0
    %v2203 = vadd.f32 0.0, %v2202
    %2204 = vdwg.mxu0
    %2205 = vmatpush.bf16.msra.mxu0 0
    %2206 = vmatpush.bf16.msra.mxu0 0
    %2207 = vmatpush.bf16.msra.mxu0 0
    %2208 = vmatpush.bf16.msra.mxu0 0
    %2209 = vmatpush.bf16.msra.mxu0 0
    %2210 = vmatpush.bf16.msra.mxu0 0
    %2211 = vmatpush.bf16.msra.mxu0 0
    %2212 = vmatpush.bf16.msra.mxu0 %v2190
    %2213 = vmatmul.bf16.gmra.mxu0 %v93
    %v2214 = vpop.f32.mrf.mxu0
    %v2215 = vadd.f32 0.0, %v2214
    %v2216 = vpop.f32.mrf.mxu0
    %v2217 = vadd.f32 0.0, %v2216
    %2218 = vdwg.mxu0
    %v2219 = vmul.f32 %v2201, 0.01
    %v2220 = vmul.f32 %v2215, 0.01
    %v2221 = vmul.f32 %v2203, 0.01
    %v2222 = vmul.f32 %v2217, 0.01
    %v2223 = vmax.f32 %v2201, %v2219
    %v2224 = vmax.f32 %v2215, %v2220
    %v2225 = vmax.f32 %v2203, %v2221
    %v2226 = vmax.f32 %v2217, %v2222
    %v2227 = vpack.c.bf16 %v2225, %v2223
    %v2228 = vpack.c.bf16 %v2226, %v2224
    %2229 = vmatpush.bf16.msra.mxu0 0
    %2230 = vmatpush.bf16.msra.mxu0 0
    %2231 = vmatpush.bf16.msra.mxu0 0
    %2232 = vmatpush.bf16.msra.mxu0 0
    %2233 = vmatpush.bf16.msra.mxu0 0
    %2234 = vmatpush.bf16.msra.mxu0 0
    %2235 = vmatpush.bf16.msra.mxu0 0
    %2236 = vmatpush.bf16.msra.mxu0 %v2227
    %2237 = vmatmul.bf16.gmra.mxu0 %v139
    %v2238 = vpop.f32.mrf.mxu0
    %v2239 = vadd.f32 0.0, %v2238
    %v2240 = vpop.f32.mrf.mxu0
    %v2241 = vadd.f32 0.0, %v2240
    %2242 = vdwg.mxu0
    %2243 = vmatpush.bf16.msra.mxu0 0
    %2244 = vmatpush.bf16.msra.mxu0 0
    %2245 = vmatpush.bf16.msra.mxu0 0
    %2246 = vmatpush.bf16.msra.mxu0 0
    %2247 = vmatpush.bf16.msra.mxu0 0
    %2248 = vmatpush.bf16.msra.mxu0 0
    %2249 = vmatpush.bf16.msra.mxu0 0
    %2250 = vmatpush.bf16.msra.mxu0 %v2228
    %2251 = vmatmul.bf16.gmra.mxu0 %v139
    %v2252 = vpop.f32.mrf.mxu0
    %v2253 = vadd.f32 0.0, %v2252
    %v2254 = vpop.f32.mrf.mxu0
    %v2255 = vadd.f32 0.0, %v2254
    %2256 = vdwg.mxu0
    %v2257 = vmul.f32 %v2239, 0.01
    %v2258 = vmul.f32 %v2253, 0.01
    %v2259 = vmul.f32 %v2241, 0.01
    %v2260 = vmul.f32 %v2255, 0.01
    %v2261 = vmax.f32 %v2239, %v2257
    %v2262 = vmax.f32 %v2253, %v2258
    %v2263 = vmax.f32 %v2241, %v2259
    %v2264 = vmax.f32 %v2255, %v2260
    %v2265 = vpack.c.bf16 %v2263, %v2261
    %v2266 = vpack.c.bf16 %v2264, %v2262
    %2267 = vmatpush.bf16.msra.mxu0 0
    %2268 = vmatpush.bf16.msra.mxu0 0
    %2269 = vmatpush.bf16.msra.mxu0 0
    %2270 = vmatpush.bf16.msra.mxu0 0
    %2271 = vmatpush.bf16.msra.mxu0 0
    %2272 = vmatpush.bf16.msra.mxu0 0
    %2273 = vmatpush.bf16.msra.mxu0 0
    %2274 = vmatpush.bf16.msra.mxu0 %v2265
    %2275 = vmatmul.bf16.gmra.mxu0 %v185
    %v2276 = vpop.f32.mrf.mxu0
    %v2277 = vadd.f32 0.0, %v2276
    %v2278 = vpop.f32.mrf.mxu0
    %v2279 = vadd.f32 0.0, %v2278
    %2280 = vdwg.mxu0
    %2281 = vmatpush.bf16.msra.mxu0 0
    %2282 = vmatpush.bf16.msra.mxu0 0
    %2283 = vmatpush.bf16.msra.mxu0 0
    %2284 = vmatpush.bf16.msra.mxu0 0
    %2285 = vmatpush.bf16.msra.mxu0 0
    %2286 = vmatpush.bf16.msra.mxu0 0
    %2287 = vmatpush.bf16.msra.mxu0 0
    %2288 = vmatpush.bf16.msra.mxu0 %v2266
    %2289 = vmatmul.bf16.gmra.mxu0 %v185
    %v2290 = vpop.f32.mrf.mxu0
    %v2291 = vadd.f32 0.0, %v2290
    %v2292 = vpop.f32.mrf.mxu0
    %v2293 = vadd.f32 0.0, %v2292
    %2294 = vdwg.mxu0
    %v2295 = vmul.f32 %v2277, 0.01
    %v2296 = vmul.f32 %v2291, 0.01
    %v2297 = vmul.f32 %v2279, 0.01
    %v2298 = vmul.f32 %v2293, 0.01
    %v2299 = vmax.f32 %v2277, %v2295
    %v2300 = vmax.f32 %v2291, %v2296
    %v2301 = vmax.f32 %v2279, %v2297
    %v2302 = vmax.f32 %v2293, %v2298
    %v2303 = vpack.c.bf16 %v2301, %v2299
    %v2304 = vpack.c.bf16 %v2302, %v2300
    %2305 = vmatpush.bf16.msra.mxu0 0
    %2306 = vmatpush.bf16.msra.mxu0 0
    %2307 = vmatpush.bf16.msra.mxu0 0
    %2308 = vmatpush.bf16.msra.mxu0 0
    %2309 = vmatpush.bf16.msra.mxu0 0
    %2310 = vmatpush.bf16.msra.mxu0 0
    %2311 = vmatpush.bf16.msra.mxu0 0
    %2312 = vmatpush.bf16.msra.mxu0 %v2303
    %2313 = vmatmul.bf16.gmra.mxu0 %v231
    %v2314 = vpop.f32.mrf.mxu0
    %v2315 = vadd.f32 0.0, %v2314
    %v2316 = vpop.f32.mrf.mxu0
    %v2317 = vadd.f32 0.0, %v2316
    %2318 = vdwg.mxu0
    %2319 = vmatpush.bf16.msra.mxu0 0
    %2320 = vmatpush.bf16.msra.mxu0 0
    %2321 = vmatpush.bf16.msra.mxu0 0
    %2322 = vmatpush.bf16.msra.mxu0 0
    %2323 = vmatpush.bf16.msra.mxu0 0
    %2324 = vmatpush.bf16.msra.mxu0 0
    %2325 = vmatpush.bf16.msra.mxu0 0
    %2326 = vmatpush.bf16.msra.mxu0 %v2304
    %2327 = vmatmul.bf16.gmra.mxu0 %v231
    %v2328 = vpop.f32.mrf.mxu0
    %v2329 = vadd.f32 0.0, %v2328
    %v2330 = vpop.f32.mrf.mxu0
    %v2331 = vadd.f32 0.0, %v2330
    %2332 = vdwg.mxu0
    %v2333 = vmul.f32 %v2315, 0.01
    %v2334 = vmul.f32 %v2329, 0.01
    %v2335 = vmul.f32 %v2317, 0.01
    %v2336 = vmul.f32 %v2331, 0.01
    %v2337 = vmax.f32 %v2315, %v2333
    %v2338 = vmax.f32 %v2329, %v2334
    %v2339 = vmax.f32 %v2317, %v2335
    %v2340 = vmax.f32 %v2331, %v2336
    %v2341 = vpack.c.bf16 %v2339, %v2337
    %v2342 = vpack.c.bf16 %v2340, %v2338
    %2343 = vmatpush.bf16.msra.mxu0 0
    %2344 = vmatpush.bf16.msra.mxu0 0
    %2345 = vmatpush.bf16.msra.mxu0 0
    %2346 = vmatpush.bf16.msra.mxu0 0
    %2347 = vmatpush.bf16.msra.mxu0 0
    %2348 = vmatpush.bf16.msra.mxu0 0
    %2349 = vmatpush.bf16.msra.mxu0 0
    %2350 = vmatpush.bf16.msra.mxu0 %v2341
    %2351 = vmatmul.bf16.gmra.mxu0 %v277
    %v2352 = vpop.f32.mrf.mxu0
    %v2353 = vadd.f32 0.0, %v2352
    %v2354 = vpop.f32.mrf.mxu0
    %v2355 = vadd.f32 0.0, %v2354
    %2356 = vdwg.mxu0
    %2357 = vmatpush.bf16.msra.mxu0 0
    %2358 = vmatpush.bf16.msra.mxu0 0
    %2359 = vmatpush.bf16.msra.mxu0 0
    %2360 = vmatpush.bf16.msra.mxu0 0
    %2361 = vmatpush.bf16.msra.mxu0 0
    %2362 = vmatpush.bf16.msra.mxu0 0
    %2363 = vmatpush.bf16.msra.mxu0 0
    %2364 = vmatpush.bf16.msra.mxu0 %v2342
    %2365 = vmatmul.bf16.gmra.mxu0 %v277
    %v2366 = vpop.f32.mrf.mxu0
    %v2367 = vadd.f32 0.0, %v2366
    %v2368 = vpop.f32.mrf.mxu0
    %v2369 = vadd.f32 0.0, %v2368
    %2370 = vdwg.mxu0
    %v2371 = vmul.f32 %v2353, 0.01
    %v2372 = vmul.f32 %v2367, 0.01
    %v2373 = vmul.f32 %v2355, 0.01
    %v2374 = vmul.f32 %v2369, 0.01
    %v2375 = vmax.f32 %v2353, %v2371
    %v2376 = vmax.f32 %v2367, %v2372
    %v2377 = vmax.f32 %v2355, %v2373
    %v2378 = vmax.f32 %v2369, %v2374
    %v2379 = vpack.c.bf16 %v2377, %v2375
    %v2380 = vpack.c.bf16 %v2378, %v2376
    %2381 = vmatpush.bf16.msra.mxu0 0
    %2382 = vmatpush.bf16.msra.mxu0 0
    %2383 = vmatpush.bf16.msra.mxu0 0
    %2384 = vmatpush.bf16.msra.mxu0 0
    %2385 = vmatpush.bf16.msra.mxu0 0
    %2386 = vmatpush.bf16.msra.mxu0 0
    %2387 = vmatpush.bf16.msra.mxu0 0
    %2388 = vmatpush.bf16.msra.mxu0 %v2379
    %2389 = vmatmul.bf16.gmra.mxu0 %v323
    %v2390 = vpop.f32.mrf.mxu0
    %v2391 = vadd.f32 0.0, %v2390
    %v2392 = vpop.f32.mrf.mxu0
    %v2393 = vadd.f32 0.0, %v2392
    %2394 = vdwg.mxu0
    %2395 = vmatpush.bf16.msra.mxu0 0
    %2396 = vmatpush.bf16.msra.mxu0 0
    %2397 = vmatpush.bf16.msra.mxu0 0
    %2398 = vmatpush.bf16.msra.mxu0 0
    %2399 = vmatpush.bf16.msra.mxu0 0
    %2400 = vmatpush.bf16.msra.mxu0 0
    %2401 = vmatpush.bf16.msra.mxu0 0
    %2402 = vmatpush.bf16.msra.mxu0 %v2380
    %2403 = vmatmul.bf16.gmra.mxu0 %v323
    %v2404 = vpop.f32.mrf.mxu0
    %v2405 = vadd.f32 0.0, %v2404
    %v2406 = vpop.f32.mrf.mxu0
    %v2407 = vadd.f32 0.0, %v2406
    %2408 = vdwg.mxu0
    %v2409 = vmul.f32 %v2391, 0.01
    %v2410 = vmul.f32 %v2405, 0.01
    %v2411 = vmul.f32 %v2393, 0.01
    %v2412 = vmul.f32 %v2407, 0.01
    %v2413 = vmax.f32 %v2391, %v2409
    %v2414 = vmax.f32 %v2405, %v2410
    %v2415 = vmax.f32 %v2393, %v2411
    %v2416 = vmax.f32 %v2407, %v2412
    %v2417 = vpack.c.bf16 %v2415, %v2413
    %v2418 = vpack.c.bf16 %v2416, %v2414
    %2419 = vmatpush.bf16.msra.mxu0 0
    %2420 = vmatpush.bf16.msra.mxu0 0
    %2421 = vmatpush.bf16.msra.mxu0 0
    %2422 = vmatpush.bf16.msra.mxu0 0
    %2423 = vmatpush.bf16.msra.mxu0 0
    %2424 = vmatpush.bf16.msra.mxu0 0
    %2425 = vmatpush.bf16.msra.mxu0 0
    %2426 = vmatpush.bf16.msra.mxu0 %v2417
    %2427 = vmatmul.bf16.gmra.mxu0 %v369
    %v2428 = vpop.f32.mrf.mxu0
    %v2429 = vadd.f32 0.0, %v2428
    %v2430 = vpop.f32.mrf.mxu0
    %2431 = vdwg.mxu0
    %2432 = vmatpush.bf16.msra.mxu0 0
    %2433 = vmatpush.bf16.msra.mxu0 0
    %2434 = vmatpush.bf16.msra.mxu0 0
    %2435 = vmatpush.bf16.msra.mxu0 0
    %2436 = vmatpush.bf16.msra.mxu0 0
    %2437 = vmatpush.bf16.msra.mxu0 0
    %2438 = vmatpush.bf16.msra.mxu0 0
    %2439 = vmatpush.bf16.msra.mxu0 %v2418
    %2440 = vmatmul.bf16.gmra.mxu0 %v369
    %v2441 = vpop.f32.mrf.mxu0
    %v2442 = vadd.f32 0.0, %v2441
    %v2443 = vpop.f32.mrf.mxu0
    %2444 = vdwg.mxu0
    %v2445 = vtanh.pop %v2429
    %v2446 = vtanh.pop %v2442
    %v2449 = vrot.slane %v2446, 7
    %v2450 = vsel %vm402, %v2445, %v2449
    %s2452 = scalar_lea.vmem [#allocation5], 14
    %2453 = vst.msk [vmem:[%s2452] sm:$0x3] %vm408, %v2450
    // Predicated region
    $region18: #{tpu_custom_call.1} parent=1 // pred_check
      _
    $region19: #{tpu_custom_call.1} parent=1 // pred_check_branch
      %2455 = sbr.rel (0) target = $region21
    $region20: #{tpu_custom_call.1} parent=1 // pred_region
      %2457 = vsyncadd [#allocation4], 0
      %s2458 = sshll.u32 [#allocation5], 4
      %s2459 = int_to_ptr.vmem [resolvable:$true] %s2458
      %s2460 = sshll.u32 %s3, 4
      %s2461 = int_to_ptr.hbm [resolvable:$true] %s2460
      %2466 = dma.vmem_to_hbm [thread:$0]  %s2459, 256, %s2461, [#allocation4], 32, 32, 2
    $region21: #{tpu_custom_call.1} parent=1 // pred_fallthru
      _
    // Predicated region
    $region22: #{tpu_custom_call.1} parent=1 // pred_check
      _
    $region23: #{tpu_custom_call.1} parent=1 // pred_check_branch
      %2468 = sbr.rel (0) target = $region25
    $region24: #{tpu_custom_call.1} parent=1 // pred_region
      %2470 = dma.done [#allocation4], 256
    $region25: #{tpu_custom_call.1} parent=1 // pred_fallthru
      _
    %2471 = vsyncpa [#allocation3], 1
    %2472 = vsyncpa [#allocation4], 1

</llo_original>
